<compile_context>
chip_gen: v5e
topology: v5e:2x2
jax: 0.10.0
libtpu: 0.0.40
codegen_flags: <defaults>
</compile_context>

<pallas_src>
import functools

import jax
import jax.numpy as jnp
from jax import lax
from jax.experimental import pallas as pl
from jax.experimental.pallas import tpu as pltpu  # noqa: F401  (TPU backend)

FC_OUT_DIM = 16       # Options()['model']['network']['fc_out_dim']
LSTM_OUT_DIM = 32     # Options()['model']['network']['lstm_out_dim']
NUM_LAYERS = 1
BIDIRECTIONAL = True
LN_EPS = 1e-5


def _layernorm(x, gamma, beta):
    mean = jnp.mean(x, axis=-1, keepdims=True)
    var = jnp.mean((x - mean) ** 2, axis=-1, keepdims=True)
    return (x - mean) * lax.rsqrt(var + LN_EPS) * gamma + beta


# ---------------------------------------------------------------------------
# Single fused kernel: embedding MLPs + bidirectional LN-LSTM + fusion head.
# All operands are tiny and live entirely in VMEM (no grid, no BlockSpecs).
# ---------------------------------------------------------------------------
def _fused_forward_kernel(L, B,
                          peaks_ref,                       # (L*B, 2)  time-major
                          wmz1_ref, bmz1_ref,              # (1, 32)
                          wit1_ref, bit1_ref,              # (1, 32)
                          w2_ref, b2_ref,                  # (64, 32), (1, 32)
                          wlstm_ref,                       # (128, 512) block-diag
                          gg_ref, bg_ref,                  # (4, 4H) gate LN gamma/beta
                          gc_ref, bc_ref,                  # (2, H)  cell LN gamma/beta
                          h0_ref, c0_ref,                  # (2, B, H)
                          wfuse_ref, bfuse_ref,            # (64, 32), (1, 32)
                          out_ref):                        # (B, H)
    H = LSTM_OUT_DIM

    # ---- per-peak embedding: layer 1 via VPU broadcast FMA, layer 2 one dot.
    peaks = peaks_ref[...]                                  # (L*B, 2)
    mz = peaks[:, 0:1]
    it = peaks[:, 1:2]
    hm = jnp.maximum(mz * wmz1_ref[...] + bmz1_ref[...], 0.0)   # (L*B, 32)
    hi = jnp.maximum(it * wit1_ref[...] + bit1_ref[...], 0.0)   # (L*B, 32)
    h12 = jnp.concatenate([hm, hi], axis=-1)                    # (L*B, 64)
    emb = jnp.maximum(
        jnp.dot(h12, w2_ref[...], preferred_element_type=jnp.float32)
        + b2_ref[...], 0.0)                                     # (L*B, 2F) = [mz|int]

    # ---- LayerNorm parameters (rows: [gi_f, gh_f, gi_b, gh_b] / [gc_f, gc_b])
    gg = gg_ref[...]
    bg = bg_ref[...]
    gc = gc_ref[...]
    bc = bc_ref[...]
    gi_f, gh_f, gi_b, gh_b = gg[0:1], gg[1:2], gg[2:3], gg[3:4]
    bi_f, bh_f, bi_b, bh_b = bg[0:1], bg[1:2], bg[2:3], bg[3:4]
    gc_f, gc_b = gc[0:1], gc[1:2]
    bc_f, bc_b = bc[0:1], bc[1:2]

    wlstm = wlstm_ref[...]
    h0 = h0_ref[...]
    c0 = c0_ref[...]
    h_f, c_f = h0[0], c0[0]
    h_b, c_b = h0[1], c0[1]

    def cell_update(gates, c, gamma_c, beta_c):
        i_g = jax.nn.sigmoid(gates[:, 0 * H:1 * H])
        f_g = jax.nn.sigmoid(gates[:, 1 * H:2 * H])
        g_g = jnp.tanh(gates[:, 2 * H:3 * H])
        o_g = jax.nn.sigmoid(gates[:, 3 * H:4 * H])
        c_new = _layernorm(f_g * c + i_g * g_g, gamma_c, beta_c)
        h_new = o_g * jnp.tanh(c_new)
        return h_new, c_new

    # ---- fully unrolled recurrence, both directions per step, one dot/step.
    for t in range(L):
        x_f = emb[t * B:(t + 1) * B, :]                     # (B, 32)
        x_b = emb[(L - 1 - t) * B:(L - t) * B, :]           # (B, 32) reversed time
        lhs = jnp.concatenate([x_f, h_f, x_b, h_b], axis=-1)            # (B, 128)
        gates = jnp.dot(lhs, wlstm, preferred_element_type=jnp.float32)  # (B, 512)
        ig_f = _layernorm(gates[:, 0 * 4 * H:1 * 4 * H], gi_f, bi_f)
        hg_f = _layernorm(gates[:, 1 * 4 * H:2 * 4 * H], gh_f, bh_f)
        ig_b = _layernorm(gates[:, 2 * 4 * H:3 * 4 * H], gi_b, bi_b)
        hg_b = _layernorm(gates[:, 3 * 4 * H:4 * 4 * H], gh_b, bh_b)
        h_f, c_f = cell_update(ig_f + hg_f, c_f, gc_f, bc_f)
        h_b, c_b = cell_update(ig_b + hg_b, c_b, gc_b, bc_b)

    # ---- fusion head on final cell states: relu(Linear(cat(c_fwd, c_bwd)))
    c_cat = jnp.concatenate([c_f, c_b], axis=-1)            # (B, 2H)
    out_ref[...] = jnp.maximum(
        jnp.dot(c_cat, wfuse_ref[...], preferred_element_type=jnp.float32)
        + bfuse_ref[...], 0.0)


# ---------------------------------------------------------------------------
# Forward wrapper: one pallas_call, no grid.
# ---------------------------------------------------------------------------
@jax.jit
def ms_embedding_norm_forward(peaks, peaks_len, params):
    del peaks_len  # bidirectional branch of the reference never uses it
    B, L, _ = peaks.shape
    H = LSTM_OUT_DIM
    # time-major flat layout (row = t*B + b); tiny (L*B*2 floats) reshape.
    peaks_tm = jnp.transpose(peaks, (1, 0, 2)).reshape(L * B, 2)
    kernel = functools.partial(_fused_forward_kernel, L, B)
    return pl.pallas_call(
        kernel,
        out_shape=jax.ShapeDtypeStruct((B, H), jnp.float32),
    )(peaks_tm,
      params['wmz1'], params['bmz1'], params['wit1'], params['bit1'],
      params['w2'], params['b2'],
      params['wlstm'], params['g_gates'], params['b_gates'],
      params['g_cell'], params['b_cell'],
      params['h0'], params['c0'],
      params['wfuse'], params['bfuse'])


# ---------------------------------------------------------------------------
# Deterministic parameter initialization + one-time packing into fused layout.
# ---------------------------------------------------------------------------
def init_params(key, batch_size):
    ks = jax.random.split(key, 8)
    F = FC_OUT_DIM
    H = LSTM_OUT_DIM
    Din = 2 * F

    def lin(k, fan_in, fan_out):
        kw, kb = jax.random.split(k)
        w = jax.random.normal(kw, (fan_in, fan_out), jnp.float32) * 0.1
        b = jax.random.normal(kb, (1, fan_out), jnp.float32) * 0.1
        return w, b

    wmz1, bmz1 = lin(ks[0], 1, 32)        # fcMZ1: Linear(1, 32)
    wmz2, bmz2 = lin(ks[1], 32, F)        # fcMZ2: Linear(32, fcOutDim)
    wit1, bit1 = lin(ks[2], 1, 32)        # fcIntensity1
    wit2, bit2 = lin(ks[3], 32, F)        # fcIntensity2

    def lstm_dir(k):
        k1, k2, k3, k4 = jax.random.split(k, 4)
        return {
            'wih': jax.random.normal(k1, (Din, 4 * H), jnp.float32) * 0.1,
            'whh': jax.random.normal(k2, (H, 4 * H), jnp.float32) * 0.1,
            'gi': jnp.ones((4 * H,), jnp.float32), 'bi': jnp.zeros((4 * H,), jnp.float32),
            'gh': jnp.ones((4 * H,), jnp.float32), 'bh': jnp.zeros((4 * H,), jnp.float32),
            'gc': jnp.ones((H,), jnp.float32), 'bc': jnp.zeros((H,), jnp.float32),
            'h0': jax.random.normal(k3, (batch_size, H), jnp.float32) * 0.1,  # LSTMState
            'c0': jax.random.normal(k4, (batch_size, H), jnp.float32) * 0.1,
        }

    fwd = lstm_dir(ks[4])
    bwd = lstm_dir(ks[5])
    wfuse, bfuse = lin(ks[6], 2 * H, H)   # fusion: Linear(2H, H)

    # ---- pack into fused-kernel layout (one-time weight prep) ----
    p = {
        'wmz1': wmz1.reshape(1, 32), 'bmz1': bmz1,   # layer-1 row vectors (VPU FMA)
        'wit1': wit1.reshape(1, 32), 'bit1': bit1,
    }
    # embedding layer 2: block-diagonal so [h_mz | h_int] -> [e_mz | e_int]
    w2 = jnp.zeros((64, 2 * F), jnp.float32)
    w2 = w2.at[0:32, 0:F].set(wmz2).at[32:64, F:2 * F].set(wit2)
    p['w2'] = w2
    p['b2'] = jnp.concatenate([bmz2, bit2], axis=-1)

    # LSTM: block-diagonal weight so one dot per step produces
    # [igates_fwd | hgates_fwd | igates_bwd | hgates_bwd]
    # (LayerNorm is applied to each 4H block separately before summing,
    #  exactly as in the reference LayerNormLSTMCell).
    W = jnp.zeros((2 * (Din + H), 4 * 4 * H), jnp.float32)
    W = W.at[0:Din, 0 * 4 * H:1 * 4 * H].set(fwd['wih'])
    W = W.at[Din:Din + H, 1 * 4 * H:2 * 4 * H].set(fwd['whh'])
    W = W.at[Din + H:2 * Din + H, 2 * 4 * H:3 * 4 * H].set(bwd['wih'])
    W = W.at[2 * Din + H:, 3 * 4 * H:4 * 4 * H].set(bwd['whh'])
    p['wlstm'] = W
    p['g_gates'] = jnp.stack([fwd['gi'], fwd['gh'], bwd['gi'], bwd['gh']])   # (4, 4H)
    p['b_gates'] = jnp.stack([fwd['bi'], fwd['bh'], bwd['bi'], bwd['bh']])
    p['g_cell'] = jnp.stack([fwd['gc'], bwd['gc']])                          # (2, H)
    p['b_cell'] = jnp.stack([fwd['bc'], bwd['bc']])
    p['h0'] = jnp.stack([fwd['h0'], bwd['h0']])                              # (2, B, H)
    p['c0'] = jnp.stack([fwd['c0'], bwd['c0']])
    p['wfuse'] = wfuse
    p['bfuse'] = bfuse
    return p


if __name__ == "__main__":
    key = jax.random.PRNGKey(0)
    k_param, k_data = jax.random.split(key)

    B, L = 2, 8
    peaks = jax.random.uniform(k_data, (B, L, 2), jnp.float32)   # (batch, seq, [mz, intensity])
    peaks_len = jnp.array([8, 5], dtype=jnp.int32)               # unused in bidi branch
    params = init_params(k_param, B)

    out = ms_embedding_norm_forward(peaks, peaks_len, params)
    out = jax.block_until_ready(out)
    assert out.shape == (B, LSTM_OUT_DIM) and out.dtype == jnp.float32
    print("KERNEL_OK")
</pallas_src>

<mosaic_0001>
module attributes {stable_mosaic.version = 11 : i64} {
  func.func @_fused_forward_kernel(%arg0: memref<16x2xf32, #tpu.memory_space<vmem>>, %arg1: memref<1x32xf32, #tpu.memory_space<vmem>>, %arg2: memref<1x32xf32, #tpu.memory_space<vmem>>, %arg3: memref<1x32xf32, #tpu.memory_space<vmem>>, %arg4: memref<1x32xf32, #tpu.memory_space<vmem>>, %arg5: memref<64x32xf32, #tpu.memory_space<vmem>>, %arg6: memref<1x32xf32, #tpu.memory_space<vmem>>, %arg7: memref<128x512xf32, #tpu.memory_space<vmem>>, %arg8: memref<4x128xf32, #tpu.memory_space<vmem>>, %arg9: memref<4x128xf32, #tpu.memory_space<vmem>>, %arg10: memref<2x32xf32, #tpu.memory_space<vmem>>, %arg11: memref<2x32xf32, #tpu.memory_space<vmem>>, %arg12: memref<2x2x32xf32, #tpu.memory_space<vmem>>, %arg13: memref<2x2x32xf32, #tpu.memory_space<vmem>>, %arg14: memref<64x32xf32, #tpu.memory_space<vmem>>, %arg15: memref<1x32xf32, #tpu.memory_space<vmem>>, %arg16: memref<2x32xf32, #tpu.memory_space<vmem>>) attributes {dimension_semantics = [], scalar_prefetch = 0 : i64, scratch_operands = 0 : i64, tpu.core_type = #tpu.core_type<tc>} {
    %c0 = arith.constant 0 : index
    %c0_0 = arith.constant 0 : index
    %0 = vector.load %arg0[%c0, %c0_0] : memref<16x2xf32, #tpu.memory_space<vmem>>, vector<16x2xf32>
    %1 = vector.extract_strided_slice %0 {offsets = [0, 0], sizes = [16, 1], strides = [1, 1]} : vector<16x2xf32> to vector<16x1xf32>
    %2 = vector.extract_strided_slice %0 {offsets = [0, 1], sizes = [16, 1], strides = [1, 1]} : vector<16x2xf32> to vector<16x1xf32>
    %c0_1 = arith.constant 0 : index
    %c0_2 = arith.constant 0 : index
    %3 = vector.load %arg1[%c0_1, %c0_2] : memref<1x32xf32, #tpu.memory_space<vmem>>, vector<1x32xf32>
    %4 = vector.broadcast %1 : vector<16x1xf32> to vector<16x32xf32>
    %5 = vector.broadcast %3 : vector<1x32xf32> to vector<16x32xf32>
    %6 = arith.mulf %4, %5 : vector<16x32xf32>
    %c0_3 = arith.constant 0 : index
    %c0_4 = arith.constant 0 : index
    %7 = vector.load %arg2[%c0_3, %c0_4] : memref<1x32xf32, #tpu.memory_space<vmem>>, vector<1x32xf32>
    %8 = vector.broadcast %7 : vector<1x32xf32> to vector<16x32xf32>
    %9 = arith.addf %6, %8 : vector<16x32xf32>
    %cst = arith.constant 0.000000e+00 : f32
    %10 = vector.broadcast %cst : f32 to vector<16x32xf32>
    %11 = arith.maximumf %9, %10 : vector<16x32xf32>
    %c0_5 = arith.constant 0 : index
    %c0_6 = arith.constant 0 : index
    %12 = vector.load %arg3[%c0_5, %c0_6] : memref<1x32xf32, #tpu.memory_space<vmem>>, vector<1x32xf32>
    %13 = vector.broadcast %2 : vector<16x1xf32> to vector<16x32xf32>
    %14 = vector.broadcast %12 : vector<1x32xf32> to vector<16x32xf32>
    %15 = arith.mulf %13, %14 : vector<16x32xf32>
    %c0_7 = arith.constant 0 : index
    %c0_8 = arith.constant 0 : index
    %16 = vector.load %arg4[%c0_7, %c0_8] : memref<1x32xf32, #tpu.memory_space<vmem>>, vector<1x32xf32>
    %17 = vector.broadcast %16 : vector<1x32xf32> to vector<16x32xf32>
    %18 = arith.addf %15, %17 : vector<16x32xf32>
    %cst_9 = arith.constant 0.000000e+00 : f32
    %19 = vector.broadcast %cst_9 : f32 to vector<16x32xf32>
    %20 = arith.maximumf %18, %19 : vector<16x32xf32>
    %21 = tpu.concatenate %11, %20 in 1 : vector<16x32xf32>, vector<16x32xf32> -> vector<16x64xf32>
    %c0_10 = arith.constant 0 : index
    %c0_11 = arith.constant 0 : index
    %22 = vector.load %arg5[%c0_10, %c0_11] : memref<64x32xf32, #tpu.memory_space<vmem>>, vector<64x32xf32>
    %cst_12 = arith.constant dense<0.000000e+00> : vector<16x32xf32>
    %23 = tpu.matmul %21, %22, %cst_12 {dimension_numbers = #tpu.dot_dimension_numbers<[1], [0], [0], [1], [0, 0, 1, 1], [], []>} : vector<16x64xf32>, vector<64x32xf32>, vector<16x32xf32> -> vector<16x32xf32>
    %c0_13 = arith.constant 0 : index
    %c0_14 = arith.constant 0 : index
    %24 = vector.load %arg6[%c0_13, %c0_14] : memref<1x32xf32, #tpu.memory_space<vmem>>, vector<1x32xf32>
    %25 = vector.broadcast %24 : vector<1x32xf32> to vector<16x32xf32>
    %26 = arith.addf %23, %25 : vector<16x32xf32>
    %cst_15 = arith.constant 0.000000e+00 : f32
    %27 = vector.broadcast %cst_15 : f32 to vector<16x32xf32>
    %28 = arith.maximumf %26, %27 : vector<16x32xf32>
    %c0_16 = arith.constant 0 : index
    %c0_17 = arith.constant 0 : index
    %29 = vector.load %arg8[%c0_16, %c0_17] : memref<4x128xf32, #tpu.memory_space<vmem>>, vector<4x128xf32>
    %c0_18 = arith.constant 0 : index
    %c0_19 = arith.constant 0 : index
    %30 = vector.load %arg9[%c0_18, %c0_19] : memref<4x128xf32, #tpu.memory_space<vmem>>, vector<4x128xf32>
    %c0_20 = arith.constant 0 : index
    %c0_21 = arith.constant 0 : index
    %31 = vector.load %arg10[%c0_20, %c0_21] : memref<2x32xf32, #tpu.memory_space<vmem>>, vector<2x32xf32>
    %c0_22 = arith.constant 0 : index
    %c0_23 = arith.constant 0 : index
    %32 = vector.load %arg11[%c0_22, %c0_23] : memref<2x32xf32, #tpu.memory_space<vmem>>, vector<2x32xf32>
    %33 = vector.extract_strided_slice %29 {offsets = [0, 0], sizes = [1, 128], strides = [1, 1]} : vector<4x128xf32> to vector<1x128xf32>
    %34 = vector.extract_strided_slice %29 {offsets = [1, 0], sizes = [1, 128], strides = [1, 1]} : vector<4x128xf32> to vector<1x128xf32>
    %35 = vector.extract_strided_slice %29 {offsets = [2, 0], sizes = [1, 128], strides = [1, 1]} : vector<4x128xf32> to vector<1x128xf32>
    %36 = vector.extract_strided_slice %29 {offsets = [3, 0], sizes = [1, 128], strides = [1, 1]} : vector<4x128xf32> to vector<1x128xf32>
    %37 = vector.extract_strided_slice %30 {offsets = [0, 0], sizes = [1, 128], strides = [1, 1]} : vector<4x128xf32> to vector<1x128xf32>
    %38 = vector.extract_strided_slice %30 {offsets = [1, 0], sizes = [1, 128], strides = [1, 1]} : vector<4x128xf32> to vector<1x128xf32>
    %39 = vector.extract_strided_slice %30 {offsets = [2, 0], sizes = [1, 128], strides = [1, 1]} : vector<4x128xf32> to vector<1x128xf32>
    %40 = vector.extract_strided_slice %30 {offsets = [3, 0], sizes = [1, 128], strides = [1, 1]} : vector<4x128xf32> to vector<1x128xf32>
    %41 = vector.extract_strided_slice %31 {offsets = [0, 0], sizes = [1, 32], strides = [1, 1]} : vector<2x32xf32> to vector<1x32xf32>
    %42 = vector.extract_strided_slice %31 {offsets = [1, 0], sizes = [1, 32], strides = [1, 1]} : vector<2x32xf32> to vector<1x32xf32>
    %43 = vector.extract_strided_slice %32 {offsets = [0, 0], sizes = [1, 32], strides = [1, 1]} : vector<2x32xf32> to vector<1x32xf32>
    %44 = vector.extract_strided_slice %32 {offsets = [1, 0], sizes = [1, 32], strides = [1, 1]} : vector<2x32xf32> to vector<1x32xf32>
    %c0_24 = arith.constant 0 : index
    %c0_25 = arith.constant 0 : index
    %45 = vector.load %arg7[%c0_24, %c0_25] : memref<128x512xf32, #tpu.memory_space<vmem>>, vector<128x512xf32>
    %c0_26 = arith.constant 0 : index
    %c0_27 = arith.constant 0 : index
    %c0_28 = arith.constant 0 : index
    %46 = vector.load %arg12[%c0_26, %c0_27, %c0_28] : memref<2x2x32xf32, #tpu.memory_space<vmem>>, vector<2x2x32xf32>
    %c0_29 = arith.constant 0 : index
    %c0_30 = arith.constant 0 : index
    %c0_31 = arith.constant 0 : index
    %47 = vector.load %arg13[%c0_29, %c0_30, %c0_31] : memref<2x2x32xf32, #tpu.memory_space<vmem>>, vector<2x2x32xf32>
    %48 = vector.extract_strided_slice %46 {offsets = [0, 0, 0], sizes = [1, 2, 32], strides = [1, 1, 1]} : vector<2x2x32xf32> to vector<1x2x32xf32>
    %49 = vector.shape_cast %48 : vector<1x2x32xf32> to vector<2x32xf32>
    %50 = vector.extract_strided_slice %47 {offsets = [0, 0, 0], sizes = [1, 2, 32], strides = [1, 1, 1]} : vector<2x2x32xf32> to vector<1x2x32xf32>
    %51 = vector.shape_cast %50 : vector<1x2x32xf32> to vector<2x32xf32>
    %52 = vector.extract_strided_slice %46 {offsets = [1, 0, 0], sizes = [1, 2, 32], strides = [1, 1, 1]} : vector<2x2x32xf32> to vector<1x2x32xf32>
    %53 = vector.shape_cast %52 : vector<1x2x32xf32> to vector<2x32xf32>
    %54 = vector.extract_strided_slice %47 {offsets = [1, 0, 0], sizes = [1, 2, 32], strides = [1, 1, 1]} : vector<2x2x32xf32> to vector<1x2x32xf32>
    %55 = vector.shape_cast %54 : vector<1x2x32xf32> to vector<2x32xf32>
    %56 = vector.extract_strided_slice %28 {offsets = [0, 0], sizes = [2, 32], strides = [1, 1]} : vector<16x32xf32> to vector<2x32xf32>
    %57 = vector.extract_strided_slice %28 {offsets = [14, 0], sizes = [2, 32], strides = [1, 1]} : vector<16x32xf32> to vector<2x32xf32>
    %58 = tpu.concatenate %56, %49, %57, %53 in 1 : vector<2x32xf32>, vector<2x32xf32>, vector<2x32xf32>, vector<2x32xf32> -> vector<2x128xf32>
    %cst_32 = arith.constant dense<0.000000e+00> : vector<2x512xf32>
    %59 = tpu.matmul %58, %45, %cst_32 {dimension_numbers = #tpu.dot_dimension_numbers<[1], [0], [0], [1], [0, 0, 1, 1], [], []>} : vector<2x128xf32>, vector<128x512xf32>, vector<2x512xf32> -> vector<2x512xf32>
    %60 = vector.extract_strided_slice %59 {offsets = [0, 0], sizes = [2, 128], strides = [1, 1]} : vector<2x512xf32> to vector<2x128xf32>
    %cst_33 = arith.constant dense<0.000000e+00> : vector<2xf32>
    %61 = vector.multi_reduction <add>, %60, %cst_33 [1] : vector<2x128xf32> to vector<2xf32>
    %62 = vector.shape_cast %61 : vector<2xf32> to vector<2x1xf32>
    %cst_34 = arith.constant 1.280000e+02 : f32
    %63 = vector.broadcast %cst_34 : f32 to vector<2x1xf32>
    %64 = arith.divf %62, %63 : vector<2x1xf32>
    %65 = vector.broadcast %64 : vector<2x1xf32> to vector<2x128xf32>
    %66 = arith.subf %60, %65 : vector<2x128xf32>
    %67 = arith.mulf %66, %66 : vector<2x128xf32>
    %cst_35 = arith.constant dense<0.000000e+00> : vector<2xf32>
    %68 = vector.multi_reduction <add>, %67, %cst_35 [1] : vector<2x128xf32> to vector<2xf32>
    %69 = vector.shape_cast %68 : vector<2xf32> to vector<2x1xf32>
    %cst_36 = arith.constant 1.280000e+02 : f32
    %70 = vector.broadcast %cst_36 : f32 to vector<2x1xf32>
    %71 = arith.divf %69, %70 : vector<2x1xf32>
    %72 = vector.broadcast %64 : vector<2x1xf32> to vector<2x128xf32>
    %73 = arith.subf %60, %72 : vector<2x128xf32>
    %cst_37 = arith.constant 9.99999974E-6 : f32
    %74 = vector.broadcast %cst_37 : f32 to vector<2x1xf32>
    %75 = arith.addf %71, %74 : vector<2x1xf32>
    %76 = math.rsqrt %75 : vector<2x1xf32>
    %77 = vector.broadcast %76 : vector<2x1xf32> to vector<2x128xf32>
    %78 = arith.mulf %73, %77 : vector<2x128xf32>
    %79 = vector.broadcast %33 : vector<1x128xf32> to vector<2x128xf32>
    %80 = arith.mulf %78, %79 : vector<2x128xf32>
    %81 = vector.broadcast %37 : vector<1x128xf32> to vector<2x128xf32>
    %82 = arith.addf %80, %81 : vector<2x128xf32>
    %83 = vector.extract_strided_slice %59 {offsets = [0, 128], sizes = [2, 128], strides = [1, 1]} : vector<2x512xf32> to vector<2x128xf32>
    %cst_38 = arith.constant dense<0.000000e+00> : vector<2xf32>
    %84 = vector.multi_reduction <add>, %83, %cst_38 [1] : vector<2x128xf32> to vector<2xf32>
    %85 = vector.shape_cast %84 : vector<2xf32> to vector<2x1xf32>
    %cst_39 = arith.constant 1.280000e+02 : f32
    %86 = vector.broadcast %cst_39 : f32 to vector<2x1xf32>
    %87 = arith.divf %85, %86 : vector<2x1xf32>
    %88 = vector.broadcast %87 : vector<2x1xf32> to vector<2x128xf32>
    %89 = arith.subf %83, %88 : vector<2x128xf32>
    %90 = arith.mulf %89, %89 : vector<2x128xf32>
    %cst_40 = arith.constant dense<0.000000e+00> : vector<2xf32>
    %91 = vector.multi_reduction <add>, %90, %cst_40 [1] : vector<2x128xf32> to vector<2xf32>
    %92 = vector.shape_cast %91 : vector<2xf32> to vector<2x1xf32>
    %cst_41 = arith.constant 1.280000e+02 : f32
    %93 = vector.broadcast %cst_41 : f32 to vector<2x1xf32>
    %94 = arith.divf %92, %93 : vector<2x1xf32>
    %95 = vector.broadcast %87 : vector<2x1xf32> to vector<2x128xf32>
    %96 = arith.subf %83, %95 : vector<2x128xf32>
    %cst_42 = arith.constant 9.99999974E-6 : f32
    %97 = vector.broadcast %cst_42 : f32 to vector<2x1xf32>
    %98 = arith.addf %94, %97 : vector<2x1xf32>
    %99 = math.rsqrt %98 : vector<2x1xf32>
    %100 = vector.broadcast %99 : vector<2x1xf32> to vector<2x128xf32>
    %101 = arith.mulf %96, %100 : vector<2x128xf32>
    %102 = vector.broadcast %34 : vector<1x128xf32> to vector<2x128xf32>
    %103 = arith.mulf %101, %102 : vector<2x128xf32>
    %104 = vector.broadcast %38 : vector<1x128xf32> to vector<2x128xf32>
    %105 = arith.addf %103, %104 : vector<2x128xf32>
    %106 = vector.extract_strided_slice %59 {offsets = [0, 256], sizes = [2, 128], strides = [1, 1]} : vector<2x512xf32> to vector<2x128xf32>
    %cst_43 = arith.constant dense<0.000000e+00> : vector<2xf32>
    %107 = vector.multi_reduction <add>, %106, %cst_43 [1] : vector<2x128xf32> to vector<2xf32>
    %108 = vector.shape_cast %107 : vector<2xf32> to vector<2x1xf32>
    %cst_44 = arith.constant 1.280000e+02 : f32
    %109 = vector.broadcast %cst_44 : f32 to vector<2x1xf32>
    %110 = arith.divf %108, %109 : vector<2x1xf32>
    %111 = vector.broadcast %110 : vector<2x1xf32> to vector<2x128xf32>
    %112 = arith.subf %106, %111 : vector<2x128xf32>
    %113 = arith.mulf %112, %112 : vector<2x128xf32>
    %cst_45 = arith.constant dense<0.000000e+00> : vector<2xf32>
    %114 = vector.multi_reduction <add>, %113, %cst_45 [1] : vector<2x128xf32> to vector<2xf32>
    %115 = vector.shape_cast %114 : vector<2xf32> to vector<2x1xf32>
    %cst_46 = arith.constant 1.280000e+02 : f32
    %116 = vector.broadcast %cst_46 : f32 to vector<2x1xf32>
    %117 = arith.divf %115, %116 : vector<2x1xf32>
    %118 = vector.broadcast %110 : vector<2x1xf32> to vector<2x128xf32>
    %119 = arith.subf %106, %118 : vector<2x128xf32>
    %cst_47 = arith.constant 9.99999974E-6 : f32
    %120 = vector.broadcast %cst_47 : f32 to vector<2x1xf32>
    %121 = arith.addf %117, %120 : vector<2x1xf32>
    %122 = math.rsqrt %121 : vector<2x1xf32>
    %123 = vector.broadcast %122 : vector<2x1xf32> to vector<2x128xf32>
    %124 = arith.mulf %119, %123 : vector<2x128xf32>
    %125 = vector.broadcast %35 : vector<1x128xf32> to vector<2x128xf32>
    %126 = arith.mulf %124, %125 : vector<2x128xf32>
    %127 = vector.broadcast %39 : vector<1x128xf32> to vector<2x128xf32>
    %128 = arith.addf %126, %127 : vector<2x128xf32>
    %129 = vector.extract_strided_slice %59 {offsets = [0, 384], sizes = [2, 128], strides = [1, 1]} : vector<2x512xf32> to vector<2x128xf32>
    %cst_48 = arith.constant dense<0.000000e+00> : vector<2xf32>
    %130 = vector.multi_reduction <add>, %129, %cst_48 [1] : vector<2x128xf32> to vector<2xf32>
    %131 = vector.shape_cast %130 : vector<2xf32> to vector<2x1xf32>
    %cst_49 = arith.constant 1.280000e+02 : f32
    %132 = vector.broadcast %cst_49 : f32 to vector<2x1xf32>
    %133 = arith.divf %131, %132 : vector<2x1xf32>
    %134 = vector.broadcast %133 : vector<2x1xf32> to vector<2x128xf32>
    %135 = arith.subf %129, %134 : vector<2x128xf32>
    %136 = arith.mulf %135, %135 : vector<2x128xf32>
    %cst_50 = arith.constant dense<0.000000e+00> : vector<2xf32>
    %137 = vector.multi_reduction <add>, %136, %cst_50 [1] : vector<2x128xf32> to vector<2xf32>
    %138 = vector.shape_cast %137 : vector<2xf32> to vector<2x1xf32>
    %cst_51 = arith.constant 1.280000e+02 : f32
    %139 = vector.broadcast %cst_51 : f32 to vector<2x1xf32>
    %140 = arith.divf %138, %139 : vector<2x1xf32>
    %141 = vector.broadcast %133 : vector<2x1xf32> to vector<2x128xf32>
    %142 = arith.subf %129, %141 : vector<2x128xf32>
    %cst_52 = arith.constant 9.99999974E-6 : f32
    %143 = vector.broadcast %cst_52 : f32 to vector<2x1xf32>
    %144 = arith.addf %140, %143 : vector<2x1xf32>
    %145 = math.rsqrt %144 : vector<2x1xf32>
    %146 = vector.broadcast %145 : vector<2x1xf32> to vector<2x128xf32>
    %147 = arith.mulf %142, %146 : vector<2x128xf32>
    %148 = vector.broadcast %36 : vector<1x128xf32> to vector<2x128xf32>
    %149 = arith.mulf %147, %148 : vector<2x128xf32>
    %150 = vector.broadcast %40 : vector<1x128xf32> to vector<2x128xf32>
    %151 = arith.addf %149, %150 : vector<2x128xf32>
    %152 = arith.addf %82, %105 : vector<2x128xf32>
    %153 = vector.extract_strided_slice %152 {offsets = [0, 0], sizes = [2, 32], strides = [1, 1]} : vector<2x128xf32> to vector<2x32xf32>
    %154 = arith.negf %153 : vector<2x32xf32>
    %155 = math.exp %154 : vector<2x32xf32>
    %cst_53 = arith.constant 1.000000e+00 : f32
    %156 = vector.broadcast %cst_53 : f32 to vector<2x32xf32>
    %157 = arith.addf %156, %155 : vector<2x32xf32>
    %158 = arith.divf %156, %157 : vector<2x32xf32>
    %159 = vector.extract_strided_slice %152 {offsets = [0, 32], sizes = [2, 32], strides = [1, 1]} : vector<2x128xf32> to vector<2x32xf32>
    %160 = arith.negf %159 : vector<2x32xf32>
    %161 = math.exp %160 : vector<2x32xf32>
    %cst_54 = arith.constant 1.000000e+00 : f32
    %162 = vector.broadcast %cst_54 : f32 to vector<2x32xf32>
    %163 = arith.addf %162, %161 : vector<2x32xf32>
    %164 = arith.divf %162, %163 : vector<2x32xf32>
    %165 = vector.extract_strided_slice %152 {offsets = [0, 64], sizes = [2, 32], strides = [1, 1]} : vector<2x128xf32> to vector<2x32xf32>
    %166 = math.tanh %165 : vector<2x32xf32>
    %167 = vector.extract_strided_slice %152 {offsets = [0, 96], sizes = [2, 32], strides = [1, 1]} : vector<2x128xf32> to vector<2x32xf32>
    %168 = arith.negf %167 : vector<2x32xf32>
    %169 = math.exp %168 : vector<2x32xf32>
    %cst_55 = arith.constant 1.000000e+00 : f32
    %170 = vector.broadcast %cst_55 : f32 to vector<2x32xf32>
    %171 = arith.addf %170, %169 : vector<2x32xf32>
    %172 = arith.divf %170, %171 : vector<2x32xf32>
    %173 = arith.mulf %164, %51 : vector<2x32xf32>
    %174 = arith.mulf %158, %166 : vector<2x32xf32>
    %175 = arith.addf %173, %174 : vector<2x32xf32>
    %cst_56 = arith.constant dense<0.000000e+00> : vector<2xf32>
    %176 = vector.multi_reduction <add>, %175, %cst_56 [1] : vector<2x32xf32> to vector<2xf32>
    %177 = vector.shape_cast %176 : vector<2xf32> to vector<2x1xf32>
    %cst_57 = arith.constant 3.200000e+01 : f32
    %178 = vector.broadcast %cst_57 : f32 to vector<2x1xf32>
    %179 = arith.divf %177, %178 : vector<2x1xf32>
    %180 = vector.broadcast %179 : vector<2x1xf32> to vector<2x32xf32>
    %181 = arith.subf %175, %180 : vector<2x32xf32>
    %182 = arith.mulf %181, %181 : vector<2x32xf32>
    %cst_58 = arith.constant dense<0.000000e+00> : vector<2xf32>
    %183 = vector.multi_reduction <add>, %182, %cst_58 [1] : vector<2x32xf32> to vector<2xf32>
    %184 = vector.shape_cast %183 : vector<2xf32> to vector<2x1xf32>
    %cst_59 = arith.constant 3.200000e+01 : f32
    %185 = vector.broadcast %cst_59 : f32 to vector<2x1xf32>
    %186 = arith.divf %184, %185 : vector<2x1xf32>
    %187 = vector.broadcast %179 : vector<2x1xf32> to vector<2x32xf32>
    %188 = arith.subf %175, %187 : vector<2x32xf32>
    %cst_60 = arith.constant 9.99999974E-6 : f32
    %189 = vector.broadcast %cst_60 : f32 to vector<2x1xf32>
    %190 = arith.addf %186, %189 : vector<2x1xf32>
    %191 = math.rsqrt %190 : vector<2x1xf32>
    %192 = vector.broadcast %191 : vector<2x1xf32> to vector<2x32xf32>
    %193 = arith.mulf %188, %192 : vector<2x32xf32>
    %194 = vector.broadcast %41 : vector<1x32xf32> to vector<2x32xf32>
    %195 = arith.mulf %193, %194 : vector<2x32xf32>
    %196 = vector.broadcast %43 : vector<1x32xf32> to vector<2x32xf32>
    %197 = arith.addf %195, %196 : vector<2x32xf32>
    %198 = math.tanh %197 : vector<2x32xf32>
    %199 = arith.mulf %172, %198 : vector<2x32xf32>
    %200 = arith.addf %128, %151 : vector<2x128xf32>
    %201 = vector.extract_strided_slice %200 {offsets = [0, 0], sizes = [2, 32], strides = [1, 1]} : vector<2x128xf32> to vector<2x32xf32>
    %202 = arith.negf %201 : vector<2x32xf32>
    %203 = math.exp %202 : vector<2x32xf32>
    %cst_61 = arith.constant 1.000000e+00 : f32
    %204 = vector.broadcast %cst_61 : f32 to vector<2x32xf32>
    %205 = arith.addf %204, %203 : vector<2x32xf32>
    %206 = arith.divf %204, %205 : vector<2x32xf32>
    %207 = vector.extract_strided_slice %200 {offsets = [0, 32], sizes = [2, 32], strides = [1, 1]} : vector<2x128xf32> to vector<2x32xf32>
    %208 = arith.negf %207 : vector<2x32xf32>
    %209 = math.exp %208 : vector<2x32xf32>
    %cst_62 = arith.constant 1.000000e+00 : f32
    %210 = vector.broadcast %cst_62 : f32 to vector<2x32xf32>
    %211 = arith.addf %210, %209 : vector<2x32xf32>
    %212 = arith.divf %210, %211 : vector<2x32xf32>
    %213 = vector.extract_strided_slice %200 {offsets = [0, 64], sizes = [2, 32], strides = [1, 1]} : vector<2x128xf32> to vector<2x32xf32>
    %214 = math.tanh %213 : vector<2x32xf32>
    %215 = vector.extract_strided_slice %200 {offsets = [0, 96], sizes = [2, 32], strides = [1, 1]} : vector<2x128xf32> to vector<2x32xf32>
    %216 = arith.negf %215 : vector<2x32xf32>
    %217 = math.exp %216 : vector<2x32xf32>
    %cst_63 = arith.constant 1.000000e+00 : f32
    %218 = vector.broadcast %cst_63 : f32 to vector<2x32xf32>
    %219 = arith.addf %218, %217 : vector<2x32xf32>
    %220 = arith.divf %218, %219 : vector<2x32xf32>
    %221 = arith.mulf %212, %55 : vector<2x32xf32>
    %222 = arith.mulf %206, %214 : vector<2x32xf32>
    %223 = arith.addf %221, %222 : vector<2x32xf32>
    %cst_64 = arith.constant dense<0.000000e+00> : vector<2xf32>
    %224 = vector.multi_reduction <add>, %223, %cst_64 [1] : vector<2x32xf32> to vector<2xf32>
    %225 = vector.shape_cast %224 : vector<2xf32> to vector<2x1xf32>
    %cst_65 = arith.constant 3.200000e+01 : f32
    %226 = vector.broadcast %cst_65 : f32 to vector<2x1xf32>
    %227 = arith.divf %225, %226 : vector<2x1xf32>
    %228 = vector.broadcast %227 : vector<2x1xf32> to vector<2x32xf32>
    %229 = arith.subf %223, %228 : vector<2x32xf32>
    %230 = arith.mulf %229, %229 : vector<2x32xf32>
    %cst_66 = arith.constant dense<0.000000e+00> : vector<2xf32>
    %231 = vector.multi_reduction <add>, %230, %cst_66 [1] : vector<2x32xf32> to vector<2xf32>
    %232 = vector.shape_cast %231 : vector<2xf32> to vector<2x1xf32>
    %cst_67 = arith.constant 3.200000e+01 : f32
    %233 = vector.broadcast %cst_67 : f32 to vector<2x1xf32>
    %234 = arith.divf %232, %233 : vector<2x1xf32>
    %235 = vector.broadcast %227 : vector<2x1xf32> to vector<2x32xf32>
    %236 = arith.subf %223, %235 : vector<2x32xf32>
    %cst_68 = arith.constant 9.99999974E-6 : f32
    %237 = vector.broadcast %cst_68 : f32 to vector<2x1xf32>
    %238 = arith.addf %234, %237 : vector<2x1xf32>
    %239 = math.rsqrt %238 : vector<2x1xf32>
    %240 = vector.broadcast %239 : vector<2x1xf32> to vector<2x32xf32>
    %241 = arith.mulf %236, %240 : vector<2x32xf32>
    %242 = vector.broadcast %42 : vector<1x32xf32> to vector<2x32xf32>
    %243 = arith.mulf %241, %242 : vector<2x32xf32>
    %244 = vector.broadcast %44 : vector<1x32xf32> to vector<2x32xf32>
    %245 = arith.addf %243, %244 : vector<2x32xf32>
    %246 = math.tanh %245 : vector<2x32xf32>
    %247 = arith.mulf %220, %246 : vector<2x32xf32>
    %248 = vector.extract_strided_slice %28 {offsets = [2, 0], sizes = [2, 32], strides = [1, 1]} : vector<16x32xf32> to vector<2x32xf32>
    %249 = vector.extract_strided_slice %28 {offsets = [12, 0], sizes = [2, 32], strides = [1, 1]} : vector<16x32xf32> to vector<2x32xf32>
    %250 = tpu.concatenate %248, %199, %249, %247 in 1 : vector<2x32xf32>, vector<2x32xf32>, vector<2x32xf32>, vector<2x32xf32> -> vector<2x128xf32>
    %cst_69 = arith.constant dense<0.000000e+00> : vector<2x512xf32>
    %251 = tpu.matmul %250, %45, %cst_69 {dimension_numbers = #tpu.dot_dimension_numbers<[1], [0], [0], [1], [0, 0, 1, 1], [], []>} : vector<2x128xf32>, vector<128x512xf32>, vector<2x512xf32> -> vector<2x512xf32>
    %252 = vector.extract_strided_slice %251 {offsets = [0, 0], sizes = [2, 128], strides = [1, 1]} : vector<2x512xf32> to vector<2x128xf32>
    %cst_70 = arith.constant dense<0.000000e+00> : vector<2xf32>
    %253 = vector.multi_reduction <add>, %252, %cst_70 [1] : vector<2x128xf32> to vector<2xf32>
    %254 = vector.shape_cast %253 : vector<2xf32> to vector<2x1xf32>
    %cst_71 = arith.constant 1.280000e+02 : f32
    %255 = vector.broadcast %cst_71 : f32 to vector<2x1xf32>
    %256 = arith.divf %254, %255 : vector<2x1xf32>
    %257 = vector.broadcast %256 : vector<2x1xf32> to vector<2x128xf32>
    %258 = arith.subf %252, %257 : vector<2x128xf32>
    %259 = arith.mulf %258, %258 : vector<2x128xf32>
    %cst_72 = arith.constant dense<0.000000e+00> : vector<2xf32>
    %260 = vector.multi_reduction <add>, %259, %cst_72 [1] : vector<2x128xf32> to vector<2xf32>
    %261 = vector.shape_cast %260 : vector<2xf32> to vector<2x1xf32>
    %cst_73 = arith.constant 1.280000e+02 : f32
    %262 = vector.broadcast %cst_73 : f32 to vector<2x1xf32>
    %263 = arith.divf %261, %262 : vector<2x1xf32>
    %264 = vector.broadcast %256 : vector<2x1xf32> to vector<2x128xf32>
    %265 = arith.subf %252, %264 : vector<2x128xf32>
    %cst_74 = arith.constant 9.99999974E-6 : f32
    %266 = vector.broadcast %cst_74 : f32 to vector<2x1xf32>
    %267 = arith.addf %263, %266 : vector<2x1xf32>
    %268 = math.rsqrt %267 : vector<2x1xf32>
    %269 = vector.broadcast %268 : vector<2x1xf32> to vector<2x128xf32>
    %270 = arith.mulf %265, %269 : vector<2x128xf32>
    %271 = vector.broadcast %33 : vector<1x128xf32> to vector<2x128xf32>
    %272 = arith.mulf %270, %271 : vector<2x128xf32>
    %273 = vector.broadcast %37 : vector<1x128xf32> to vector<2x128xf32>
    %274 = arith.addf %272, %273 : vector<2x128xf32>
    %275 = vector.extract_strided_slice %251 {offsets = [0, 128], sizes = [2, 128], strides = [1, 1]} : vector<2x512xf32> to vector<2x128xf32>
    %cst_75 = arith.constant dense<0.000000e+00> : vector<2xf32>
    %276 = vector.multi_reduction <add>, %275, %cst_75 [1] : vector<2x128xf32> to vector<2xf32>
    %277 = vector.shape_cast %276 : vector<2xf32> to vector<2x1xf32>
    %cst_76 = arith.constant 1.280000e+02 : f32
    %278 = vector.broadcast %cst_76 : f32 to vector<2x1xf32>
    %279 = arith.divf %277, %278 : vector<2x1xf32>
    %280 = vector.broadcast %279 : vector<2x1xf32> to vector<2x128xf32>
    %281 = arith.subf %275, %280 : vector<2x128xf32>
    %282 = arith.mulf %281, %281 : vector<2x128xf32>
    %cst_77 = arith.constant dense<0.000000e+00> : vector<2xf32>
    %283 = vector.multi_reduction <add>, %282, %cst_77 [1] : vector<2x128xf32> to vector<2xf32>
    %284 = vector.shape_cast %283 : vector<2xf32> to vector<2x1xf32>
    %cst_78 = arith.constant 1.280000e+02 : f32
    %285 = vector.broadcast %cst_78 : f32 to vector<2x1xf32>
    %286 = arith.divf %284, %285 : vector<2x1xf32>
    %287 = vector.broadcast %279 : vector<2x1xf32> to vector<2x128xf32>
    %288 = arith.subf %275, %287 : vector<2x128xf32>
    %cst_79 = arith.constant 9.99999974E-6 : f32
    %289 = vector.broadcast %cst_79 : f32 to vector<2x1xf32>
    %290 = arith.addf %286, %289 : vector<2x1xf32>
    %291 = math.rsqrt %290 : vector<2x1xf32>
    %292 = vector.broadcast %291 : vector<2x1xf32> to vector<2x128xf32>
    %293 = arith.mulf %288, %292 : vector<2x128xf32>
    %294 = vector.broadcast %34 : vector<1x128xf32> to vector<2x128xf32>
    %295 = arith.mulf %293, %294 : vector<2x128xf32>
    %296 = vector.broadcast %38 : vector<1x128xf32> to vector<2x128xf32>
    %297 = arith.addf %295, %296 : vector<2x128xf32>
    %298 = vector.extract_strided_slice %251 {offsets = [0, 256], sizes = [2, 128], strides = [1, 1]} : vector<2x512xf32> to vector<2x128xf32>
    %cst_80 = arith.constant dense<0.000000e+00> : vector<2xf32>
    %299 = vector.multi_reduction <add>, %298, %cst_80 [1] : vector<2x128xf32> to vector<2xf32>
    %300 = vector.shape_cast %299 : vector<2xf32> to vector<2x1xf32>
    %cst_81 = arith.constant 1.280000e+02 : f32
    %301 = vector.broadcast %cst_81 : f32 to vector<2x1xf32>
    %302 = arith.divf %300, %301 : vector<2x1xf32>
    %303 = vector.broadcast %302 : vector<2x1xf32> to vector<2x128xf32>
    %304 = arith.subf %298, %303 : vector<2x128xf32>
    %305 = arith.mulf %304, %304 : vector<2x128xf32>
    %cst_82 = arith.constant dense<0.000000e+00> : vector<2xf32>
    %306 = vector.multi_reduction <add>, %305, %cst_82 [1] : vector<2x128xf32> to vector<2xf32>
    %307 = vector.shape_cast %306 : vector<2xf32> to vector<2x1xf32>
    %cst_83 = arith.constant 1.280000e+02 : f32
    %308 = vector.broadcast %cst_83 : f32 to vector<2x1xf32>
    %309 = arith.divf %307, %308 : vector<2x1xf32>
    %310 = vector.broadcast %302 : vector<2x1xf32> to vector<2x128xf32>
    %311 = arith.subf %298, %310 : vector<2x128xf32>
    %cst_84 = arith.constant 9.99999974E-6 : f32
    %312 = vector.broadcast %cst_84 : f32 to vector<2x1xf32>
    %313 = arith.addf %309, %312 : vector<2x1xf32>
    %314 = math.rsqrt %313 : vector<2x1xf32>
    %315 = vector.broadcast %314 : vector<2x1xf32> to vector<2x128xf32>
    %316 = arith.mulf %311, %315 : vector<2x128xf32>
    %317 = vector.broadcast %35 : vector<1x128xf32> to vector<2x128xf32>
    %318 = arith.mulf %316, %317 : vector<2x128xf32>
    %319 = vector.broadcast %39 : vector<1x128xf32> to vector<2x128xf32>
    %320 = arith.addf %318, %319 : vector<2x128xf32>
    %321 = vector.extract_strided_slice %251 {offsets = [0, 384], sizes = [2, 128], strides = [1, 1]} : vector<2x512xf32> to vector<2x128xf32>
    %cst_85 = arith.constant dense<0.000000e+00> : vector<2xf32>
    %322 = vector.multi_reduction <add>, %321, %cst_85 [1] : vector<2x128xf32> to vector<2xf32>
    %323 = vector.shape_cast %322 : vector<2xf32> to vector<2x1xf32>
    %cst_86 = arith.constant 1.280000e+02 : f32
    %324 = vector.broadcast %cst_86 : f32 to vector<2x1xf32>
    %325 = arith.divf %323, %324 : vector<2x1xf32>
    %326 = vector.broadcast %325 : vector<2x1xf32> to vector<2x128xf32>
    %327 = arith.subf %321, %326 : vector<2x128xf32>
    %328 = arith.mulf %327, %327 : vector<2x128xf32>
    %cst_87 = arith.constant dense<0.000000e+00> : vector<2xf32>
    %329 = vector.multi_reduction <add>, %328, %cst_87 [1] : vector<2x128xf32> to vector<2xf32>
    %330 = vector.shape_cast %329 : vector<2xf32> to vector<2x1xf32>
    %cst_88 = arith.constant 1.280000e+02 : f32
    %331 = vector.broadcast %cst_88 : f32 to vector<2x1xf32>
    %332 = arith.divf %330, %331 : vector<2x1xf32>
    %333 = vector.broadcast %325 : vector<2x1xf32> to vector<2x128xf32>
    %334 = arith.subf %321, %333 : vector<2x128xf32>
    %cst_89 = arith.constant 9.99999974E-6 : f32
    %335 = vector.broadcast %cst_89 : f32 to vector<2x1xf32>
    %336 = arith.addf %332, %335 : vector<2x1xf32>
    %337 = math.rsqrt %336 : vector<2x1xf32>
    %338 = vector.broadcast %337 : vector<2x1xf32> to vector<2x128xf32>
    %339 = arith.mulf %334, %338 : vector<2x128xf32>
    %340 = vector.broadcast %36 : vector<1x128xf32> to vector<2x128xf32>
    %341 = arith.mulf %339, %340 : vector<2x128xf32>
    %342 = vector.broadcast %40 : vector<1x128xf32> to vector<2x128xf32>
    %343 = arith.addf %341, %342 : vector<2x128xf32>
    %344 = arith.addf %274, %297 : vector<2x128xf32>
    %345 = vector.extract_strided_slice %344 {offsets = [0, 0], sizes = [2, 32], strides = [1, 1]} : vector<2x128xf32> to vector<2x32xf32>
    %346 = arith.negf %345 : vector<2x32xf32>
    %347 = math.exp %346 : vector<2x32xf32>
    %cst_90 = arith.constant 1.000000e+00 : f32
    %348 = vector.broadcast %cst_90 : f32 to vector<2x32xf32>
    %349 = arith.addf %348, %347 : vector<2x32xf32>
    %350 = arith.divf %348, %349 : vector<2x32xf32>
    %351 = vector.extract_strided_slice %344 {offsets = [0, 32], sizes = [2, 32], strides = [1, 1]} : vector<2x128xf32> to vector<2x32xf32>
    %352 = arith.negf %351 : vector<2x32xf32>
    %353 = math.exp %352 : vector<2x32xf32>
    %cst_91 = arith.constant 1.000000e+00 : f32
    %354 = vector.broadcast %cst_91 : f32 to vector<2x32xf32>
    %355 = arith.addf %354, %353 : vector<2x32xf32>
    %356 = arith.divf %354, %355 : vector<2x32xf32>
    %357 = vector.extract_strided_slice %344 {offsets = [0, 64], sizes = [2, 32], strides = [1, 1]} : vector<2x128xf32> to vector<2x32xf32>
    %358 = math.tanh %357 : vector<2x32xf32>
    %359 = vector.extract_strided_slice %344 {offsets = [0, 96], sizes = [2, 32], strides = [1, 1]} : vector<2x128xf32> to vector<2x32xf32>
    %360 = arith.negf %359 : vector<2x32xf32>
    %361 = math.exp %360 : vector<2x32xf32>
    %cst_92 = arith.constant 1.000000e+00 : f32
    %362 = vector.broadcast %cst_92 : f32 to vector<2x32xf32>
    %363 = arith.addf %362, %361 : vector<2x32xf32>
    %364 = arith.divf %362, %363 : vector<2x32xf32>
    %365 = arith.mulf %356, %197 : vector<2x32xf32>
    %366 = arith.mulf %350, %358 : vector<2x32xf32>
    %367 = arith.addf %365, %366 : vector<2x32xf32>
    %cst_93 = arith.constant dense<0.000000e+00> : vector<2xf32>
    %368 = vector.multi_reduction <add>, %367, %cst_93 [1] : vector<2x32xf32> to vector<2xf32>
    %369 = vector.shape_cast %368 : vector<2xf32> to vector<2x1xf32>
    %cst_94 = arith.constant 3.200000e+01 : f32
    %370 = vector.broadcast %cst_94 : f32 to vector<2x1xf32>
    %371 = arith.divf %369, %370 : vector<2x1xf32>
    %372 = vector.broadcast %371 : vector<2x1xf32> to vector<2x32xf32>
    %373 = arith.subf %367, %372 : vector<2x32xf32>
    %374 = arith.mulf %373, %373 : vector<2x32xf32>
    %cst_95 = arith.constant dense<0.000000e+00> : vector<2xf32>
    %375 = vector.multi_reduction <add>, %374, %cst_95 [1] : vector<2x32xf32> to vector<2xf32>
    %376 = vector.shape_cast %375 : vector<2xf32> to vector<2x1xf32>
    %cst_96 = arith.constant 3.200000e+01 : f32
    %377 = vector.broadcast %cst_96 : f32 to vector<2x1xf32>
    %378 = arith.divf %376, %377 : vector<2x1xf32>
    %379 = vector.broadcast %371 : vector<2x1xf32> to vector<2x32xf32>
    %380 = arith.subf %367, %379 : vector<2x32xf32>
    %cst_97 = arith.constant 9.99999974E-6 : f32
    %381 = vector.broadcast %cst_97 : f32 to vector<2x1xf32>
    %382 = arith.addf %378, %381 : vector<2x1xf32>
    %383 = math.rsqrt %382 : vector<2x1xf32>
    %384 = vector.broadcast %383 : vector<2x1xf32> to vector<2x32xf32>
    %385 = arith.mulf %380, %384 : vector<2x32xf32>
    %386 = vector.broadcast %41 : vector<1x32xf32> to vector<2x32xf32>
    %387 = arith.mulf %385, %386 : vector<2x32xf32>
    %388 = vector.broadcast %43 : vector<1x32xf32> to vector<2x32xf32>
    %389 = arith.addf %387, %388 : vector<2x32xf32>
    %390 = math.tanh %389 : vector<2x32xf32>
    %391 = arith.mulf %364, %390 : vector<2x32xf32>
    %392 = arith.addf %320, %343 : vector<2x128xf32>
    %393 = vector.extract_strided_slice %392 {offsets = [0, 0], sizes = [2, 32], strides = [1, 1]} : vector<2x128xf32> to vector<2x32xf32>
    %394 = arith.negf %393 : vector<2x32xf32>
    %395 = math.exp %394 : vector<2x32xf32>
    %cst_98 = arith.constant 1.000000e+00 : f32
    %396 = vector.broadcast %cst_98 : f32 to vector<2x32xf32>
    %397 = arith.addf %396, %395 : vector<2x32xf32>
    %398 = arith.divf %396, %397 : vector<2x32xf32>
    %399 = vector.extract_strided_slice %392 {offsets = [0, 32], sizes = [2, 32], strides = [1, 1]} : vector<2x128xf32> to vector<2x32xf32>
    %400 = arith.negf %399 : vector<2x32xf32>
    %401 = math.exp %400 : vector<2x32xf32>
    %cst_99 = arith.constant 1.000000e+00 : f32
    %402 = vector.broadcast %cst_99 : f32 to vector<2x32xf32>
    %403 = arith.addf %402, %401 : vector<2x32xf32>
    %404 = arith.divf %402, %403 : vector<2x32xf32>
    %405 = vector.extract_strided_slice %392 {offsets = [0, 64], sizes = [2, 32], strides = [1, 1]} : vector<2x128xf32> to vector<2x32xf32>
    %406 = math.tanh %405 : vector<2x32xf32>
    %407 = vector.extract_strided_slice %392 {offsets = [0, 96], sizes = [2, 32], strides = [1, 1]} : vector<2x128xf32> to vector<2x32xf32>
    %408 = arith.negf %407 : vector<2x32xf32>
    %409 = math.exp %408 : vector<2x32xf32>
    %cst_100 = arith.constant 1.000000e+00 : f32
    %410 = vector.broadcast %cst_100 : f32 to vector<2x32xf32>
    %411 = arith.addf %410, %409 : vector<2x32xf32>
    %412 = arith.divf %410, %411 : vector<2x32xf32>
    %413 = arith.mulf %404, %245 : vector<2x32xf32>
    %414 = arith.mulf %398, %406 : vector<2x32xf32>
    %415 = arith.addf %413, %414 : vector<2x32xf32>
    %cst_101 = arith.constant dense<0.000000e+00> : vector<2xf32>
    %416 = vector.multi_reduction <add>, %415, %cst_101 [1] : vector<2x32xf32> to vector<2xf32>
    %417 = vector.shape_cast %416 : vector<2xf32> to vector<2x1xf32>
    %cst_102 = arith.constant 3.200000e+01 : f32
    %418 = vector.broadcast %cst_102 : f32 to vector<2x1xf32>
    %419 = arith.divf %417, %418 : vector<2x1xf32>
    %420 = vector.broadcast %419 : vector<2x1xf32> to vector<2x32xf32>
    %421 = arith.subf %415, %420 : vector<2x32xf32>
    %422 = arith.mulf %421, %421 : vector<2x32xf32>
    %cst_103 = arith.constant dense<0.000000e+00> : vector<2xf32>
    %423 = vector.multi_reduction <add>, %422, %cst_103 [1] : vector<2x32xf32> to vector<2xf32>
    %424 = vector.shape_cast %423 : vector<2xf32> to vector<2x1xf32>
    %cst_104 = arith.constant 3.200000e+01 : f32
    %425 = vector.broadcast %cst_104 : f32 to vector<2x1xf32>
    %426 = arith.divf %424, %425 : vector<2x1xf32>
    %427 = vector.broadcast %419 : vector<2x1xf32> to vector<2x32xf32>
    %428 = arith.subf %415, %427 : vector<2x32xf32>
    %cst_105 = arith.constant 9.99999974E-6 : f32
    %429 = vector.broadcast %cst_105 : f32 to vector<2x1xf32>
    %430 = arith.addf %426, %429 : vector<2x1xf32>
    %431 = math.rsqrt %430 : vector<2x1xf32>
    %432 = vector.broadcast %431 : vector<2x1xf32> to vector<2x32xf32>
    %433 = arith.mulf %428, %432 : vector<2x32xf32>
    %434 = vector.broadcast %42 : vector<1x32xf32> to vector<2x32xf32>
    %435 = arith.mulf %433, %434 : vector<2x32xf32>
    %436 = vector.broadcast %44 : vector<1x32xf32> to vector<2x32xf32>
    %437 = arith.addf %435, %436 : vector<2x32xf32>
    %438 = math.tanh %437 : vector<2x32xf32>
    %439 = arith.mulf %412, %438 : vector<2x32xf32>
    %440 = vector.extract_strided_slice %28 {offsets = [4, 0], sizes = [2, 32], strides = [1, 1]} : vector<16x32xf32> to vector<2x32xf32>
    %441 = vector.extract_strided_slice %28 {offsets = [10, 0], sizes = [2, 32], strides = [1, 1]} : vector<16x32xf32> to vector<2x32xf32>
    %442 = tpu.concatenate %440, %391, %441, %439 in 1 : vector<2x32xf32>, vector<2x32xf32>, vector<2x32xf32>, vector<2x32xf32> -> vector<2x128xf32>
    %cst_106 = arith.constant dense<0.000000e+00> : vector<2x512xf32>
    %443 = tpu.matmul %442, %45, %cst_106 {dimension_numbers = #tpu.dot_dimension_numbers<[1], [0], [0], [1], [0, 0, 1, 1], [], []>} : vector<2x128xf32>, vector<128x512xf32>, vector<2x512xf32> -> vector<2x512xf32>
    %444 = vector.extract_strided_slice %443 {offsets = [0, 0], sizes = [2, 128], strides = [1, 1]} : vector<2x512xf32> to vector<2x128xf32>
    %cst_107 = arith.constant dense<0.000000e+00> : vector<2xf32>
    %445 = vector.multi_reduction <add>, %444, %cst_107 [1] : vector<2x128xf32> to vector<2xf32>
    %446 = vector.shape_cast %445 : vector<2xf32> to vector<2x1xf32>
    %cst_108 = arith.constant 1.280000e+02 : f32
    %447 = vector.broadcast %cst_108 : f32 to vector<2x1xf32>
    %448 = arith.divf %446, %447 : vector<2x1xf32>
    %449 = vector.broadcast %448 : vector<2x1xf32> to vector<2x128xf32>
    %450 = arith.subf %444, %449 : vector<2x128xf32>
    %451 = arith.mulf %450, %450 : vector<2x128xf32>
    %cst_109 = arith.constant dense<0.000000e+00> : vector<2xf32>
    %452 = vector.multi_reduction <add>, %451, %cst_109 [1] : vector<2x128xf32> to vector<2xf32>
    %453 = vector.shape_cast %452 : vector<2xf32> to vector<2x1xf32>
    %cst_110 = arith.constant 1.280000e+02 : f32
    %454 = vector.broadcast %cst_110 : f32 to vector<2x1xf32>
    %455 = arith.divf %453, %454 : vector<2x1xf32>
    %456 = vector.broadcast %448 : vector<2x1xf32> to vector<2x128xf32>
    %457 = arith.subf %444, %456 : vector<2x128xf32>
    %cst_111 = arith.constant 9.99999974E-6 : f32
    %458 = vector.broadcast %cst_111 : f32 to vector<2x1xf32>
    %459 = arith.addf %455, %458 : vector<2x1xf32>
    %460 = math.rsqrt %459 : vector<2x1xf32>
    %461 = vector.broadcast %460 : vector<2x1xf32> to vector<2x128xf32>
    %462 = arith.mulf %457, %461 : vector<2x128xf32>
    %463 = vector.broadcast %33 : vector<1x128xf32> to vector<2x128xf32>
    %464 = arith.mulf %462, %463 : vector<2x128xf32>
    %465 = vector.broadcast %37 : vector<1x128xf32> to vector<2x128xf32>
    %466 = arith.addf %464, %465 : vector<2x128xf32>
    %467 = vector.extract_strided_slice %443 {offsets = [0, 128], sizes = [2, 128], strides = [1, 1]} : vector<2x512xf32> to vector<2x128xf32>
    %cst_112 = arith.constant dense<0.000000e+00> : vector<2xf32>
    %468 = vector.multi_reduction <add>, %467, %cst_112 [1] : vector<2x128xf32> to vector<2xf32>
    %469 = vector.shape_cast %468 : vector<2xf32> to vector<2x1xf32>
    %cst_113 = arith.constant 1.280000e+02 : f32
    %470 = vector.broadcast %cst_113 : f32 to vector<2x1xf32>
    %471 = arith.divf %469, %470 : vector<2x1xf32>
    %472 = vector.broadcast %471 : vector<2x1xf32> to vector<2x128xf32>
    %473 = arith.subf %467, %472 : vector<2x128xf32>
    %474 = arith.mulf %473, %473 : vector<2x128xf32>
    %cst_114 = arith.constant dense<0.000000e+00> : vector<2xf32>
    %475 = vector.multi_reduction <add>, %474, %cst_114 [1] : vector<2x128xf32> to vector<2xf32>
    %476 = vector.shape_cast %475 : vector<2xf32> to vector<2x1xf32>
    %cst_115 = arith.constant 1.280000e+02 : f32
    %477 = vector.broadcast %cst_115 : f32 to vector<2x1xf32>
    %478 = arith.divf %476, %477 : vector<2x1xf32>
    %479 = vector.broadcast %471 : vector<2x1xf32> to vector<2x128xf32>
    %480 = arith.subf %467, %479 : vector<2x128xf32>
    %cst_116 = arith.constant 9.99999974E-6 : f32
    %481 = vector.broadcast %cst_116 : f32 to vector<2x1xf32>
    %482 = arith.addf %478, %481 : vector<2x1xf32>
    %483 = math.rsqrt %482 : vector<2x1xf32>
    %484 = vector.broadcast %483 : vector<2x1xf32> to vector<2x128xf32>
    %485 = arith.mulf %480, %484 : vector<2x128xf32>
    %486 = vector.broadcast %34 : vector<1x128xf32> to vector<2x128xf32>
    %487 = arith.mulf %485, %486 : vector<2x128xf32>
    %488 = vector.broadcast %38 : vector<1x128xf32> to vector<2x128xf32>
    %489 = arith.addf %487, %488 : vector<2x128xf32>
    %490 = vector.extract_strided_slice %443 {offsets = [0, 256], sizes = [2, 128], strides = [1, 1]} : vector<2x512xf32> to vector<2x128xf32>
    %cst_117 = arith.constant dense<0.000000e+00> : vector<2xf32>
    %491 = vector.multi_reduction <add>, %490, %cst_117 [1] : vector<2x128xf32> to vector<2xf32>
    %492 = vector.shape_cast %491 : vector<2xf32> to vector<2x1xf32>
    %cst_118 = arith.constant 1.280000e+02 : f32
    %493 = vector.broadcast %cst_118 : f32 to vector<2x1xf32>
    %494 = arith.divf %492, %493 : vector<2x1xf32>
    %495 = vector.broadcast %494 : vector<2x1xf32> to vector<2x128xf32>
    %496 = arith.subf %490, %495 : vector<2x128xf32>
    %497 = arith.mulf %496, %496 : vector<2x128xf32>
    %cst_119 = arith.constant dense<0.000000e+00> : vector<2xf32>
    %498 = vector.multi_reduction <add>, %497, %cst_119 [1] : vector<2x128xf32> to vector<2xf32>
    %499 = vector.shape_cast %498 : vector<2xf32> to vector<2x1xf32>
    %cst_120 = arith.constant 1.280000e+02 : f32
    %500 = vector.broadcast %cst_120 : f32 to vector<2x1xf32>
    %501 = arith.divf %499, %500 : vector<2x1xf32>
    %502 = vector.broadcast %494 : vector<2x1xf32> to vector<2x128xf32>
    %503 = arith.subf %490, %502 : vector<2x128xf32>
    %cst_121 = arith.constant 9.99999974E-6 : f32
    %504 = vector.broadcast %cst_121 : f32 to vector<2x1xf32>
    %505 = arith.addf %501, %504 : vector<2x1xf32>
    %506 = math.rsqrt %505 : vector<2x1xf32>
    %507 = vector.broadcast %506 : vector<2x1xf32> to vector<2x128xf32>
    %508 = arith.mulf %503, %507 : vector<2x128xf32>
    %509 = vector.broadcast %35 : vector<1x128xf32> to vector<2x128xf32>
    %510 = arith.mulf %508, %509 : vector<2x128xf32>
    %511 = vector.broadcast %39 : vector<1x128xf32> to vector<2x128xf32>
    %512 = arith.addf %510, %511 : vector<2x128xf32>
    %513 = vector.extract_strided_slice %443 {offsets = [0, 384], sizes = [2, 128], strides = [1, 1]} : vector<2x512xf32> to vector<2x128xf32>
    %cst_122 = arith.constant dense<0.000000e+00> : vector<2xf32>
    %514 = vector.multi_reduction <add>, %513, %cst_122 [1] : vector<2x128xf32> to vector<2xf32>
    %515 = vector.shape_cast %514 : vector<2xf32> to vector<2x1xf32>
    %cst_123 = arith.constant 1.280000e+02 : f32
    %516 = vector.broadcast %cst_123 : f32 to vector<2x1xf32>
    %517 = arith.divf %515, %516 : vector<2x1xf32>
    %518 = vector.broadcast %517 : vector<2x1xf32> to vector<2x128xf32>
    %519 = arith.subf %513, %518 : vector<2x128xf32>
    %520 = arith.mulf %519, %519 : vector<2x128xf32>
    %cst_124 = arith.constant dense<0.000000e+00> : vector<2xf32>
    %521 = vector.multi_reduction <add>, %520, %cst_124 [1] : vector<2x128xf32> to vector<2xf32>
    %522 = vector.shape_cast %521 : vector<2xf32> to vector<2x1xf32>
    %cst_125 = arith.constant 1.280000e+02 : f32
    %523 = vector.broadcast %cst_125 : f32 to vector<2x1xf32>
    %524 = arith.divf %522, %523 : vector<2x1xf32>
    %525 = vector.broadcast %517 : vector<2x1xf32> to vector<2x128xf32>
    %526 = arith.subf %513, %525 : vector<2x128xf32>
    %cst_126 = arith.constant 9.99999974E-6 : f32
    %527 = vector.broadcast %cst_126 : f32 to vector<2x1xf32>
    %528 = arith.addf %524, %527 : vector<2x1xf32>
    %529 = math.rsqrt %528 : vector<2x1xf32>
    %530 = vector.broadcast %529 : vector<2x1xf32> to vector<2x128xf32>
    %531 = arith.mulf %526, %530 : vector<2x128xf32>
    %532 = vector.broadcast %36 : vector<1x128xf32> to vector<2x128xf32>
    %533 = arith.mulf %531, %532 : vector<2x128xf32>
    %534 = vector.broadcast %40 : vector<1x128xf32> to vector<2x128xf32>
    %535 = arith.addf %533, %534 : vector<2x128xf32>
    %536 = arith.addf %466, %489 : vector<2x128xf32>
    %537 = vector.extract_strided_slice %536 {offsets = [0, 0], sizes = [2, 32], strides = [1, 1]} : vector<2x128xf32> to vector<2x32xf32>
    %538 = arith.negf %537 : vector<2x32xf32>
    %539 = math.exp %538 : vector<2x32xf32>
    %cst_127 = arith.constant 1.000000e+00 : f32
    %540 = vector.broadcast %cst_127 : f32 to vector<2x32xf32>
    %541 = arith.addf %540, %539 : vector<2x32xf32>
    %542 = arith.divf %540, %541 : vector<2x32xf32>
    %543 = vector.extract_strided_slice %536 {offsets = [0, 32], sizes = [2, 32], strides = [1, 1]} : vector<2x128xf32> to vector<2x32xf32>
    %544 = arith.negf %543 : vector<2x32xf32>
    %545 = math.exp %544 : vector<2x32xf32>
    %cst_128 = arith.constant 1.000000e+00 : f32
    %546 = vector.broadcast %cst_128 : f32 to vector<2x32xf32>
    %547 = arith.addf %546, %545 : vector<2x32xf32>
    %548 = arith.divf %546, %547 : vector<2x32xf32>
    %549 = vector.extract_strided_slice %536 {offsets = [0, 64], sizes = [2, 32], strides = [1, 1]} : vector<2x128xf32> to vector<2x32xf32>
    %550 = math.tanh %549 : vector<2x32xf32>
    %551 = vector.extract_strided_slice %536 {offsets = [0, 96], sizes = [2, 32], strides = [1, 1]} : vector<2x128xf32> to vector<2x32xf32>
    %552 = arith.negf %551 : vector<2x32xf32>
    %553 = math.exp %552 : vector<2x32xf32>
    %cst_129 = arith.constant 1.000000e+00 : f32
    %554 = vector.broadcast %cst_129 : f32 to vector<2x32xf32>
    %555 = arith.addf %554, %553 : vector<2x32xf32>
    %556 = arith.divf %554, %555 : vector<2x32xf32>
    %557 = arith.mulf %548, %389 : vector<2x32xf32>
    %558 = arith.mulf %542, %550 : vector<2x32xf32>
    %559 = arith.addf %557, %558 : vector<2x32xf32>
    %cst_130 = arith.constant dense<0.000000e+00> : vector<2xf32>
    %560 = vector.multi_reduction <add>, %559, %cst_130 [1] : vector<2x32xf32> to vector<2xf32>
    %561 = vector.shape_cast %560 : vector<2xf32> to vector<2x1xf32>
    %cst_131 = arith.constant 3.200000e+01 : f32
    %562 = vector.broadcast %cst_131 : f32 to vector<2x1xf32>
    %563 = arith.divf %561, %562 : vector<2x1xf32>
    %564 = vector.broadcast %563 : vector<2x1xf32> to vector<2x32xf32>
    %565 = arith.subf %559, %564 : vector<2x32xf32>
    %566 = arith.mulf %565, %565 : vector<2x32xf32>
    %cst_132 = arith.constant dense<0.000000e+00> : vector<2xf32>
    %567 = vector.multi_reduction <add>, %566, %cst_132 [1] : vector<2x32xf32> to vector<2xf32>
    %568 = vector.shape_cast %567 : vector<2xf32> to vector<2x1xf32>
    %cst_133 = arith.constant 3.200000e+01 : f32
    %569 = vector.broadcast %cst_133 : f32 to vector<2x1xf32>
    %570 = arith.divf %568, %569 : vector<2x1xf32>
    %571 = vector.broadcast %563 : vector<2x1xf32> to vector<2x32xf32>
    %572 = arith.subf %559, %571 : vector<2x32xf32>
    %cst_134 = arith.constant 9.99999974E-6 : f32
    %573 = vector.broadcast %cst_134 : f32 to vector<2x1xf32>
    %574 = arith.addf %570, %573 : vector<2x1xf32>
    %575 = math.rsqrt %574 : vector<2x1xf32>
    %576 = vector.broadcast %575 : vector<2x1xf32> to vector<2x32xf32>
    %577 = arith.mulf %572, %576 : vector<2x32xf32>
    %578 = vector.broadcast %41 : vector<1x32xf32> to vector<2x32xf32>
    %579 = arith.mulf %577, %578 : vector<2x32xf32>
    %580 = vector.broadcast %43 : vector<1x32xf32> to vector<2x32xf32>
    %581 = arith.addf %579, %580 : vector<2x32xf32>
    %582 = math.tanh %581 : vector<2x32xf32>
    %583 = arith.mulf %556, %582 : vector<2x32xf32>
    %584 = arith.addf %512, %535 : vector<2x128xf32>
    %585 = vector.extract_strided_slice %584 {offsets = [0, 0], sizes = [2, 32], strides = [1, 1]} : vector<2x128xf32> to vector<2x32xf32>
    %586 = arith.negf %585 : vector<2x32xf32>
    %587 = math.exp %586 : vector<2x32xf32>
    %cst_135 = arith.constant 1.000000e+00 : f32
    %588 = vector.broadcast %cst_135 : f32 to vector<2x32xf32>
    %589 = arith.addf %588, %587 : vector<2x32xf32>
    %590 = arith.divf %588, %589 : vector<2x32xf32>
    %591 = vector.extract_strided_slice %584 {offsets = [0, 32], sizes = [2, 32], strides = [1, 1]} : vector<2x128xf32> to vector<2x32xf32>
    %592 = arith.negf %591 : vector<2x32xf32>
    %593 = math.exp %592 : vector<2x32xf32>
    %cst_136 = arith.constant 1.000000e+00 : f32
    %594 = vector.broadcast %cst_136 : f32 to vector<2x32xf32>
    %595 = arith.addf %594, %593 : vector<2x32xf32>
    %596 = arith.divf %594, %595 : vector<2x32xf32>
    %597 = vector.extract_strided_slice %584 {offsets = [0, 64], sizes = [2, 32], strides = [1, 1]} : vector<2x128xf32> to vector<2x32xf32>
    %598 = math.tanh %597 : vector<2x32xf32>
    %599 = vector.extract_strided_slice %584 {offsets = [0, 96], sizes = [2, 32], strides = [1, 1]} : vector<2x128xf32> to vector<2x32xf32>
    %600 = arith.negf %599 : vector<2x32xf32>
    %601 = math.exp %600 : vector<2x32xf32>
    %cst_137 = arith.constant 1.000000e+00 : f32
    %602 = vector.broadcast %cst_137 : f32 to vector<2x32xf32>
    %603 = arith.addf %602, %601 : vector<2x32xf32>
    %604 = arith.divf %602, %603 : vector<2x32xf32>
    %605 = arith.mulf %596, %437 : vector<2x32xf32>
    %606 = arith.mulf %590, %598 : vector<2x32xf32>
    %607 = arith.addf %605, %606 : vector<2x32xf32>
    %cst_138 = arith.constant dense<0.000000e+00> : vector<2xf32>
    %608 = vector.multi_reduction <add>, %607, %cst_138 [1] : vector<2x32xf32> to vector<2xf32>
    %609 = vector.shape_cast %608 : vector<2xf32> to vector<2x1xf32>
    %cst_139 = arith.constant 3.200000e+01 : f32
    %610 = vector.broadcast %cst_139 : f32 to vector<2x1xf32>
    %611 = arith.divf %609, %610 : vector<2x1xf32>
    %612 = vector.broadcast %611 : vector<2x1xf32> to vector<2x32xf32>
    %613 = arith.subf %607, %612 : vector<2x32xf32>
    %614 = arith.mulf %613, %613 : vector<2x32xf32>
    %cst_140 = arith.constant dense<0.000000e+00> : vector<2xf32>
    %615 = vector.multi_reduction <add>, %614, %cst_140 [1] : vector<2x32xf32> to vector<2xf32>
    %616 = vector.shape_cast %615 : vector<2xf32> to vector<2x1xf32>
    %cst_141 = arith.constant 3.200000e+01 : f32
    %617 = vector.broadcast %cst_141 : f32 to vector<2x1xf32>
    %618 = arith.divf %616, %617 : vector<2x1xf32>
    %619 = vector.broadcast %611 : vector<2x1xf32> to vector<2x32xf32>
    %620 = arith.subf %607, %619 : vector<2x32xf32>
    %cst_142 = arith.constant 9.99999974E-6 : f32
    %621 = vector.broadcast %cst_142 : f32 to vector<2x1xf32>
    %622 = arith.addf %618, %621 : vector<2x1xf32>
    %623 = math.rsqrt %622 : vector<2x1xf32>
    %624 = vector.broadcast %623 : vector<2x1xf32> to vector<2x32xf32>
    %625 = arith.mulf %620, %624 : vector<2x32xf32>
    %626 = vector.broadcast %42 : vector<1x32xf32> to vector<2x32xf32>
    %627 = arith.mulf %625, %626 : vector<2x32xf32>
    %628 = vector.broadcast %44 : vector<1x32xf32> to vector<2x32xf32>
    %629 = arith.addf %627, %628 : vector<2x32xf32>
    %630 = math.tanh %629 : vector<2x32xf32>
    %631 = arith.mulf %604, %630 : vector<2x32xf32>
    %632 = vector.extract_strided_slice %28 {offsets = [6, 0], sizes = [2, 32], strides = [1, 1]} : vector<16x32xf32> to vector<2x32xf32>
    %633 = vector.extract_strided_slice %28 {offsets = [8, 0], sizes = [2, 32], strides = [1, 1]} : vector<16x32xf32> to vector<2x32xf32>
    %634 = tpu.concatenate %632, %583, %633, %631 in 1 : vector<2x32xf32>, vector<2x32xf32>, vector<2x32xf32>, vector<2x32xf32> -> vector<2x128xf32>
    %cst_143 = arith.constant dense<0.000000e+00> : vector<2x512xf32>
    %635 = tpu.matmul %634, %45, %cst_143 {dimension_numbers = #tpu.dot_dimension_numbers<[1], [0], [0], [1], [0, 0, 1, 1], [], []>} : vector<2x128xf32>, vector<128x512xf32>, vector<2x512xf32> -> vector<2x512xf32>
    %636 = vector.extract_strided_slice %635 {offsets = [0, 0], sizes = [2, 128], strides = [1, 1]} : vector<2x512xf32> to vector<2x128xf32>
    %cst_144 = arith.constant dense<0.000000e+00> : vector<2xf32>
    %637 = vector.multi_reduction <add>, %636, %cst_144 [1] : vector<2x128xf32> to vector<2xf32>
    %638 = vector.shape_cast %637 : vector<2xf32> to vector<2x1xf32>
    %cst_145 = arith.constant 1.280000e+02 : f32
    %639 = vector.broadcast %cst_145 : f32 to vector<2x1xf32>
    %640 = arith.divf %638, %639 : vector<2x1xf32>
    %641 = vector.broadcast %640 : vector<2x1xf32> to vector<2x128xf32>
    %642 = arith.subf %636, %641 : vector<2x128xf32>
    %643 = arith.mulf %642, %642 : vector<2x128xf32>
    %cst_146 = arith.constant dense<0.000000e+00> : vector<2xf32>
    %644 = vector.multi_reduction <add>, %643, %cst_146 [1] : vector<2x128xf32> to vector<2xf32>
    %645 = vector.shape_cast %644 : vector<2xf32> to vector<2x1xf32>
    %cst_147 = arith.constant 1.280000e+02 : f32
    %646 = vector.broadcast %cst_147 : f32 to vector<2x1xf32>
    %647 = arith.divf %645, %646 : vector<2x1xf32>
    %648 = vector.broadcast %640 : vector<2x1xf32> to vector<2x128xf32>
    %649 = arith.subf %636, %648 : vector<2x128xf32>
    %cst_148 = arith.constant 9.99999974E-6 : f32
    %650 = vector.broadcast %cst_148 : f32 to vector<2x1xf32>
    %651 = arith.addf %647, %650 : vector<2x1xf32>
    %652 = math.rsqrt %651 : vector<2x1xf32>
    %653 = vector.broadcast %652 : vector<2x1xf32> to vector<2x128xf32>
    %654 = arith.mulf %649, %653 : vector<2x128xf32>
    %655 = vector.broadcast %33 : vector<1x128xf32> to vector<2x128xf32>
    %656 = arith.mulf %654, %655 : vector<2x128xf32>
    %657 = vector.broadcast %37 : vector<1x128xf32> to vector<2x128xf32>
    %658 = arith.addf %656, %657 : vector<2x128xf32>
    %659 = vector.extract_strided_slice %635 {offsets = [0, 128], sizes = [2, 128], strides = [1, 1]} : vector<2x512xf32> to vector<2x128xf32>
    %cst_149 = arith.constant dense<0.000000e+00> : vector<2xf32>
    %660 = vector.multi_reduction <add>, %659, %cst_149 [1] : vector<2x128xf32> to vector<2xf32>
    %661 = vector.shape_cast %660 : vector<2xf32> to vector<2x1xf32>
    %cst_150 = arith.constant 1.280000e+02 : f32
    %662 = vector.broadcast %cst_150 : f32 to vector<2x1xf32>
    %663 = arith.divf %661, %662 : vector<2x1xf32>
    %664 = vector.broadcast %663 : vector<2x1xf32> to vector<2x128xf32>
    %665 = arith.subf %659, %664 : vector<2x128xf32>
    %666 = arith.mulf %665, %665 : vector<2x128xf32>
    %cst_151 = arith.constant dense<0.000000e+00> : vector<2xf32>
    %667 = vector.multi_reduction <add>, %666, %cst_151 [1] : vector<2x128xf32> to vector<2xf32>
    %668 = vector.shape_cast %667 : vector<2xf32> to vector<2x1xf32>
    %cst_152 = arith.constant 1.280000e+02 : f32
    %669 = vector.broadcast %cst_152 : f32 to vector<2x1xf32>
    %670 = arith.divf %668, %669 : vector<2x1xf32>
    %671 = vector.broadcast %663 : vector<2x1xf32> to vector<2x128xf32>
    %672 = arith.subf %659, %671 : vector<2x128xf32>
    %cst_153 = arith.constant 9.99999974E-6 : f32
    %673 = vector.broadcast %cst_153 : f32 to vector<2x1xf32>
    %674 = arith.addf %670, %673 : vector<2x1xf32>
    %675 = math.rsqrt %674 : vector<2x1xf32>
    %676 = vector.broadcast %675 : vector<2x1xf32> to vector<2x128xf32>
    %677 = arith.mulf %672, %676 : vector<2x128xf32>
    %678 = vector.broadcast %34 : vector<1x128xf32> to vector<2x128xf32>
    %679 = arith.mulf %677, %678 : vector<2x128xf32>
    %680 = vector.broadcast %38 : vector<1x128xf32> to vector<2x128xf32>
    %681 = arith.addf %679, %680 : vector<2x128xf32>
    %682 = vector.extract_strided_slice %635 {offsets = [0, 256], sizes = [2, 128], strides = [1, 1]} : vector<2x512xf32> to vector<2x128xf32>
    %cst_154 = arith.constant dense<0.000000e+00> : vector<2xf32>
    %683 = vector.multi_reduction <add>, %682, %cst_154 [1] : vector<2x128xf32> to vector<2xf32>
    %684 = vector.shape_cast %683 : vector<2xf32> to vector<2x1xf32>
    %cst_155 = arith.constant 1.280000e+02 : f32
    %685 = vector.broadcast %cst_155 : f32 to vector<2x1xf32>
    %686 = arith.divf %684, %685 : vector<2x1xf32>
    %687 = vector.broadcast %686 : vector<2x1xf32> to vector<2x128xf32>
    %688 = arith.subf %682, %687 : vector<2x128xf32>
    %689 = arith.mulf %688, %688 : vector<2x128xf32>
    %cst_156 = arith.constant dense<0.000000e+00> : vector<2xf32>
    %690 = vector.multi_reduction <add>, %689, %cst_156 [1] : vector<2x128xf32> to vector<2xf32>
    %691 = vector.shape_cast %690 : vector<2xf32> to vector<2x1xf32>
    %cst_157 = arith.constant 1.280000e+02 : f32
    %692 = vector.broadcast %cst_157 : f32 to vector<2x1xf32>
    %693 = arith.divf %691, %692 : vector<2x1xf32>
    %694 = vector.broadcast %686 : vector<2x1xf32> to vector<2x128xf32>
    %695 = arith.subf %682, %694 : vector<2x128xf32>
    %cst_158 = arith.constant 9.99999974E-6 : f32
    %696 = vector.broadcast %cst_158 : f32 to vector<2x1xf32>
    %697 = arith.addf %693, %696 : vector<2x1xf32>
    %698 = math.rsqrt %697 : vector<2x1xf32>
    %699 = vector.broadcast %698 : vector<2x1xf32> to vector<2x128xf32>
    %700 = arith.mulf %695, %699 : vector<2x128xf32>
    %701 = vector.broadcast %35 : vector<1x128xf32> to vector<2x128xf32>
    %702 = arith.mulf %700, %701 : vector<2x128xf32>
    %703 = vector.broadcast %39 : vector<1x128xf32> to vector<2x128xf32>
    %704 = arith.addf %702, %703 : vector<2x128xf32>
    %705 = vector.extract_strided_slice %635 {offsets = [0, 384], sizes = [2, 128], strides = [1, 1]} : vector<2x512xf32> to vector<2x128xf32>
    %cst_159 = arith.constant dense<0.000000e+00> : vector<2xf32>
    %706 = vector.multi_reduction <add>, %705, %cst_159 [1] : vector<2x128xf32> to vector<2xf32>
    %707 = vector.shape_cast %706 : vector<2xf32> to vector<2x1xf32>
    %cst_160 = arith.constant 1.280000e+02 : f32
    %708 = vector.broadcast %cst_160 : f32 to vector<2x1xf32>
    %709 = arith.divf %707, %708 : vector<2x1xf32>
    %710 = vector.broadcast %709 : vector<2x1xf32> to vector<2x128xf32>
    %711 = arith.subf %705, %710 : vector<2x128xf32>
    %712 = arith.mulf %711, %711 : vector<2x128xf32>
    %cst_161 = arith.constant dense<0.000000e+00> : vector<2xf32>
    %713 = vector.multi_reduction <add>, %712, %cst_161 [1] : vector<2x128xf32> to vector<2xf32>
    %714 = vector.shape_cast %713 : vector<2xf32> to vector<2x1xf32>
    %cst_162 = arith.constant 1.280000e+02 : f32
    %715 = vector.broadcast %cst_162 : f32 to vector<2x1xf32>
    %716 = arith.divf %714, %715 : vector<2x1xf32>
    %717 = vector.broadcast %709 : vector<2x1xf32> to vector<2x128xf32>
    %718 = arith.subf %705, %717 : vector<2x128xf32>
    %cst_163 = arith.constant 9.99999974E-6 : f32
    %719 = vector.broadcast %cst_163 : f32 to vector<2x1xf32>
    %720 = arith.addf %716, %719 : vector<2x1xf32>
    %721 = math.rsqrt %720 : vector<2x1xf32>
    %722 = vector.broadcast %721 : vector<2x1xf32> to vector<2x128xf32>
    %723 = arith.mulf %718, %722 : vector<2x128xf32>
    %724 = vector.broadcast %36 : vector<1x128xf32> to vector<2x128xf32>
    %725 = arith.mulf %723, %724 : vector<2x128xf32>
    %726 = vector.broadcast %40 : vector<1x128xf32> to vector<2x128xf32>
    %727 = arith.addf %725, %726 : vector<2x128xf32>
    %728 = arith.addf %658, %681 : vector<2x128xf32>
    %729 = vector.extract_strided_slice %728 {offsets = [0, 0], sizes = [2, 32], strides = [1, 1]} : vector<2x128xf32> to vector<2x32xf32>
    %730 = arith.negf %729 : vector<2x32xf32>
    %731 = math.exp %730 : vector<2x32xf32>
    %cst_164 = arith.constant 1.000000e+00 : f32
    %732 = vector.broadcast %cst_164 : f32 to vector<2x32xf32>
    %733 = arith.addf %732, %731 : vector<2x32xf32>
    %734 = arith.divf %732, %733 : vector<2x32xf32>
    %735 = vector.extract_strided_slice %728 {offsets = [0, 32], sizes = [2, 32], strides = [1, 1]} : vector<2x128xf32> to vector<2x32xf32>
    %736 = arith.negf %735 : vector<2x32xf32>
    %737 = math.exp %736 : vector<2x32xf32>
    %cst_165 = arith.constant 1.000000e+00 : f32
    %738 = vector.broadcast %cst_165 : f32 to vector<2x32xf32>
    %739 = arith.addf %738, %737 : vector<2x32xf32>
    %740 = arith.divf %738, %739 : vector<2x32xf32>
    %741 = vector.extract_strided_slice %728 {offsets = [0, 64], sizes = [2, 32], strides = [1, 1]} : vector<2x128xf32> to vector<2x32xf32>
    %742 = math.tanh %741 : vector<2x32xf32>
    %743 = vector.extract_strided_slice %728 {offsets = [0, 96], sizes = [2, 32], strides = [1, 1]} : vector<2x128xf32> to vector<2x32xf32>
    %744 = arith.negf %743 : vector<2x32xf32>
    %745 = math.exp %744 : vector<2x32xf32>
    %cst_166 = arith.constant 1.000000e+00 : f32
    %746 = vector.broadcast %cst_166 : f32 to vector<2x32xf32>
    %747 = arith.addf %746, %745 : vector<2x32xf32>
    %748 = arith.divf %746, %747 : vector<2x32xf32>
    %749 = arith.mulf %740, %581 : vector<2x32xf32>
    %750 = arith.mulf %734, %742 : vector<2x32xf32>
    %751 = arith.addf %749, %750 : vector<2x32xf32>
    %cst_167 = arith.constant dense<0.000000e+00> : vector<2xf32>
    %752 = vector.multi_reduction <add>, %751, %cst_167 [1] : vector<2x32xf32> to vector<2xf32>
    %753 = vector.shape_cast %752 : vector<2xf32> to vector<2x1xf32>
    %cst_168 = arith.constant 3.200000e+01 : f32
    %754 = vector.broadcast %cst_168 : f32 to vector<2x1xf32>
    %755 = arith.divf %753, %754 : vector<2x1xf32>
    %756 = vector.broadcast %755 : vector<2x1xf32> to vector<2x32xf32>
    %757 = arith.subf %751, %756 : vector<2x32xf32>
    %758 = arith.mulf %757, %757 : vector<2x32xf32>
    %cst_169 = arith.constant dense<0.000000e+00> : vector<2xf32>
    %759 = vector.multi_reduction <add>, %758, %cst_169 [1] : vector<2x32xf32> to vector<2xf32>
    %760 = vector.shape_cast %759 : vector<2xf32> to vector<2x1xf32>
    %cst_170 = arith.constant 3.200000e+01 : f32
    %761 = vector.broadcast %cst_170 : f32 to vector<2x1xf32>
    %762 = arith.divf %760, %761 : vector<2x1xf32>
    %763 = vector.broadcast %755 : vector<2x1xf32> to vector<2x32xf32>
    %764 = arith.subf %751, %763 : vector<2x32xf32>
    %cst_171 = arith.constant 9.99999974E-6 : f32
    %765 = vector.broadcast %cst_171 : f32 to vector<2x1xf32>
    %766 = arith.addf %762, %765 : vector<2x1xf32>
    %767 = math.rsqrt %766 : vector<2x1xf32>
    %768 = vector.broadcast %767 : vector<2x1xf32> to vector<2x32xf32>
    %769 = arith.mulf %764, %768 : vector<2x32xf32>
    %770 = vector.broadcast %41 : vector<1x32xf32> to vector<2x32xf32>
    %771 = arith.mulf %769, %770 : vector<2x32xf32>
    %772 = vector.broadcast %43 : vector<1x32xf32> to vector<2x32xf32>
    %773 = arith.addf %771, %772 : vector<2x32xf32>
    %774 = math.tanh %773 : vector<2x32xf32>
    %775 = arith.mulf %748, %774 : vector<2x32xf32>
    %776 = arith.addf %704, %727 : vector<2x128xf32>
    %777 = vector.extract_strided_slice %776 {offsets = [0, 0], sizes = [2, 32], strides = [1, 1]} : vector<2x128xf32> to vector<2x32xf32>
    %778 = arith.negf %777 : vector<2x32xf32>
    %779 = math.exp %778 : vector<2x32xf32>
    %cst_172 = arith.constant 1.000000e+00 : f32
    %780 = vector.broadcast %cst_172 : f32 to vector<2x32xf32>
    %781 = arith.addf %780, %779 : vector<2x32xf32>
    %782 = arith.divf %780, %781 : vector<2x32xf32>
    %783 = vector.extract_strided_slice %776 {offsets = [0, 32], sizes = [2, 32], strides = [1, 1]} : vector<2x128xf32> to vector<2x32xf32>
    %784 = arith.negf %783 : vector<2x32xf32>
    %785 = math.exp %784 : vector<2x32xf32>
    %cst_173 = arith.constant 1.000000e+00 : f32
    %786 = vector.broadcast %cst_173 : f32 to vector<2x32xf32>
    %787 = arith.addf %786, %785 : vector<2x32xf32>
    %788 = arith.divf %786, %787 : vector<2x32xf32>
    %789 = vector.extract_strided_slice %776 {offsets = [0, 64], sizes = [2, 32], strides = [1, 1]} : vector<2x128xf32> to vector<2x32xf32>
    %790 = math.tanh %789 : vector<2x32xf32>
    %791 = vector.extract_strided_slice %776 {offsets = [0, 96], sizes = [2, 32], strides = [1, 1]} : vector<2x128xf32> to vector<2x32xf32>
    %792 = arith.negf %791 : vector<2x32xf32>
    %793 = math.exp %792 : vector<2x32xf32>
    %cst_174 = arith.constant 1.000000e+00 : f32
    %794 = vector.broadcast %cst_174 : f32 to vector<2x32xf32>
    %795 = arith.addf %794, %793 : vector<2x32xf32>
    %796 = arith.divf %794, %795 : vector<2x32xf32>
    %797 = arith.mulf %788, %629 : vector<2x32xf32>
    %798 = arith.mulf %782, %790 : vector<2x32xf32>
    %799 = arith.addf %797, %798 : vector<2x32xf32>
    %cst_175 = arith.constant dense<0.000000e+00> : vector<2xf32>
    %800 = vector.multi_reduction <add>, %799, %cst_175 [1] : vector<2x32xf32> to vector<2xf32>
    %801 = vector.shape_cast %800 : vector<2xf32> to vector<2x1xf32>
    %cst_176 = arith.constant 3.200000e+01 : f32
    %802 = vector.broadcast %cst_176 : f32 to vector<2x1xf32>
    %803 = arith.divf %801, %802 : vector<2x1xf32>
    %804 = vector.broadcast %803 : vector<2x1xf32> to vector<2x32xf32>
    %805 = arith.subf %799, %804 : vector<2x32xf32>
    %806 = arith.mulf %805, %805 : vector<2x32xf32>
    %cst_177 = arith.constant dense<0.000000e+00> : vector<2xf32>
    %807 = vector.multi_reduction <add>, %806, %cst_177 [1] : vector<2x32xf32> to vector<2xf32>
    %808 = vector.shape_cast %807 : vector<2xf32> to vector<2x1xf32>
    %cst_178 = arith.constant 3.200000e+01 : f32
    %809 = vector.broadcast %cst_178 : f32 to vector<2x1xf32>
    %810 = arith.divf %808, %809 : vector<2x1xf32>
    %811 = vector.broadcast %803 : vector<2x1xf32> to vector<2x32xf32>
    %812 = arith.subf %799, %811 : vector<2x32xf32>
    %cst_179 = arith.constant 9.99999974E-6 : f32
    %813 = vector.broadcast %cst_179 : f32 to vector<2x1xf32>
    %814 = arith.addf %810, %813 : vector<2x1xf32>
    %815 = math.rsqrt %814 : vector<2x1xf32>
    %816 = vector.broadcast %815 : vector<2x1xf32> to vector<2x32xf32>
    %817 = arith.mulf %812, %816 : vector<2x32xf32>
    %818 = vector.broadcast %42 : vector<1x32xf32> to vector<2x32xf32>
    %819 = arith.mulf %817, %818 : vector<2x32xf32>
    %820 = vector.broadcast %44 : vector<1x32xf32> to vector<2x32xf32>
    %821 = arith.addf %819, %820 : vector<2x32xf32>
    %822 = math.tanh %821 : vector<2x32xf32>
    %823 = arith.mulf %796, %822 : vector<2x32xf32>
    %824 = vector.extract_strided_slice %28 {offsets = [8, 0], sizes = [2, 32], strides = [1, 1]} : vector<16x32xf32> to vector<2x32xf32>
    %825 = vector.extract_strided_slice %28 {offsets = [6, 0], sizes = [2, 32], strides = [1, 1]} : vector<16x32xf32> to vector<2x32xf32>
    %826 = tpu.concatenate %824, %775, %825, %823 in 1 : vector<2x32xf32>, vector<2x32xf32>, vector<2x32xf32>, vector<2x32xf32> -> vector<2x128xf32>
    %cst_180 = arith.constant dense<0.000000e+00> : vector<2x512xf32>
    %827 = tpu.matmul %826, %45, %cst_180 {dimension_numbers = #tpu.dot_dimension_numbers<[1], [0], [0], [1], [0, 0, 1, 1], [], []>} : vector<2x128xf32>, vector<128x512xf32>, vector<2x512xf32> -> vector<2x512xf32>
    %828 = vector.extract_strided_slice %827 {offsets = [0, 0], sizes = [2, 128], strides = [1, 1]} : vector<2x512xf32> to vector<2x128xf32>
    %cst_181 = arith.constant dense<0.000000e+00> : vector<2xf32>
    %829 = vector.multi_reduction <add>, %828, %cst_181 [1] : vector<2x128xf32> to vector<2xf32>
    %830 = vector.shape_cast %829 : vector<2xf32> to vector<2x1xf32>
    %cst_182 = arith.constant 1.280000e+02 : f32
    %831 = vector.broadcast %cst_182 : f32 to vector<2x1xf32>
    %832 = arith.divf %830, %831 : vector<2x1xf32>
    %833 = vector.broadcast %832 : vector<2x1xf32> to vector<2x128xf32>
    %834 = arith.subf %828, %833 : vector<2x128xf32>
    %835 = arith.mulf %834, %834 : vector<2x128xf32>
    %cst_183 = arith.constant dense<0.000000e+00> : vector<2xf32>
    %836 = vector.multi_reduction <add>, %835, %cst_183 [1] : vector<2x128xf32> to vector<2xf32>
    %837 = vector.shape_cast %836 : vector<2xf32> to vector<2x1xf32>
    %cst_184 = arith.constant 1.280000e+02 : f32
    %838 = vector.broadcast %cst_184 : f32 to vector<2x1xf32>
    %839 = arith.divf %837, %838 : vector<2x1xf32>
    %840 = vector.broadcast %832 : vector<2x1xf32> to vector<2x128xf32>
    %841 = arith.subf %828, %840 : vector<2x128xf32>
    %cst_185 = arith.constant 9.99999974E-6 : f32
    %842 = vector.broadcast %cst_185 : f32 to vector<2x1xf32>
    %843 = arith.addf %839, %842 : vector<2x1xf32>
    %844 = math.rsqrt %843 : vector<2x1xf32>
    %845 = vector.broadcast %844 : vector<2x1xf32> to vector<2x128xf32>
    %846 = arith.mulf %841, %845 : vector<2x128xf32>
    %847 = vector.broadcast %33 : vector<1x128xf32> to vector<2x128xf32>
    %848 = arith.mulf %846, %847 : vector<2x128xf32>
    %849 = vector.broadcast %37 : vector<1x128xf32> to vector<2x128xf32>
    %850 = arith.addf %848, %849 : vector<2x128xf32>
    %851 = vector.extract_strided_slice %827 {offsets = [0, 128], sizes = [2, 128], strides = [1, 1]} : vector<2x512xf32> to vector<2x128xf32>
    %cst_186 = arith.constant dense<0.000000e+00> : vector<2xf32>
    %852 = vector.multi_reduction <add>, %851, %cst_186 [1] : vector<2x128xf32> to vector<2xf32>
    %853 = vector.shape_cast %852 : vector<2xf32> to vector<2x1xf32>
    %cst_187 = arith.constant 1.280000e+02 : f32
    %854 = vector.broadcast %cst_187 : f32 to vector<2x1xf32>
    %855 = arith.divf %853, %854 : vector<2x1xf32>
    %856 = vector.broadcast %855 : vector<2x1xf32> to vector<2x128xf32>
    %857 = arith.subf %851, %856 : vector<2x128xf32>
    %858 = arith.mulf %857, %857 : vector<2x128xf32>
    %cst_188 = arith.constant dense<0.000000e+00> : vector<2xf32>
    %859 = vector.multi_reduction <add>, %858, %cst_188 [1] : vector<2x128xf32> to vector<2xf32>
    %860 = vector.shape_cast %859 : vector<2xf32> to vector<2x1xf32>
    %cst_189 = arith.constant 1.280000e+02 : f32
    %861 = vector.broadcast %cst_189 : f32 to vector<2x1xf32>
    %862 = arith.divf %860, %861 : vector<2x1xf32>
    %863 = vector.broadcast %855 : vector<2x1xf32> to vector<2x128xf32>
    %864 = arith.subf %851, %863 : vector<2x128xf32>
    %cst_190 = arith.constant 9.99999974E-6 : f32
    %865 = vector.broadcast %cst_190 : f32 to vector<2x1xf32>
    %866 = arith.addf %862, %865 : vector<2x1xf32>
    %867 = math.rsqrt %866 : vector<2x1xf32>
    %868 = vector.broadcast %867 : vector<2x1xf32> to vector<2x128xf32>
    %869 = arith.mulf %864, %868 : vector<2x128xf32>
    %870 = vector.broadcast %34 : vector<1x128xf32> to vector<2x128xf32>
    %871 = arith.mulf %869, %870 : vector<2x128xf32>
    %872 = vector.broadcast %38 : vector<1x128xf32> to vector<2x128xf32>
    %873 = arith.addf %871, %872 : vector<2x128xf32>
    %874 = vector.extract_strided_slice %827 {offsets = [0, 256], sizes = [2, 128], strides = [1, 1]} : vector<2x512xf32> to vector<2x128xf32>
    %cst_191 = arith.constant dense<0.000000e+00> : vector<2xf32>
    %875 = vector.multi_reduction <add>, %874, %cst_191 [1] : vector<2x128xf32> to vector<2xf32>
    %876 = vector.shape_cast %875 : vector<2xf32> to vector<2x1xf32>
    %cst_192 = arith.constant 1.280000e+02 : f32
    %877 = vector.broadcast %cst_192 : f32 to vector<2x1xf32>
    %878 = arith.divf %876, %877 : vector<2x1xf32>
    %879 = vector.broadcast %878 : vector<2x1xf32> to vector<2x128xf32>
    %880 = arith.subf %874, %879 : vector<2x128xf32>
    %881 = arith.mulf %880, %880 : vector<2x128xf32>
    %cst_193 = arith.constant dense<0.000000e+00> : vector<2xf32>
    %882 = vector.multi_reduction <add>, %881, %cst_193 [1] : vector<2x128xf32> to vector<2xf32>
    %883 = vector.shape_cast %882 : vector<2xf32> to vector<2x1xf32>
    %cst_194 = arith.constant 1.280000e+02 : f32
    %884 = vector.broadcast %cst_194 : f32 to vector<2x1xf32>
    %885 = arith.divf %883, %884 : vector<2x1xf32>
    %886 = vector.broadcast %878 : vector<2x1xf32> to vector<2x128xf32>
    %887 = arith.subf %874, %886 : vector<2x128xf32>
    %cst_195 = arith.constant 9.99999974E-6 : f32
    %888 = vector.broadcast %cst_195 : f32 to vector<2x1xf32>
    %889 = arith.addf %885, %888 : vector<2x1xf32>
    %890 = math.rsqrt %889 : vector<2x1xf32>
    %891 = vector.broadcast %890 : vector<2x1xf32> to vector<2x128xf32>
    %892 = arith.mulf %887, %891 : vector<2x128xf32>
    %893 = vector.broadcast %35 : vector<1x128xf32> to vector<2x128xf32>
    %894 = arith.mulf %892, %893 : vector<2x128xf32>
    %895 = vector.broadcast %39 : vector<1x128xf32> to vector<2x128xf32>
    %896 = arith.addf %894, %895 : vector<2x128xf32>
    %897 = vector.extract_strided_slice %827 {offsets = [0, 384], sizes = [2, 128], strides = [1, 1]} : vector<2x512xf32> to vector<2x128xf32>
    %cst_196 = arith.constant dense<0.000000e+00> : vector<2xf32>
    %898 = vector.multi_reduction <add>, %897, %cst_196 [1] : vector<2x128xf32> to vector<2xf32>
    %899 = vector.shape_cast %898 : vector<2xf32> to vector<2x1xf32>
    %cst_197 = arith.constant 1.280000e+02 : f32
    %900 = vector.broadcast %cst_197 : f32 to vector<2x1xf32>
    %901 = arith.divf %899, %900 : vector<2x1xf32>
    %902 = vector.broadcast %901 : vector<2x1xf32> to vector<2x128xf32>
    %903 = arith.subf %897, %902 : vector<2x128xf32>
    %904 = arith.mulf %903, %903 : vector<2x128xf32>
    %cst_198 = arith.constant dense<0.000000e+00> : vector<2xf32>
    %905 = vector.multi_reduction <add>, %904, %cst_198 [1] : vector<2x128xf32> to vector<2xf32>
    %906 = vector.shape_cast %905 : vector<2xf32> to vector<2x1xf32>
    %cst_199 = arith.constant 1.280000e+02 : f32
    %907 = vector.broadcast %cst_199 : f32 to vector<2x1xf32>
    %908 = arith.divf %906, %907 : vector<2x1xf32>
    %909 = vector.broadcast %901 : vector<2x1xf32> to vector<2x128xf32>
    %910 = arith.subf %897, %909 : vector<2x128xf32>
    %cst_200 = arith.constant 9.99999974E-6 : f32
    %911 = vector.broadcast %cst_200 : f32 to vector<2x1xf32>
    %912 = arith.addf %908, %911 : vector<2x1xf32>
    %913 = math.rsqrt %912 : vector<2x1xf32>
    %914 = vector.broadcast %913 : vector<2x1xf32> to vector<2x128xf32>
    %915 = arith.mulf %910, %914 : vector<2x128xf32>
    %916 = vector.broadcast %36 : vector<1x128xf32> to vector<2x128xf32>
    %917 = arith.mulf %915, %916 : vector<2x128xf32>
    %918 = vector.broadcast %40 : vector<1x128xf32> to vector<2x128xf32>
    %919 = arith.addf %917, %918 : vector<2x128xf32>
    %920 = arith.addf %850, %873 : vector<2x128xf32>
    %921 = vector.extract_strided_slice %920 {offsets = [0, 0], sizes = [2, 32], strides = [1, 1]} : vector<2x128xf32> to vector<2x32xf32>
    %922 = arith.negf %921 : vector<2x32xf32>
    %923 = math.exp %922 : vector<2x32xf32>
    %cst_201 = arith.constant 1.000000e+00 : f32
    %924 = vector.broadcast %cst_201 : f32 to vector<2x32xf32>
    %925 = arith.addf %924, %923 : vector<2x32xf32>
    %926 = arith.divf %924, %925 : vector<2x32xf32>
    %927 = vector.extract_strided_slice %920 {offsets = [0, 32], sizes = [2, 32], strides = [1, 1]} : vector<2x128xf32> to vector<2x32xf32>
    %928 = arith.negf %927 : vector<2x32xf32>
    %929 = math.exp %928 : vector<2x32xf32>
    %cst_202 = arith.constant 1.000000e+00 : f32
    %930 = vector.broadcast %cst_202 : f32 to vector<2x32xf32>
    %931 = arith.addf %930, %929 : vector<2x32xf32>
    %932 = arith.divf %930, %931 : vector<2x32xf32>
    %933 = vector.extract_strided_slice %920 {offsets = [0, 64], sizes = [2, 32], strides = [1, 1]} : vector<2x128xf32> to vector<2x32xf32>
    %934 = math.tanh %933 : vector<2x32xf32>
    %935 = vector.extract_strided_slice %920 {offsets = [0, 96], sizes = [2, 32], strides = [1, 1]} : vector<2x128xf32> to vector<2x32xf32>
    %936 = arith.negf %935 : vector<2x32xf32>
    %937 = math.exp %936 : vector<2x32xf32>
    %cst_203 = arith.constant 1.000000e+00 : f32
    %938 = vector.broadcast %cst_203 : f32 to vector<2x32xf32>
    %939 = arith.addf %938, %937 : vector<2x32xf32>
    %940 = arith.divf %938, %939 : vector<2x32xf32>
    %941 = arith.mulf %932, %773 : vector<2x32xf32>
    %942 = arith.mulf %926, %934 : vector<2x32xf32>
    %943 = arith.addf %941, %942 : vector<2x32xf32>
    %cst_204 = arith.constant dense<0.000000e+00> : vector<2xf32>
    %944 = vector.multi_reduction <add>, %943, %cst_204 [1] : vector<2x32xf32> to vector<2xf32>
    %945 = vector.shape_cast %944 : vector<2xf32> to vector<2x1xf32>
    %cst_205 = arith.constant 3.200000e+01 : f32
    %946 = vector.broadcast %cst_205 : f32 to vector<2x1xf32>
    %947 = arith.divf %945, %946 : vector<2x1xf32>
    %948 = vector.broadcast %947 : vector<2x1xf32> to vector<2x32xf32>
    %949 = arith.subf %943, %948 : vector<2x32xf32>
    %950 = arith.mulf %949, %949 : vector<2x32xf32>
    %cst_206 = arith.constant dense<0.000000e+00> : vector<2xf32>
    %951 = vector.multi_reduction <add>, %950, %cst_206 [1] : vector<2x32xf32> to vector<2xf32>
    %952 = vector.shape_cast %951 : vector<2xf32> to vector<2x1xf32>
    %cst_207 = arith.constant 3.200000e+01 : f32
    %953 = vector.broadcast %cst_207 : f32 to vector<2x1xf32>
    %954 = arith.divf %952, %953 : vector<2x1xf32>
    %955 = vector.broadcast %947 : vector<2x1xf32> to vector<2x32xf32>
    %956 = arith.subf %943, %955 : vector<2x32xf32>
    %cst_208 = arith.constant 9.99999974E-6 : f32
    %957 = vector.broadcast %cst_208 : f32 to vector<2x1xf32>
    %958 = arith.addf %954, %957 : vector<2x1xf32>
    %959 = math.rsqrt %958 : vector<2x1xf32>
    %960 = vector.broadcast %959 : vector<2x1xf32> to vector<2x32xf32>
    %961 = arith.mulf %956, %960 : vector<2x32xf32>
    %962 = vector.broadcast %41 : vector<1x32xf32> to vector<2x32xf32>
    %963 = arith.mulf %961, %962 : vector<2x32xf32>
    %964 = vector.broadcast %43 : vector<1x32xf32> to vector<2x32xf32>
    %965 = arith.addf %963, %964 : vector<2x32xf32>
    %966 = math.tanh %965 : vector<2x32xf32>
    %967 = arith.mulf %940, %966 : vector<2x32xf32>
    %968 = arith.addf %896, %919 : vector<2x128xf32>
    %969 = vector.extract_strided_slice %968 {offsets = [0, 0], sizes = [2, 32], strides = [1, 1]} : vector<2x128xf32> to vector<2x32xf32>
    %970 = arith.negf %969 : vector<2x32xf32>
    %971 = math.exp %970 : vector<2x32xf32>
    %cst_209 = arith.constant 1.000000e+00 : f32
    %972 = vector.broadcast %cst_209 : f32 to vector<2x32xf32>
    %973 = arith.addf %972, %971 : vector<2x32xf32>
    %974 = arith.divf %972, %973 : vector<2x32xf32>
    %975 = vector.extract_strided_slice %968 {offsets = [0, 32], sizes = [2, 32], strides = [1, 1]} : vector<2x128xf32> to vector<2x32xf32>
    %976 = arith.negf %975 : vector<2x32xf32>
    %977 = math.exp %976 : vector<2x32xf32>
    %cst_210 = arith.constant 1.000000e+00 : f32
    %978 = vector.broadcast %cst_210 : f32 to vector<2x32xf32>
    %979 = arith.addf %978, %977 : vector<2x32xf32>
    %980 = arith.divf %978, %979 : vector<2x32xf32>
    %981 = vector.extract_strided_slice %968 {offsets = [0, 64], sizes = [2, 32], strides = [1, 1]} : vector<2x128xf32> to vector<2x32xf32>
    %982 = math.tanh %981 : vector<2x32xf32>
    %983 = vector.extract_strided_slice %968 {offsets = [0, 96], sizes = [2, 32], strides = [1, 1]} : vector<2x128xf32> to vector<2x32xf32>
    %984 = arith.negf %983 : vector<2x32xf32>
    %985 = math.exp %984 : vector<2x32xf32>
    %cst_211 = arith.constant 1.000000e+00 : f32
    %986 = vector.broadcast %cst_211 : f32 to vector<2x32xf32>
    %987 = arith.addf %986, %985 : vector<2x32xf32>
    %988 = arith.divf %986, %987 : vector<2x32xf32>
    %989 = arith.mulf %980, %821 : vector<2x32xf32>
    %990 = arith.mulf %974, %982 : vector<2x32xf32>
    %991 = arith.addf %989, %990 : vector<2x32xf32>
    %cst_212 = arith.constant dense<0.000000e+00> : vector<2xf32>
    %992 = vector.multi_reduction <add>, %991, %cst_212 [1] : vector<2x32xf32> to vector<2xf32>
    %993 = vector.shape_cast %992 : vector<2xf32> to vector<2x1xf32>
    %cst_213 = arith.constant 3.200000e+01 : f32
    %994 = vector.broadcast %cst_213 : f32 to vector<2x1xf32>
    %995 = arith.divf %993, %994 : vector<2x1xf32>
    %996 = vector.broadcast %995 : vector<2x1xf32> to vector<2x32xf32>
    %997 = arith.subf %991, %996 : vector<2x32xf32>
    %998 = arith.mulf %997, %997 : vector<2x32xf32>
    %cst_214 = arith.constant dense<0.000000e+00> : vector<2xf32>
    %999 = vector.multi_reduction <add>, %998, %cst_214 [1] : vector<2x32xf32> to vector<2xf32>
    %1000 = vector.shape_cast %999 : vector<2xf32> to vector<2x1xf32>
    %cst_215 = arith.constant 3.200000e+01 : f32
    %1001 = vector.broadcast %cst_215 : f32 to vector<2x1xf32>
    %1002 = arith.divf %1000, %1001 : vector<2x1xf32>
    %1003 = vector.broadcast %995 : vector<2x1xf32> to vector<2x32xf32>
    %1004 = arith.subf %991, %1003 : vector<2x32xf32>
    %cst_216 = arith.constant 9.99999974E-6 : f32
    %1005 = vector.broadcast %cst_216 : f32 to vector<2x1xf32>
    %1006 = arith.addf %1002, %1005 : vector<2x1xf32>
    %1007 = math.rsqrt %1006 : vector<2x1xf32>
    %1008 = vector.broadcast %1007 : vector<2x1xf32> to vector<2x32xf32>
    %1009 = arith.mulf %1004, %1008 : vector<2x32xf32>
    %1010 = vector.broadcast %42 : vector<1x32xf32> to vector<2x32xf32>
    %1011 = arith.mulf %1009, %1010 : vector<2x32xf32>
    %1012 = vector.broadcast %44 : vector<1x32xf32> to vector<2x32xf32>
    %1013 = arith.addf %1011, %1012 : vector<2x32xf32>
    %1014 = math.tanh %1013 : vector<2x32xf32>
    %1015 = arith.mulf %988, %1014 : vector<2x32xf32>
    %1016 = vector.extract_strided_slice %28 {offsets = [10, 0], sizes = [2, 32], strides = [1, 1]} : vector<16x32xf32> to vector<2x32xf32>
    %1017 = vector.extract_strided_slice %28 {offsets = [4, 0], sizes = [2, 32], strides = [1, 1]} : vector<16x32xf32> to vector<2x32xf32>
    %1018 = tpu.concatenate %1016, %967, %1017, %1015 in 1 : vector<2x32xf32>, vector<2x32xf32>, vector<2x32xf32>, vector<2x32xf32> -> vector<2x128xf32>
    %cst_217 = arith.constant dense<0.000000e+00> : vector<2x512xf32>
    %1019 = tpu.matmul %1018, %45, %cst_217 {dimension_numbers = #tpu.dot_dimension_numbers<[1], [0], [0], [1], [0, 0, 1, 1], [], []>} : vector<2x128xf32>, vector<128x512xf32>, vector<2x512xf32> -> vector<2x512xf32>
    %1020 = vector.extract_strided_slice %1019 {offsets = [0, 0], sizes = [2, 128], strides = [1, 1]} : vector<2x512xf32> to vector<2x128xf32>
    %cst_218 = arith.constant dense<0.000000e+00> : vector<2xf32>
    %1021 = vector.multi_reduction <add>, %1020, %cst_218 [1] : vector<2x128xf32> to vector<2xf32>
    %1022 = vector.shape_cast %1021 : vector<2xf32> to vector<2x1xf32>
    %cst_219 = arith.constant 1.280000e+02 : f32
    %1023 = vector.broadcast %cst_219 : f32 to vector<2x1xf32>
    %1024 = arith.divf %1022, %1023 : vector<2x1xf32>
    %1025 = vector.broadcast %1024 : vector<2x1xf32> to vector<2x128xf32>
    %1026 = arith.subf %1020, %1025 : vector<2x128xf32>
    %1027 = arith.mulf %1026, %1026 : vector<2x128xf32>
    %cst_220 = arith.constant dense<0.000000e+00> : vector<2xf32>
    %1028 = vector.multi_reduction <add>, %1027, %cst_220 [1] : vector<2x128xf32> to vector<2xf32>
    %1029 = vector.shape_cast %1028 : vector<2xf32> to vector<2x1xf32>
    %cst_221 = arith.constant 1.280000e+02 : f32
    %1030 = vector.broadcast %cst_221 : f32 to vector<2x1xf32>
    %1031 = arith.divf %1029, %1030 : vector<2x1xf32>
    %1032 = vector.broadcast %1024 : vector<2x1xf32> to vector<2x128xf32>
    %1033 = arith.subf %1020, %1032 : vector<2x128xf32>
    %cst_222 = arith.constant 9.99999974E-6 : f32
    %1034 = vector.broadcast %cst_222 : f32 to vector<2x1xf32>
    %1035 = arith.addf %1031, %1034 : vector<2x1xf32>
    %1036 = math.rsqrt %1035 : vector<2x1xf32>
    %1037 = vector.broadcast %1036 : vector<2x1xf32> to vector<2x128xf32>
    %1038 = arith.mulf %1033, %1037 : vector<2x128xf32>
    %1039 = vector.broadcast %33 : vector<1x128xf32> to vector<2x128xf32>
    %1040 = arith.mulf %1038, %1039 : vector<2x128xf32>
    %1041 = vector.broadcast %37 : vector<1x128xf32> to vector<2x128xf32>
    %1042 = arith.addf %1040, %1041 : vector<2x128xf32>
    %1043 = vector.extract_strided_slice %1019 {offsets = [0, 128], sizes = [2, 128], strides = [1, 1]} : vector<2x512xf32> to vector<2x128xf32>
    %cst_223 = arith.constant dense<0.000000e+00> : vector<2xf32>
    %1044 = vector.multi_reduction <add>, %1043, %cst_223 [1] : vector<2x128xf32> to vector<2xf32>
    %1045 = vector.shape_cast %1044 : vector<2xf32> to vector<2x1xf32>
    %cst_224 = arith.constant 1.280000e+02 : f32
    %1046 = vector.broadcast %cst_224 : f32 to vector<2x1xf32>
    %1047 = arith.divf %1045, %1046 : vector<2x1xf32>
    %1048 = vector.broadcast %1047 : vector<2x1xf32> to vector<2x128xf32>
    %1049 = arith.subf %1043, %1048 : vector<2x128xf32>
    %1050 = arith.mulf %1049, %1049 : vector<2x128xf32>
    %cst_225 = arith.constant dense<0.000000e+00> : vector<2xf32>
    %1051 = vector.multi_reduction <add>, %1050, %cst_225 [1] : vector<2x128xf32> to vector<2xf32>
    %1052 = vector.shape_cast %1051 : vector<2xf32> to vector<2x1xf32>
    %cst_226 = arith.constant 1.280000e+02 : f32
    %1053 = vector.broadcast %cst_226 : f32 to vector<2x1xf32>
    %1054 = arith.divf %1052, %1053 : vector<2x1xf32>
    %1055 = vector.broadcast %1047 : vector<2x1xf32> to vector<2x128xf32>
    %1056 = arith.subf %1043, %1055 : vector<2x128xf32>
    %cst_227 = arith.constant 9.99999974E-6 : f32
    %1057 = vector.broadcast %cst_227 : f32 to vector<2x1xf32>
    %1058 = arith.addf %1054, %1057 : vector<2x1xf32>
    %1059 = math.rsqrt %1058 : vector<2x1xf32>
    %1060 = vector.broadcast %1059 : vector<2x1xf32> to vector<2x128xf32>
    %1061 = arith.mulf %1056, %1060 : vector<2x128xf32>
    %1062 = vector.broadcast %34 : vector<1x128xf32> to vector<2x128xf32>
    %1063 = arith.mulf %1061, %1062 : vector<2x128xf32>
    %1064 = vector.broadcast %38 : vector<1x128xf32> to vector<2x128xf32>
    %1065 = arith.addf %1063, %1064 : vector<2x128xf32>
    %1066 = vector.extract_strided_slice %1019 {offsets = [0, 256], sizes = [2, 128], strides = [1, 1]} : vector<2x512xf32> to vector<2x128xf32>
    %cst_228 = arith.constant dense<0.000000e+00> : vector<2xf32>
    %1067 = vector.multi_reduction <add>, %1066, %cst_228 [1] : vector<2x128xf32> to vector<2xf32>
    %1068 = vector.shape_cast %1067 : vector<2xf32> to vector<2x1xf32>
    %cst_229 = arith.constant 1.280000e+02 : f32
    %1069 = vector.broadcast %cst_229 : f32 to vector<2x1xf32>
    %1070 = arith.divf %1068, %1069 : vector<2x1xf32>
    %1071 = vector.broadcast %1070 : vector<2x1xf32> to vector<2x128xf32>
    %1072 = arith.subf %1066, %1071 : vector<2x128xf32>
    %1073 = arith.mulf %1072, %1072 : vector<2x128xf32>
    %cst_230 = arith.constant dense<0.000000e+00> : vector<2xf32>
    %1074 = vector.multi_reduction <add>, %1073, %cst_230 [1] : vector<2x128xf32> to vector<2xf32>
    %1075 = vector.shape_cast %1074 : vector<2xf32> to vector<2x1xf32>
    %cst_231 = arith.constant 1.280000e+02 : f32
    %1076 = vector.broadcast %cst_231 : f32 to vector<2x1xf32>
    %1077 = arith.divf %1075, %1076 : vector<2x1xf32>
    %1078 = vector.broadcast %1070 : vector<2x1xf32> to vector<2x128xf32>
    %1079 = arith.subf %1066, %1078 : vector<2x128xf32>
    %cst_232 = arith.constant 9.99999974E-6 : f32
    %1080 = vector.broadcast %cst_232 : f32 to vector<2x1xf32>
    %1081 = arith.addf %1077, %1080 : vector<2x1xf32>
    %1082 = math.rsqrt %1081 : vector<2x1xf32>
    %1083 = vector.broadcast %1082 : vector<2x1xf32> to vector<2x128xf32>
    %1084 = arith.mulf %1079, %1083 : vector<2x128xf32>
    %1085 = vector.broadcast %35 : vector<1x128xf32> to vector<2x128xf32>
    %1086 = arith.mulf %1084, %1085 : vector<2x128xf32>
    %1087 = vector.broadcast %39 : vector<1x128xf32> to vector<2x128xf32>
    %1088 = arith.addf %1086, %1087 : vector<2x128xf32>
    %1089 = vector.extract_strided_slice %1019 {offsets = [0, 384], sizes = [2, 128], strides = [1, 1]} : vector<2x512xf32> to vector<2x128xf32>
    %cst_233 = arith.constant dense<0.000000e+00> : vector<2xf32>
    %1090 = vector.multi_reduction <add>, %1089, %cst_233 [1] : vector<2x128xf32> to vector<2xf32>
    %1091 = vector.shape_cast %1090 : vector<2xf32> to vector<2x1xf32>
    %cst_234 = arith.constant 1.280000e+02 : f32
    %1092 = vector.broadcast %cst_234 : f32 to vector<2x1xf32>
    %1093 = arith.divf %1091, %1092 : vector<2x1xf32>
    %1094 = vector.broadcast %1093 : vector<2x1xf32> to vector<2x128xf32>
    %1095 = arith.subf %1089, %1094 : vector<2x128xf32>
    %1096 = arith.mulf %1095, %1095 : vector<2x128xf32>
    %cst_235 = arith.constant dense<0.000000e+00> : vector<2xf32>
    %1097 = vector.multi_reduction <add>, %1096, %cst_235 [1] : vector<2x128xf32> to vector<2xf32>
    %1098 = vector.shape_cast %1097 : vector<2xf32> to vector<2x1xf32>
    %cst_236 = arith.constant 1.280000e+02 : f32
    %1099 = vector.broadcast %cst_236 : f32 to vector<2x1xf32>
    %1100 = arith.divf %1098, %1099 : vector<2x1xf32>
    %1101 = vector.broadcast %1093 : vector<2x1xf32> to vector<2x128xf32>
    %1102 = arith.subf %1089, %1101 : vector<2x128xf32>
    %cst_237 = arith.constant 9.99999974E-6 : f32
    %1103 = vector.broadcast %cst_237 : f32 to vector<2x1xf32>
    %1104 = arith.addf %1100, %1103 : vector<2x1xf32>
    %1105 = math.rsqrt %1104 : vector<2x1xf32>
    %1106 = vector.broadcast %1105 : vector<2x1xf32> to vector<2x128xf32>
    %1107 = arith.mulf %1102, %1106 : vector<2x128xf32>
    %1108 = vector.broadcast %36 : vector<1x128xf32> to vector<2x128xf32>
    %1109 = arith.mulf %1107, %1108 : vector<2x128xf32>
    %1110 = vector.broadcast %40 : vector<1x128xf32> to vector<2x128xf32>
    %1111 = arith.addf %1109, %1110 : vector<2x128xf32>
    %1112 = arith.addf %1042, %1065 : vector<2x128xf32>
    %1113 = vector.extract_strided_slice %1112 {offsets = [0, 0], sizes = [2, 32], strides = [1, 1]} : vector<2x128xf32> to vector<2x32xf32>
    %1114 = arith.negf %1113 : vector<2x32xf32>
    %1115 = math.exp %1114 : vector<2x32xf32>
    %cst_238 = arith.constant 1.000000e+00 : f32
    %1116 = vector.broadcast %cst_238 : f32 to vector<2x32xf32>
    %1117 = arith.addf %1116, %1115 : vector<2x32xf32>
    %1118 = arith.divf %1116, %1117 : vector<2x32xf32>
    %1119 = vector.extract_strided_slice %1112 {offsets = [0, 32], sizes = [2, 32], strides = [1, 1]} : vector<2x128xf32> to vector<2x32xf32>
    %1120 = arith.negf %1119 : vector<2x32xf32>
    %1121 = math.exp %1120 : vector<2x32xf32>
    %cst_239 = arith.constant 1.000000e+00 : f32
    %1122 = vector.broadcast %cst_239 : f32 to vector<2x32xf32>
    %1123 = arith.addf %1122, %1121 : vector<2x32xf32>
    %1124 = arith.divf %1122, %1123 : vector<2x32xf32>
    %1125 = vector.extract_strided_slice %1112 {offsets = [0, 64], sizes = [2, 32], strides = [1, 1]} : vector<2x128xf32> to vector<2x32xf32>
    %1126 = math.tanh %1125 : vector<2x32xf32>
    %1127 = vector.extract_strided_slice %1112 {offsets = [0, 96], sizes = [2, 32], strides = [1, 1]} : vector<2x128xf32> to vector<2x32xf32>
    %1128 = arith.negf %1127 : vector<2x32xf32>
    %1129 = math.exp %1128 : vector<2x32xf32>
    %cst_240 = arith.constant 1.000000e+00 : f32
    %1130 = vector.broadcast %cst_240 : f32 to vector<2x32xf32>
    %1131 = arith.addf %1130, %1129 : vector<2x32xf32>
    %1132 = arith.divf %1130, %1131 : vector<2x32xf32>
    %1133 = arith.mulf %1124, %965 : vector<2x32xf32>
    %1134 = arith.mulf %1118, %1126 : vector<2x32xf32>
    %1135 = arith.addf %1133, %1134 : vector<2x32xf32>
    %cst_241 = arith.constant dense<0.000000e+00> : vector<2xf32>
    %1136 = vector.multi_reduction <add>, %1135, %cst_241 [1] : vector<2x32xf32> to vector<2xf32>
    %1137 = vector.shape_cast %1136 : vector<2xf32> to vector<2x1xf32>
    %cst_242 = arith.constant 3.200000e+01 : f32
    %1138 = vector.broadcast %cst_242 : f32 to vector<2x1xf32>
    %1139 = arith.divf %1137, %1138 : vector<2x1xf32>
    %1140 = vector.broadcast %1139 : vector<2x1xf32> to vector<2x32xf32>
    %1141 = arith.subf %1135, %1140 : vector<2x32xf32>
    %1142 = arith.mulf %1141, %1141 : vector<2x32xf32>
    %cst_243 = arith.constant dense<0.000000e+00> : vector<2xf32>
    %1143 = vector.multi_reduction <add>, %1142, %cst_243 [1] : vector<2x32xf32> to vector<2xf32>
    %1144 = vector.shape_cast %1143 : vector<2xf32> to vector<2x1xf32>
    %cst_244 = arith.constant 3.200000e+01 : f32
    %1145 = vector.broadcast %cst_244 : f32 to vector<2x1xf32>
    %1146 = arith.divf %1144, %1145 : vector<2x1xf32>
    %1147 = vector.broadcast %1139 : vector<2x1xf32> to vector<2x32xf32>
    %1148 = arith.subf %1135, %1147 : vector<2x32xf32>
    %cst_245 = arith.constant 9.99999974E-6 : f32
    %1149 = vector.broadcast %cst_245 : f32 to vector<2x1xf32>
    %1150 = arith.addf %1146, %1149 : vector<2x1xf32>
    %1151 = math.rsqrt %1150 : vector<2x1xf32>
    %1152 = vector.broadcast %1151 : vector<2x1xf32> to vector<2x32xf32>
    %1153 = arith.mulf %1148, %1152 : vector<2x32xf32>
    %1154 = vector.broadcast %41 : vector<1x32xf32> to vector<2x32xf32>
    %1155 = arith.mulf %1153, %1154 : vector<2x32xf32>
    %1156 = vector.broadcast %43 : vector<1x32xf32> to vector<2x32xf32>
    %1157 = arith.addf %1155, %1156 : vector<2x32xf32>
    %1158 = math.tanh %1157 : vector<2x32xf32>
    %1159 = arith.mulf %1132, %1158 : vector<2x32xf32>
    %1160 = arith.addf %1088, %1111 : vector<2x128xf32>
    %1161 = vector.extract_strided_slice %1160 {offsets = [0, 0], sizes = [2, 32], strides = [1, 1]} : vector<2x128xf32> to vector<2x32xf32>
    %1162 = arith.negf %1161 : vector<2x32xf32>
    %1163 = math.exp %1162 : vector<2x32xf32>
    %cst_246 = arith.constant 1.000000e+00 : f32
    %1164 = vector.broadcast %cst_246 : f32 to vector<2x32xf32>
    %1165 = arith.addf %1164, %1163 : vector<2x32xf32>
    %1166 = arith.divf %1164, %1165 : vector<2x32xf32>
    %1167 = vector.extract_strided_slice %1160 {offsets = [0, 32], sizes = [2, 32], strides = [1, 1]} : vector<2x128xf32> to vector<2x32xf32>
    %1168 = arith.negf %1167 : vector<2x32xf32>
    %1169 = math.exp %1168 : vector<2x32xf32>
    %cst_247 = arith.constant 1.000000e+00 : f32
    %1170 = vector.broadcast %cst_247 : f32 to vector<2x32xf32>
    %1171 = arith.addf %1170, %1169 : vector<2x32xf32>
    %1172 = arith.divf %1170, %1171 : vector<2x32xf32>
    %1173 = vector.extract_strided_slice %1160 {offsets = [0, 64], sizes = [2, 32], strides = [1, 1]} : vector<2x128xf32> to vector<2x32xf32>
    %1174 = math.tanh %1173 : vector<2x32xf32>
    %1175 = vector.extract_strided_slice %1160 {offsets = [0, 96], sizes = [2, 32], strides = [1, 1]} : vector<2x128xf32> to vector<2x32xf32>
    %1176 = arith.negf %1175 : vector<2x32xf32>
    %1177 = math.exp %1176 : vector<2x32xf32>
    %cst_248 = arith.constant 1.000000e+00 : f32
    %1178 = vector.broadcast %cst_248 : f32 to vector<2x32xf32>
    %1179 = arith.addf %1178, %1177 : vector<2x32xf32>
    %1180 = arith.divf %1178, %1179 : vector<2x32xf32>
    %1181 = arith.mulf %1172, %1013 : vector<2x32xf32>
    %1182 = arith.mulf %1166, %1174 : vector<2x32xf32>
    %1183 = arith.addf %1181, %1182 : vector<2x32xf32>
    %cst_249 = arith.constant dense<0.000000e+00> : vector<2xf32>
    %1184 = vector.multi_reduction <add>, %1183, %cst_249 [1] : vector<2x32xf32> to vector<2xf32>
    %1185 = vector.shape_cast %1184 : vector<2xf32> to vector<2x1xf32>
    %cst_250 = arith.constant 3.200000e+01 : f32
    %1186 = vector.broadcast %cst_250 : f32 to vector<2x1xf32>
    %1187 = arith.divf %1185, %1186 : vector<2x1xf32>
    %1188 = vector.broadcast %1187 : vector<2x1xf32> to vector<2x32xf32>
    %1189 = arith.subf %1183, %1188 : vector<2x32xf32>
    %1190 = arith.mulf %1189, %1189 : vector<2x32xf32>
    %cst_251 = arith.constant dense<0.000000e+00> : vector<2xf32>
    %1191 = vector.multi_reduction <add>, %1190, %cst_251 [1] : vector<2x32xf32> to vector<2xf32>
    %1192 = vector.shape_cast %1191 : vector<2xf32> to vector<2x1xf32>
    %cst_252 = arith.constant 3.200000e+01 : f32
    %1193 = vector.broadcast %cst_252 : f32 to vector<2x1xf32>
    %1194 = arith.divf %1192, %1193 : vector<2x1xf32>
    %1195 = vector.broadcast %1187 : vector<2x1xf32> to vector<2x32xf32>
    %1196 = arith.subf %1183, %1195 : vector<2x32xf32>
    %cst_253 = arith.constant 9.99999974E-6 : f32
    %1197 = vector.broadcast %cst_253 : f32 to vector<2x1xf32>
    %1198 = arith.addf %1194, %1197 : vector<2x1xf32>
    %1199 = math.rsqrt %1198 : vector<2x1xf32>
    %1200 = vector.broadcast %1199 : vector<2x1xf32> to vector<2x32xf32>
    %1201 = arith.mulf %1196, %1200 : vector<2x32xf32>
    %1202 = vector.broadcast %42 : vector<1x32xf32> to vector<2x32xf32>
    %1203 = arith.mulf %1201, %1202 : vector<2x32xf32>
    %1204 = vector.broadcast %44 : vector<1x32xf32> to vector<2x32xf32>
    %1205 = arith.addf %1203, %1204 : vector<2x32xf32>
    %1206 = math.tanh %1205 : vector<2x32xf32>
    %1207 = arith.mulf %1180, %1206 : vector<2x32xf32>
    %1208 = vector.extract_strided_slice %28 {offsets = [12, 0], sizes = [2, 32], strides = [1, 1]} : vector<16x32xf32> to vector<2x32xf32>
    %1209 = vector.extract_strided_slice %28 {offsets = [2, 0], sizes = [2, 32], strides = [1, 1]} : vector<16x32xf32> to vector<2x32xf32>
    %1210 = tpu.concatenate %1208, %1159, %1209, %1207 in 1 : vector<2x32xf32>, vector<2x32xf32>, vector<2x32xf32>, vector<2x32xf32> -> vector<2x128xf32>
    %cst_254 = arith.constant dense<0.000000e+00> : vector<2x512xf32>
    %1211 = tpu.matmul %1210, %45, %cst_254 {dimension_numbers = #tpu.dot_dimension_numbers<[1], [0], [0], [1], [0, 0, 1, 1], [], []>} : vector<2x128xf32>, vector<128x512xf32>, vector<2x512xf32> -> vector<2x512xf32>
    %1212 = vector.extract_strided_slice %1211 {offsets = [0, 0], sizes = [2, 128], strides = [1, 1]} : vector<2x512xf32> to vector<2x128xf32>
    %cst_255 = arith.constant dense<0.000000e+00> : vector<2xf32>
    %1213 = vector.multi_reduction <add>, %1212, %cst_255 [1] : vector<2x128xf32> to vector<2xf32>
    %1214 = vector.shape_cast %1213 : vector<2xf32> to vector<2x1xf32>
    %cst_256 = arith.constant 1.280000e+02 : f32
    %1215 = vector.broadcast %cst_256 : f32 to vector<2x1xf32>
    %1216 = arith.divf %1214, %1215 : vector<2x1xf32>
    %1217 = vector.broadcast %1216 : vector<2x1xf32> to vector<2x128xf32>
    %1218 = arith.subf %1212, %1217 : vector<2x128xf32>
    %1219 = arith.mulf %1218, %1218 : vector<2x128xf32>
    %cst_257 = arith.constant dense<0.000000e+00> : vector<2xf32>
    %1220 = vector.multi_reduction <add>, %1219, %cst_257 [1] : vector<2x128xf32> to vector<2xf32>
    %1221 = vector.shape_cast %1220 : vector<2xf32> to vector<2x1xf32>
    %cst_258 = arith.constant 1.280000e+02 : f32
    %1222 = vector.broadcast %cst_258 : f32 to vector<2x1xf32>
    %1223 = arith.divf %1221, %1222 : vector<2x1xf32>
    %1224 = vector.broadcast %1216 : vector<2x1xf32> to vector<2x128xf32>
    %1225 = arith.subf %1212, %1224 : vector<2x128xf32>
    %cst_259 = arith.constant 9.99999974E-6 : f32
    %1226 = vector.broadcast %cst_259 : f32 to vector<2x1xf32>
    %1227 = arith.addf %1223, %1226 : vector<2x1xf32>
    %1228 = math.rsqrt %1227 : vector<2x1xf32>
    %1229 = vector.broadcast %1228 : vector<2x1xf32> to vector<2x128xf32>
    %1230 = arith.mulf %1225, %1229 : vector<2x128xf32>
    %1231 = vector.broadcast %33 : vector<1x128xf32> to vector<2x128xf32>
    %1232 = arith.mulf %1230, %1231 : vector<2x128xf32>
    %1233 = vector.broadcast %37 : vector<1x128xf32> to vector<2x128xf32>
    %1234 = arith.addf %1232, %1233 : vector<2x128xf32>
    %1235 = vector.extract_strided_slice %1211 {offsets = [0, 128], sizes = [2, 128], strides = [1, 1]} : vector<2x512xf32> to vector<2x128xf32>
    %cst_260 = arith.constant dense<0.000000e+00> : vector<2xf32>
    %1236 = vector.multi_reduction <add>, %1235, %cst_260 [1] : vector<2x128xf32> to vector<2xf32>
    %1237 = vector.shape_cast %1236 : vector<2xf32> to vector<2x1xf32>
    %cst_261 = arith.constant 1.280000e+02 : f32
    %1238 = vector.broadcast %cst_261 : f32 to vector<2x1xf32>
    %1239 = arith.divf %1237, %1238 : vector<2x1xf32>
    %1240 = vector.broadcast %1239 : vector<2x1xf32> to vector<2x128xf32>
    %1241 = arith.subf %1235, %1240 : vector<2x128xf32>
    %1242 = arith.mulf %1241, %1241 : vector<2x128xf32>
    %cst_262 = arith.constant dense<0.000000e+00> : vector<2xf32>
    %1243 = vector.multi_reduction <add>, %1242, %cst_262 [1] : vector<2x128xf32> to vector<2xf32>
    %1244 = vector.shape_cast %1243 : vector<2xf32> to vector<2x1xf32>
    %cst_263 = arith.constant 1.280000e+02 : f32
    %1245 = vector.broadcast %cst_263 : f32 to vector<2x1xf32>
    %1246 = arith.divf %1244, %1245 : vector<2x1xf32>
    %1247 = vector.broadcast %1239 : vector<2x1xf32> to vector<2x128xf32>
    %1248 = arith.subf %1235, %1247 : vector<2x128xf32>
    %cst_264 = arith.constant 9.99999974E-6 : f32
    %1249 = vector.broadcast %cst_264 : f32 to vector<2x1xf32>
    %1250 = arith.addf %1246, %1249 : vector<2x1xf32>
    %1251 = math.rsqrt %1250 : vector<2x1xf32>
    %1252 = vector.broadcast %1251 : vector<2x1xf32> to vector<2x128xf32>
    %1253 = arith.mulf %1248, %1252 : vector<2x128xf32>
    %1254 = vector.broadcast %34 : vector<1x128xf32> to vector<2x128xf32>
    %1255 = arith.mulf %1253, %1254 : vector<2x128xf32>
    %1256 = vector.broadcast %38 : vector<1x128xf32> to vector<2x128xf32>
    %1257 = arith.addf %1255, %1256 : vector<2x128xf32>
    %1258 = vector.extract_strided_slice %1211 {offsets = [0, 256], sizes = [2, 128], strides = [1, 1]} : vector<2x512xf32> to vector<2x128xf32>
    %cst_265 = arith.constant dense<0.000000e+00> : vector<2xf32>
    %1259 = vector.multi_reduction <add>, %1258, %cst_265 [1] : vector<2x128xf32> to vector<2xf32>
    %1260 = vector.shape_cast %1259 : vector<2xf32> to vector<2x1xf32>
    %cst_266 = arith.constant 1.280000e+02 : f32
    %1261 = vector.broadcast %cst_266 : f32 to vector<2x1xf32>
    %1262 = arith.divf %1260, %1261 : vector<2x1xf32>
    %1263 = vector.broadcast %1262 : vector<2x1xf32> to vector<2x128xf32>
    %1264 = arith.subf %1258, %1263 : vector<2x128xf32>
    %1265 = arith.mulf %1264, %1264 : vector<2x128xf32>
    %cst_267 = arith.constant dense<0.000000e+00> : vector<2xf32>
    %1266 = vector.multi_reduction <add>, %1265, %cst_267 [1] : vector<2x128xf32> to vector<2xf32>
    %1267 = vector.shape_cast %1266 : vector<2xf32> to vector<2x1xf32>
    %cst_268 = arith.constant 1.280000e+02 : f32
    %1268 = vector.broadcast %cst_268 : f32 to vector<2x1xf32>
    %1269 = arith.divf %1267, %1268 : vector<2x1xf32>
    %1270 = vector.broadcast %1262 : vector<2x1xf32> to vector<2x128xf32>
    %1271 = arith.subf %1258, %1270 : vector<2x128xf32>
    %cst_269 = arith.constant 9.99999974E-6 : f32
    %1272 = vector.broadcast %cst_269 : f32 to vector<2x1xf32>
    %1273 = arith.addf %1269, %1272 : vector<2x1xf32>
    %1274 = math.rsqrt %1273 : vector<2x1xf32>
    %1275 = vector.broadcast %1274 : vector<2x1xf32> to vector<2x128xf32>
    %1276 = arith.mulf %1271, %1275 : vector<2x128xf32>
    %1277 = vector.broadcast %35 : vector<1x128xf32> to vector<2x128xf32>
    %1278 = arith.mulf %1276, %1277 : vector<2x128xf32>
    %1279 = vector.broadcast %39 : vector<1x128xf32> to vector<2x128xf32>
    %1280 = arith.addf %1278, %1279 : vector<2x128xf32>
    %1281 = vector.extract_strided_slice %1211 {offsets = [0, 384], sizes = [2, 128], strides = [1, 1]} : vector<2x512xf32> to vector<2x128xf32>
    %cst_270 = arith.constant dense<0.000000e+00> : vector<2xf32>
    %1282 = vector.multi_reduction <add>, %1281, %cst_270 [1] : vector<2x128xf32> to vector<2xf32>
    %1283 = vector.shape_cast %1282 : vector<2xf32> to vector<2x1xf32>
    %cst_271 = arith.constant 1.280000e+02 : f32
    %1284 = vector.broadcast %cst_271 : f32 to vector<2x1xf32>
    %1285 = arith.divf %1283, %1284 : vector<2x1xf32>
    %1286 = vector.broadcast %1285 : vector<2x1xf32> to vector<2x128xf32>
    %1287 = arith.subf %1281, %1286 : vector<2x128xf32>
    %1288 = arith.mulf %1287, %1287 : vector<2x128xf32>
    %cst_272 = arith.constant dense<0.000000e+00> : vector<2xf32>
    %1289 = vector.multi_reduction <add>, %1288, %cst_272 [1] : vector<2x128xf32> to vector<2xf32>
    %1290 = vector.shape_cast %1289 : vector<2xf32> to vector<2x1xf32>
    %cst_273 = arith.constant 1.280000e+02 : f32
    %1291 = vector.broadcast %cst_273 : f32 to vector<2x1xf32>
    %1292 = arith.divf %1290, %1291 : vector<2x1xf32>
    %1293 = vector.broadcast %1285 : vector<2x1xf32> to vector<2x128xf32>
    %1294 = arith.subf %1281, %1293 : vector<2x128xf32>
    %cst_274 = arith.constant 9.99999974E-6 : f32
    %1295 = vector.broadcast %cst_274 : f32 to vector<2x1xf32>
    %1296 = arith.addf %1292, %1295 : vector<2x1xf32>
    %1297 = math.rsqrt %1296 : vector<2x1xf32>
    %1298 = vector.broadcast %1297 : vector<2x1xf32> to vector<2x128xf32>
    %1299 = arith.mulf %1294, %1298 : vector<2x128xf32>
    %1300 = vector.broadcast %36 : vector<1x128xf32> to vector<2x128xf32>
    %1301 = arith.mulf %1299, %1300 : vector<2x128xf32>
    %1302 = vector.broadcast %40 : vector<1x128xf32> to vector<2x128xf32>
    %1303 = arith.addf %1301, %1302 : vector<2x128xf32>
    %1304 = arith.addf %1234, %1257 : vector<2x128xf32>
    %1305 = vector.extract_strided_slice %1304 {offsets = [0, 0], sizes = [2, 32], strides = [1, 1]} : vector<2x128xf32> to vector<2x32xf32>
    %1306 = arith.negf %1305 : vector<2x32xf32>
    %1307 = math.exp %1306 : vector<2x32xf32>
    %cst_275 = arith.constant 1.000000e+00 : f32
    %1308 = vector.broadcast %cst_275 : f32 to vector<2x32xf32>
    %1309 = arith.addf %1308, %1307 : vector<2x32xf32>
    %1310 = arith.divf %1308, %1309 : vector<2x32xf32>
    %1311 = vector.extract_strided_slice %1304 {offsets = [0, 32], sizes = [2, 32], strides = [1, 1]} : vector<2x128xf32> to vector<2x32xf32>
    %1312 = arith.negf %1311 : vector<2x32xf32>
    %1313 = math.exp %1312 : vector<2x32xf32>
    %cst_276 = arith.constant 1.000000e+00 : f32
    %1314 = vector.broadcast %cst_276 : f32 to vector<2x32xf32>
    %1315 = arith.addf %1314, %1313 : vector<2x32xf32>
    %1316 = arith.divf %1314, %1315 : vector<2x32xf32>
    %1317 = vector.extract_strided_slice %1304 {offsets = [0, 64], sizes = [2, 32], strides = [1, 1]} : vector<2x128xf32> to vector<2x32xf32>
    %1318 = math.tanh %1317 : vector<2x32xf32>
    %1319 = vector.extract_strided_slice %1304 {offsets = [0, 96], sizes = [2, 32], strides = [1, 1]} : vector<2x128xf32> to vector<2x32xf32>
    %1320 = arith.negf %1319 : vector<2x32xf32>
    %1321 = math.exp %1320 : vector<2x32xf32>
    %cst_277 = arith.constant 1.000000e+00 : f32
    %1322 = vector.broadcast %cst_277 : f32 to vector<2x32xf32>
    %1323 = arith.addf %1322, %1321 : vector<2x32xf32>
    %1324 = arith.divf %1322, %1323 : vector<2x32xf32>
    %1325 = arith.mulf %1316, %1157 : vector<2x32xf32>
    %1326 = arith.mulf %1310, %1318 : vector<2x32xf32>
    %1327 = arith.addf %1325, %1326 : vector<2x32xf32>
    %cst_278 = arith.constant dense<0.000000e+00> : vector<2xf32>
    %1328 = vector.multi_reduction <add>, %1327, %cst_278 [1] : vector<2x32xf32> to vector<2xf32>
    %1329 = vector.shape_cast %1328 : vector<2xf32> to vector<2x1xf32>
    %cst_279 = arith.constant 3.200000e+01 : f32
    %1330 = vector.broadcast %cst_279 : f32 to vector<2x1xf32>
    %1331 = arith.divf %1329, %1330 : vector<2x1xf32>
    %1332 = vector.broadcast %1331 : vector<2x1xf32> to vector<2x32xf32>
    %1333 = arith.subf %1327, %1332 : vector<2x32xf32>
    %1334 = arith.mulf %1333, %1333 : vector<2x32xf32>
    %cst_280 = arith.constant dense<0.000000e+00> : vector<2xf32>
    %1335 = vector.multi_reduction <add>, %1334, %cst_280 [1] : vector<2x32xf32> to vector<2xf32>
    %1336 = vector.shape_cast %1335 : vector<2xf32> to vector<2x1xf32>
    %cst_281 = arith.constant 3.200000e+01 : f32
    %1337 = vector.broadcast %cst_281 : f32 to vector<2x1xf32>
    %1338 = arith.divf %1336, %1337 : vector<2x1xf32>
    %1339 = vector.broadcast %1331 : vector<2x1xf32> to vector<2x32xf32>
    %1340 = arith.subf %1327, %1339 : vector<2x32xf32>
    %cst_282 = arith.constant 9.99999974E-6 : f32
    %1341 = vector.broadcast %cst_282 : f32 to vector<2x1xf32>
    %1342 = arith.addf %1338, %1341 : vector<2x1xf32>
    %1343 = math.rsqrt %1342 : vector<2x1xf32>
    %1344 = vector.broadcast %1343 : vector<2x1xf32> to vector<2x32xf32>
    %1345 = arith.mulf %1340, %1344 : vector<2x32xf32>
    %1346 = vector.broadcast %41 : vector<1x32xf32> to vector<2x32xf32>
    %1347 = arith.mulf %1345, %1346 : vector<2x32xf32>
    %1348 = vector.broadcast %43 : vector<1x32xf32> to vector<2x32xf32>
    %1349 = arith.addf %1347, %1348 : vector<2x32xf32>
    %1350 = math.tanh %1349 : vector<2x32xf32>
    %1351 = arith.mulf %1324, %1350 : vector<2x32xf32>
    %1352 = arith.addf %1280, %1303 : vector<2x128xf32>
    %1353 = vector.extract_strided_slice %1352 {offsets = [0, 0], sizes = [2, 32], strides = [1, 1]} : vector<2x128xf32> to vector<2x32xf32>
    %1354 = arith.negf %1353 : vector<2x32xf32>
    %1355 = math.exp %1354 : vector<2x32xf32>
    %cst_283 = arith.constant 1.000000e+00 : f32
    %1356 = vector.broadcast %cst_283 : f32 to vector<2x32xf32>
    %1357 = arith.addf %1356, %1355 : vector<2x32xf32>
    %1358 = arith.divf %1356, %1357 : vector<2x32xf32>
    %1359 = vector.extract_strided_slice %1352 {offsets = [0, 32], sizes = [2, 32], strides = [1, 1]} : vector<2x128xf32> to vector<2x32xf32>
    %1360 = arith.negf %1359 : vector<2x32xf32>
    %1361 = math.exp %1360 : vector<2x32xf32>
    %cst_284 = arith.constant 1.000000e+00 : f32
    %1362 = vector.broadcast %cst_284 : f32 to vector<2x32xf32>
    %1363 = arith.addf %1362, %1361 : vector<2x32xf32>
    %1364 = arith.divf %1362, %1363 : vector<2x32xf32>
    %1365 = vector.extract_strided_slice %1352 {offsets = [0, 64], sizes = [2, 32], strides = [1, 1]} : vector<2x128xf32> to vector<2x32xf32>
    %1366 = math.tanh %1365 : vector<2x32xf32>
    %1367 = vector.extract_strided_slice %1352 {offsets = [0, 96], sizes = [2, 32], strides = [1, 1]} : vector<2x128xf32> to vector<2x32xf32>
    %1368 = arith.negf %1367 : vector<2x32xf32>
    %1369 = math.exp %1368 : vector<2x32xf32>
    %cst_285 = arith.constant 1.000000e+00 : f32
    %1370 = vector.broadcast %cst_285 : f32 to vector<2x32xf32>
    %1371 = arith.addf %1370, %1369 : vector<2x32xf32>
    %1372 = arith.divf %1370, %1371 : vector<2x32xf32>
    %1373 = arith.mulf %1364, %1205 : vector<2x32xf32>
    %1374 = arith.mulf %1358, %1366 : vector<2x32xf32>
    %1375 = arith.addf %1373, %1374 : vector<2x32xf32>
    %cst_286 = arith.constant dense<0.000000e+00> : vector<2xf32>
    %1376 = vector.multi_reduction <add>, %1375, %cst_286 [1] : vector<2x32xf32> to vector<2xf32>
    %1377 = vector.shape_cast %1376 : vector<2xf32> to vector<2x1xf32>
    %cst_287 = arith.constant 3.200000e+01 : f32
    %1378 = vector.broadcast %cst_287 : f32 to vector<2x1xf32>
    %1379 = arith.divf %1377, %1378 : vector<2x1xf32>
    %1380 = vector.broadcast %1379 : vector<2x1xf32> to vector<2x32xf32>
    %1381 = arith.subf %1375, %1380 : vector<2x32xf32>
    %1382 = arith.mulf %1381, %1381 : vector<2x32xf32>
    %cst_288 = arith.constant dense<0.000000e+00> : vector<2xf32>
    %1383 = vector.multi_reduction <add>, %1382, %cst_288 [1] : vector<2x32xf32> to vector<2xf32>
    %1384 = vector.shape_cast %1383 : vector<2xf32> to vector<2x1xf32>
    %cst_289 = arith.constant 3.200000e+01 : f32
    %1385 = vector.broadcast %cst_289 : f32 to vector<2x1xf32>
    %1386 = arith.divf %1384, %1385 : vector<2x1xf32>
    %1387 = vector.broadcast %1379 : vector<2x1xf32> to vector<2x32xf32>
    %1388 = arith.subf %1375, %1387 : vector<2x32xf32>
    %cst_290 = arith.constant 9.99999974E-6 : f32
    %1389 = vector.broadcast %cst_290 : f32 to vector<2x1xf32>
    %1390 = arith.addf %1386, %1389 : vector<2x1xf32>
    %1391 = math.rsqrt %1390 : vector<2x1xf32>
    %1392 = vector.broadcast %1391 : vector<2x1xf32> to vector<2x32xf32>
    %1393 = arith.mulf %1388, %1392 : vector<2x32xf32>
    %1394 = vector.broadcast %42 : vector<1x32xf32> to vector<2x32xf32>
    %1395 = arith.mulf %1393, %1394 : vector<2x32xf32>
    %1396 = vector.broadcast %44 : vector<1x32xf32> to vector<2x32xf32>
    %1397 = arith.addf %1395, %1396 : vector<2x32xf32>
    %1398 = math.tanh %1397 : vector<2x32xf32>
    %1399 = arith.mulf %1372, %1398 : vector<2x32xf32>
    %1400 = vector.extract_strided_slice %28 {offsets = [14, 0], sizes = [2, 32], strides = [1, 1]} : vector<16x32xf32> to vector<2x32xf32>
    %1401 = vector.extract_strided_slice %28 {offsets = [0, 0], sizes = [2, 32], strides = [1, 1]} : vector<16x32xf32> to vector<2x32xf32>
    %1402 = tpu.concatenate %1400, %1351, %1401, %1399 in 1 : vector<2x32xf32>, vector<2x32xf32>, vector<2x32xf32>, vector<2x32xf32> -> vector<2x128xf32>
    %cst_291 = arith.constant dense<0.000000e+00> : vector<2x512xf32>
    %1403 = tpu.matmul %1402, %45, %cst_291 {dimension_numbers = #tpu.dot_dimension_numbers<[1], [0], [0], [1], [0, 0, 1, 1], [], []>} : vector<2x128xf32>, vector<128x512xf32>, vector<2x512xf32> -> vector<2x512xf32>
    %1404 = vector.extract_strided_slice %1403 {offsets = [0, 0], sizes = [2, 128], strides = [1, 1]} : vector<2x512xf32> to vector<2x128xf32>
    %cst_292 = arith.constant dense<0.000000e+00> : vector<2xf32>
    %1405 = vector.multi_reduction <add>, %1404, %cst_292 [1] : vector<2x128xf32> to vector<2xf32>
    %1406 = vector.shape_cast %1405 : vector<2xf32> to vector<2x1xf32>
    %cst_293 = arith.constant 1.280000e+02 : f32
    %1407 = vector.broadcast %cst_293 : f32 to vector<2x1xf32>
    %1408 = arith.divf %1406, %1407 : vector<2x1xf32>
    %1409 = vector.broadcast %1408 : vector<2x1xf32> to vector<2x128xf32>
    %1410 = arith.subf %1404, %1409 : vector<2x128xf32>
    %1411 = arith.mulf %1410, %1410 : vector<2x128xf32>
    %cst_294 = arith.constant dense<0.000000e+00> : vector<2xf32>
    %1412 = vector.multi_reduction <add>, %1411, %cst_294 [1] : vector<2x128xf32> to vector<2xf32>
    %1413 = vector.shape_cast %1412 : vector<2xf32> to vector<2x1xf32>
    %cst_295 = arith.constant 1.280000e+02 : f32
    %1414 = vector.broadcast %cst_295 : f32 to vector<2x1xf32>
    %1415 = arith.divf %1413, %1414 : vector<2x1xf32>
    %1416 = vector.broadcast %1408 : vector<2x1xf32> to vector<2x128xf32>
    %1417 = arith.subf %1404, %1416 : vector<2x128xf32>
    %cst_296 = arith.constant 9.99999974E-6 : f32
    %1418 = vector.broadcast %cst_296 : f32 to vector<2x1xf32>
    %1419 = arith.addf %1415, %1418 : vector<2x1xf32>
    %1420 = math.rsqrt %1419 : vector<2x1xf32>
    %1421 = vector.broadcast %1420 : vector<2x1xf32> to vector<2x128xf32>
    %1422 = arith.mulf %1417, %1421 : vector<2x128xf32>
    %1423 = vector.broadcast %33 : vector<1x128xf32> to vector<2x128xf32>
    %1424 = arith.mulf %1422, %1423 : vector<2x128xf32>
    %1425 = vector.broadcast %37 : vector<1x128xf32> to vector<2x128xf32>
    %1426 = arith.addf %1424, %1425 : vector<2x128xf32>
    %1427 = vector.extract_strided_slice %1403 {offsets = [0, 128], sizes = [2, 128], strides = [1, 1]} : vector<2x512xf32> to vector<2x128xf32>
    %cst_297 = arith.constant dense<0.000000e+00> : vector<2xf32>
    %1428 = vector.multi_reduction <add>, %1427, %cst_297 [1] : vector<2x128xf32> to vector<2xf32>
    %1429 = vector.shape_cast %1428 : vector<2xf32> to vector<2x1xf32>
    %cst_298 = arith.constant 1.280000e+02 : f32
    %1430 = vector.broadcast %cst_298 : f32 to vector<2x1xf32>
    %1431 = arith.divf %1429, %1430 : vector<2x1xf32>
    %1432 = vector.broadcast %1431 : vector<2x1xf32> to vector<2x128xf32>
    %1433 = arith.subf %1427, %1432 : vector<2x128xf32>
    %1434 = arith.mulf %1433, %1433 : vector<2x128xf32>
    %cst_299 = arith.constant dense<0.000000e+00> : vector<2xf32>
    %1435 = vector.multi_reduction <add>, %1434, %cst_299 [1] : vector<2x128xf32> to vector<2xf32>
    %1436 = vector.shape_cast %1435 : vector<2xf32> to vector<2x1xf32>
    %cst_300 = arith.constant 1.280000e+02 : f32
    %1437 = vector.broadcast %cst_300 : f32 to vector<2x1xf32>
    %1438 = arith.divf %1436, %1437 : vector<2x1xf32>
    %1439 = vector.broadcast %1431 : vector<2x1xf32> to vector<2x128xf32>
    %1440 = arith.subf %1427, %1439 : vector<2x128xf32>
    %cst_301 = arith.constant 9.99999974E-6 : f32
    %1441 = vector.broadcast %cst_301 : f32 to vector<2x1xf32>
    %1442 = arith.addf %1438, %1441 : vector<2x1xf32>
    %1443 = math.rsqrt %1442 : vector<2x1xf32>
    %1444 = vector.broadcast %1443 : vector<2x1xf32> to vector<2x128xf32>
    %1445 = arith.mulf %1440, %1444 : vector<2x128xf32>
    %1446 = vector.broadcast %34 : vector<1x128xf32> to vector<2x128xf32>
    %1447 = arith.mulf %1445, %1446 : vector<2x128xf32>
    %1448 = vector.broadcast %38 : vector<1x128xf32> to vector<2x128xf32>
    %1449 = arith.addf %1447, %1448 : vector<2x128xf32>
    %1450 = vector.extract_strided_slice %1403 {offsets = [0, 256], sizes = [2, 128], strides = [1, 1]} : vector<2x512xf32> to vector<2x128xf32>
    %cst_302 = arith.constant dense<0.000000e+00> : vector<2xf32>
    %1451 = vector.multi_reduction <add>, %1450, %cst_302 [1] : vector<2x128xf32> to vector<2xf32>
    %1452 = vector.shape_cast %1451 : vector<2xf32> to vector<2x1xf32>
    %cst_303 = arith.constant 1.280000e+02 : f32
    %1453 = vector.broadcast %cst_303 : f32 to vector<2x1xf32>
    %1454 = arith.divf %1452, %1453 : vector<2x1xf32>
    %1455 = vector.broadcast %1454 : vector<2x1xf32> to vector<2x128xf32>
    %1456 = arith.subf %1450, %1455 : vector<2x128xf32>
    %1457 = arith.mulf %1456, %1456 : vector<2x128xf32>
    %cst_304 = arith.constant dense<0.000000e+00> : vector<2xf32>
    %1458 = vector.multi_reduction <add>, %1457, %cst_304 [1] : vector<2x128xf32> to vector<2xf32>
    %1459 = vector.shape_cast %1458 : vector<2xf32> to vector<2x1xf32>
    %cst_305 = arith.constant 1.280000e+02 : f32
    %1460 = vector.broadcast %cst_305 : f32 to vector<2x1xf32>
    %1461 = arith.divf %1459, %1460 : vector<2x1xf32>
    %1462 = vector.broadcast %1454 : vector<2x1xf32> to vector<2x128xf32>
    %1463 = arith.subf %1450, %1462 : vector<2x128xf32>
    %cst_306 = arith.constant 9.99999974E-6 : f32
    %1464 = vector.broadcast %cst_306 : f32 to vector<2x1xf32>
    %1465 = arith.addf %1461, %1464 : vector<2x1xf32>
    %1466 = math.rsqrt %1465 : vector<2x1xf32>
    %1467 = vector.broadcast %1466 : vector<2x1xf32> to vector<2x128xf32>
    %1468 = arith.mulf %1463, %1467 : vector<2x128xf32>
    %1469 = vector.broadcast %35 : vector<1x128xf32> to vector<2x128xf32>
    %1470 = arith.mulf %1468, %1469 : vector<2x128xf32>
    %1471 = vector.broadcast %39 : vector<1x128xf32> to vector<2x128xf32>
    %1472 = arith.addf %1470, %1471 : vector<2x128xf32>
    %1473 = vector.extract_strided_slice %1403 {offsets = [0, 384], sizes = [2, 128], strides = [1, 1]} : vector<2x512xf32> to vector<2x128xf32>
    %cst_307 = arith.constant dense<0.000000e+00> : vector<2xf32>
    %1474 = vector.multi_reduction <add>, %1473, %cst_307 [1] : vector<2x128xf32> to vector<2xf32>
    %1475 = vector.shape_cast %1474 : vector<2xf32> to vector<2x1xf32>
    %cst_308 = arith.constant 1.280000e+02 : f32
    %1476 = vector.broadcast %cst_308 : f32 to vector<2x1xf32>
    %1477 = arith.divf %1475, %1476 : vector<2x1xf32>
    %1478 = vector.broadcast %1477 : vector<2x1xf32> to vector<2x128xf32>
    %1479 = arith.subf %1473, %1478 : vector<2x128xf32>
    %1480 = arith.mulf %1479, %1479 : vector<2x128xf32>
    %cst_309 = arith.constant dense<0.000000e+00> : vector<2xf32>
    %1481 = vector.multi_reduction <add>, %1480, %cst_309 [1] : vector<2x128xf32> to vector<2xf32>
    %1482 = vector.shape_cast %1481 : vector<2xf32> to vector<2x1xf32>
    %cst_310 = arith.constant 1.280000e+02 : f32
    %1483 = vector.broadcast %cst_310 : f32 to vector<2x1xf32>
    %1484 = arith.divf %1482, %1483 : vector<2x1xf32>
    %1485 = vector.broadcast %1477 : vector<2x1xf32> to vector<2x128xf32>
    %1486 = arith.subf %1473, %1485 : vector<2x128xf32>
    %cst_311 = arith.constant 9.99999974E-6 : f32
    %1487 = vector.broadcast %cst_311 : f32 to vector<2x1xf32>
    %1488 = arith.addf %1484, %1487 : vector<2x1xf32>
    %1489 = math.rsqrt %1488 : vector<2x1xf32>
    %1490 = vector.broadcast %1489 : vector<2x1xf32> to vector<2x128xf32>
    %1491 = arith.mulf %1486, %1490 : vector<2x128xf32>
    %1492 = vector.broadcast %36 : vector<1x128xf32> to vector<2x128xf32>
    %1493 = arith.mulf %1491, %1492 : vector<2x128xf32>
    %1494 = vector.broadcast %40 : vector<1x128xf32> to vector<2x128xf32>
    %1495 = arith.addf %1493, %1494 : vector<2x128xf32>
    %1496 = arith.addf %1426, %1449 : vector<2x128xf32>
    %1497 = vector.extract_strided_slice %1496 {offsets = [0, 0], sizes = [2, 32], strides = [1, 1]} : vector<2x128xf32> to vector<2x32xf32>
    %1498 = arith.negf %1497 : vector<2x32xf32>
    %1499 = math.exp %1498 : vector<2x32xf32>
    %cst_312 = arith.constant 1.000000e+00 : f32
    %1500 = vector.broadcast %cst_312 : f32 to vector<2x32xf32>
    %1501 = arith.addf %1500, %1499 : vector<2x32xf32>
    %1502 = arith.divf %1500, %1501 : vector<2x32xf32>
    %1503 = vector.extract_strided_slice %1496 {offsets = [0, 32], sizes = [2, 32], strides = [1, 1]} : vector<2x128xf32> to vector<2x32xf32>
    %1504 = arith.negf %1503 : vector<2x32xf32>
    %1505 = math.exp %1504 : vector<2x32xf32>
    %cst_313 = arith.constant 1.000000e+00 : f32
    %1506 = vector.broadcast %cst_313 : f32 to vector<2x32xf32>
    %1507 = arith.addf %1506, %1505 : vector<2x32xf32>
    %1508 = arith.divf %1506, %1507 : vector<2x32xf32>
    %1509 = vector.extract_strided_slice %1496 {offsets = [0, 64], sizes = [2, 32], strides = [1, 1]} : vector<2x128xf32> to vector<2x32xf32>
    %1510 = math.tanh %1509 : vector<2x32xf32>
    %1511 = arith.mulf %1508, %1349 : vector<2x32xf32>
    %1512 = arith.mulf %1502, %1510 : vector<2x32xf32>
    %1513 = arith.addf %1511, %1512 : vector<2x32xf32>
    %cst_314 = arith.constant dense<0.000000e+00> : vector<2xf32>
    %1514 = vector.multi_reduction <add>, %1513, %cst_314 [1] : vector<2x32xf32> to vector<2xf32>
    %1515 = vector.shape_cast %1514 : vector<2xf32> to vector<2x1xf32>
    %cst_315 = arith.constant 3.200000e+01 : f32
    %1516 = vector.broadcast %cst_315 : f32 to vector<2x1xf32>
    %1517 = arith.divf %1515, %1516 : vector<2x1xf32>
    %1518 = vector.broadcast %1517 : vector<2x1xf32> to vector<2x32xf32>
    %1519 = arith.subf %1513, %1518 : vector<2x32xf32>
    %1520 = arith.mulf %1519, %1519 : vector<2x32xf32>
    %cst_316 = arith.constant dense<0.000000e+00> : vector<2xf32>
    %1521 = vector.multi_reduction <add>, %1520, %cst_316 [1] : vector<2x32xf32> to vector<2xf32>
    %1522 = vector.shape_cast %1521 : vector<2xf32> to vector<2x1xf32>
    %cst_317 = arith.constant 3.200000e+01 : f32
    %1523 = vector.broadcast %cst_317 : f32 to vector<2x1xf32>
    %1524 = arith.divf %1522, %1523 : vector<2x1xf32>
    %1525 = vector.broadcast %1517 : vector<2x1xf32> to vector<2x32xf32>
    %1526 = arith.subf %1513, %1525 : vector<2x32xf32>
    %cst_318 = arith.constant 9.99999974E-6 : f32
    %1527 = vector.broadcast %cst_318 : f32 to vector<2x1xf32>
    %1528 = arith.addf %1524, %1527 : vector<2x1xf32>
    %1529 = math.rsqrt %1528 : vector<2x1xf32>
    %1530 = vector.broadcast %1529 : vector<2x1xf32> to vector<2x32xf32>
    %1531 = arith.mulf %1526, %1530 : vector<2x32xf32>
    %1532 = vector.broadcast %41 : vector<1x32xf32> to vector<2x32xf32>
    %1533 = arith.mulf %1531, %1532 : vector<2x32xf32>
    %1534 = vector.broadcast %43 : vector<1x32xf32> to vector<2x32xf32>
    %1535 = arith.addf %1533, %1534 : vector<2x32xf32>
    %1536 = arith.addf %1472, %1495 : vector<2x128xf32>
    %1537 = vector.extract_strided_slice %1536 {offsets = [0, 0], sizes = [2, 32], strides = [1, 1]} : vector<2x128xf32> to vector<2x32xf32>
    %1538 = arith.negf %1537 : vector<2x32xf32>
    %1539 = math.exp %1538 : vector<2x32xf32>
    %cst_319 = arith.constant 1.000000e+00 : f32
    %1540 = vector.broadcast %cst_319 : f32 to vector<2x32xf32>
    %1541 = arith.addf %1540, %1539 : vector<2x32xf32>
    %1542 = arith.divf %1540, %1541 : vector<2x32xf32>
    %1543 = vector.extract_strided_slice %1536 {offsets = [0, 32], sizes = [2, 32], strides = [1, 1]} : vector<2x128xf32> to vector<2x32xf32>
    %1544 = arith.negf %1543 : vector<2x32xf32>
    %1545 = math.exp %1544 : vector<2x32xf32>
    %cst_320 = arith.constant 1.000000e+00 : f32
    %1546 = vector.broadcast %cst_320 : f32 to vector<2x32xf32>
    %1547 = arith.addf %1546, %1545 : vector<2x32xf32>
    %1548 = arith.divf %1546, %1547 : vector<2x32xf32>
    %1549 = vector.extract_strided_slice %1536 {offsets = [0, 64], sizes = [2, 32], strides = [1, 1]} : vector<2x128xf32> to vector<2x32xf32>
    %1550 = math.tanh %1549 : vector<2x32xf32>
    %1551 = arith.mulf %1548, %1397 : vector<2x32xf32>
    %1552 = arith.mulf %1542, %1550 : vector<2x32xf32>
    %1553 = arith.addf %1551, %1552 : vector<2x32xf32>
    %cst_321 = arith.constant dense<0.000000e+00> : vector<2xf32>
    %1554 = vector.multi_reduction <add>, %1553, %cst_321 [1] : vector<2x32xf32> to vector<2xf32>
    %1555 = vector.shape_cast %1554 : vector<2xf32> to vector<2x1xf32>
    %cst_322 = arith.constant 3.200000e+01 : f32
    %1556 = vector.broadcast %cst_322 : f32 to vector<2x1xf32>
    %1557 = arith.divf %1555, %1556 : vector<2x1xf32>
    %1558 = vector.broadcast %1557 : vector<2x1xf32> to vector<2x32xf32>
    %1559 = arith.subf %1553, %1558 : vector<2x32xf32>
    %1560 = arith.mulf %1559, %1559 : vector<2x32xf32>
    %cst_323 = arith.constant dense<0.000000e+00> : vector<2xf32>
    %1561 = vector.multi_reduction <add>, %1560, %cst_323 [1] : vector<2x32xf32> to vector<2xf32>
    %1562 = vector.shape_cast %1561 : vector<2xf32> to vector<2x1xf32>
    %cst_324 = arith.constant 3.200000e+01 : f32
    %1563 = vector.broadcast %cst_324 : f32 to vector<2x1xf32>
    %1564 = arith.divf %1562, %1563 : vector<2x1xf32>
    %1565 = vector.broadcast %1557 : vector<2x1xf32> to vector<2x32xf32>
    %1566 = arith.subf %1553, %1565 : vector<2x32xf32>
    %cst_325 = arith.constant 9.99999974E-6 : f32
    %1567 = vector.broadcast %cst_325 : f32 to vector<2x1xf32>
    %1568 = arith.addf %1564, %1567 : vector<2x1xf32>
    %1569 = math.rsqrt %1568 : vector<2x1xf32>
    %1570 = vector.broadcast %1569 : vector<2x1xf32> to vector<2x32xf32>
    %1571 = arith.mulf %1566, %1570 : vector<2x32xf32>
    %1572 = vector.broadcast %42 : vector<1x32xf32> to vector<2x32xf32>
    %1573 = arith.mulf %1571, %1572 : vector<2x32xf32>
    %1574 = vector.broadcast %44 : vector<1x32xf32> to vector<2x32xf32>
    %1575 = arith.addf %1573, %1574 : vector<2x32xf32>
    %1576 = tpu.concatenate %1535, %1575 in 1 : vector<2x32xf32>, vector<2x32xf32> -> vector<2x64xf32>
    %c0_326 = arith.constant 0 : index
    %c0_327 = arith.constant 0 : index
    %1577 = vector.load %arg14[%c0_326, %c0_327] : memref<64x32xf32, #tpu.memory_space<vmem>>, vector<64x32xf32>
    %cst_328 = arith.constant dense<0.000000e+00> : vector<2x32xf32>
    %1578 = tpu.matmul %1576, %1577, %cst_328 {dimension_numbers = #tpu.dot_dimension_numbers<[1], [0], [0], [1], [0, 0, 1, 1], [], []>} : vector<2x64xf32>, vector<64x32xf32>, vector<2x32xf32> -> vector<2x32xf32>
    %c0_329 = arith.constant 0 : index
    %c0_330 = arith.constant 0 : index
    %1579 = vector.load %arg15[%c0_329, %c0_330] : memref<1x32xf32, #tpu.memory_space<vmem>>, vector<1x32xf32>
    %1580 = vector.broadcast %1579 : vector<1x32xf32> to vector<2x32xf32>
    %1581 = arith.addf %1578, %1580 : vector<2x32xf32>
    %cst_331 = arith.constant 0.000000e+00 : f32
    %1582 = vector.broadcast %cst_331 : f32 to vector<2x32xf32>
    %1583 = arith.maximumf %1581, %1582 : vector<2x32xf32>
    %c0_332 = arith.constant 0 : index
    %c0_333 = arith.constant 0 : index
    %1584 = vector.load %arg16[%c0_332, %c0_333] : memref<2x32xf32, #tpu.memory_space<vmem>>, vector<2x32xf32>
    tpu.vector_store %arg16[%c0_332, %c0_333], %1583 {strides = array<i32>} : memref<2x32xf32, #tpu.memory_space<vmem>>, vector<2x32xf32>,
    return
  }
}

</mosaic_0001>

<llo_original>
// kernel: ms_embedding_norm_forward.1
$region0: #{ms_embedding_norm_forward.1}
  #allocation0 [shape = 'u32[]', space=smem, size = 0x4, offset = 0x4, fixed_abs, tag = 'smem constant byte address 0x4 - core index']
  #allocation1 [shape = 'u32[72,128]{1,0:T(1,128)}', space=vmem, size = 0x9000, scoped, tag = 'internal scratch']
  %s0 = inlined_call_operand.vmem [shape: f32[16,2], index: 0, kind: input, shape index: {}]
  %s1 = inlined_call_operand.vmem [shape: f32[1,32], index: 1, kind: input, shape index: {}]
  %s2 = inlined_call_operand.vmem [shape: f32[1,32], index: 2, kind: input, shape index: {}]
  %s3 = inlined_call_operand.vmem [shape: f32[1,32], index: 3, kind: input, shape index: {}]
  %s4 = inlined_call_operand.vmem [shape: f32[1,32], index: 4, kind: input, shape index: {}]
  %s5 = inlined_call_operand.vmem [shape: f32[64,32], index: 5, kind: input, shape index: {}]
  %s6 = inlined_call_operand.vmem [shape: f32[1,32], index: 6, kind: input, shape index: {}]
  %s7 = inlined_call_operand.hbm [shape: f32[128,512], index: 7, kind: input, shape index: {}]
  %s8 = inlined_call_operand.vmem [shape: f32[4,128], index: 8, kind: input, shape index: {}]
  %s9 = inlined_call_operand.vmem [shape: f32[4,128], index: 9, kind: input, shape index: {}]
  %s10 = inlined_call_operand.vmem [shape: f32[2,32], index: 10, kind: input, shape index: {}]
  %s11 = inlined_call_operand.vmem [shape: f32[2,32], index: 11, kind: input, shape index: {}]
  %s12 = inlined_call_operand.vmem [shape: f32[2,2,32], index: 12, kind: input, shape index: {}]
  %s13 = inlined_call_operand.vmem [shape: f32[2,2,32], index: 13, kind: input, shape index: {}]
  %s14 = inlined_call_operand.vmem [shape: f32[64,32], index: 14, kind: input, shape index: {}]
  %s15 = inlined_call_operand.vmem [shape: f32[1,32], index: 15, kind: input, shape index: {}]
  %s16 = inlined_call_operand.hbm [shape: f32[2,32], index: 16, kind: output, shape index: {}]
  %s17 = sld [smem:[#allocation0]]
  $region78: #{ms_embedding_norm_forward.1} parent=0
    _
  %s19 = ssub.s32 1, %s17
  %s20 = scalar_select 0, %s19, %s17
  $region1: #{ms_embedding_norm_forward.1} parent=0
    #allocation2 [shape = 'u8[262144]{0}', space=vmem, size = 0x40000, scoped, tag = 'input window, operand 7, single buffered']
    #allocation3 [shape = 's32[1]{0}', space=sflag, size = 0x4, scoped, tag = 'scoped memory for ms_embedding_norm_forward.1']
    #allocation4 [shape = 's32[1]{0}', space=sflag, size = 0x4, scoped, tag = 'scoped memory for ms_embedding_norm_forward.1']
    #allocation5 [shape = 'u8[1024]{0}', space=vmem, size = 0x400, scoped, tag = 'output window, operand 0, single buffered']
    %21 = vsyncpa [#allocation3], 0
    %22 = vsyncpa [#allocation4], 0
    // Predicated region
    $region2: #{ms_embedding_norm_forward.1} parent=1 // pred_check
      _
    $region3: #{ms_embedding_norm_forward.1} parent=1 // pred_check_branch
      %24 = sbr.rel (0) target = $region5
    $region4: #{ms_embedding_norm_forward.1} parent=1 // pred_region
      _
    $region5: #{ms_embedding_norm_forward.1} parent=1 // pred_fallthru
      _
    // Predicated region
    $region6: #{ms_embedding_norm_forward.1} parent=1 // pred_check
      _
    $region7: #{ms_embedding_norm_forward.1} parent=1 // pred_check_branch
      %26 = sbr.rel (0) target = $region9
    $region8: #{ms_embedding_norm_forward.1} parent=1 // pred_region
      _
    $region9: #{ms_embedding_norm_forward.1} parent=1 // pred_fallthru
      _
    // Predicated region
    $region10: #{ms_embedding_norm_forward.1} parent=1 // pred_check
      _
    $region11: #{ms_embedding_norm_forward.1} parent=1 // pred_check_branch
      %28 = sbr.rel (0) target = $region13
    $region12: #{ms_embedding_norm_forward.1} parent=1 // pred_region
      _
    $region13: #{ms_embedding_norm_forward.1} parent=1 // pred_fallthru
      _
    // Predicated region
    $region14: #{ms_embedding_norm_forward.1} parent=1 // pred_check
      _
    $region15: #{ms_embedding_norm_forward.1} parent=1 // pred_check_branch
      %30 = sbr.rel (0) target = $region17
    $region16: #{ms_embedding_norm_forward.1} parent=1 // pred_region
      _
    $region17: #{ms_embedding_norm_forward.1} parent=1 // pred_fallthru
      _
    // Predicated region
    $region18: #{ms_embedding_norm_forward.1} parent=1 // pred_check
      _
    $region19: #{ms_embedding_norm_forward.1} parent=1 // pred_check_branch
      %32 = sbr.rel (0) target = $region21
    $region20: #{ms_embedding_norm_forward.1} parent=1 // pred_region
      _
    $region21: #{ms_embedding_norm_forward.1} parent=1 // pred_fallthru
      _
    // Predicated region
    $region22: #{ms_embedding_norm_forward.1} parent=1 // pred_check
      _
    $region23: #{ms_embedding_norm_forward.1} parent=1 // pred_check_branch
      %34 = sbr.rel (0) target = $region25
    $region24: #{ms_embedding_norm_forward.1} parent=1 // pred_region
      _
    $region25: #{ms_embedding_norm_forward.1} parent=1 // pred_fallthru
      _
    // Predicated region
    $region26: #{ms_embedding_norm_forward.1} parent=1 // pred_check
      _
    $region27: #{ms_embedding_norm_forward.1} parent=1 // pred_check_branch
      %36 = sbr.rel (0) target = $region29
    $region28: #{ms_embedding_norm_forward.1} parent=1 // pred_region
      _
    $region29: #{ms_embedding_norm_forward.1} parent=1 // pred_fallthru
      _
    // Predicated region
    $region30: #{ms_embedding_norm_forward.1} parent=1 // pred_check
      _
    $region31: #{ms_embedding_norm_forward.1} parent=1 // pred_check_branch
      %38 = sbr.rel (0) target = $region33
    $region32: #{ms_embedding_norm_forward.1} parent=1 // pred_region
      %40 = vsyncadd [#allocation3], 0
      %s41 = sshll.u32 %s7, 4
      %s42 = int_to_ptr.hbm [resolvable:$true] %s41
      %s43 = sshll.u32 [#allocation2], 4
      %s44 = int_to_ptr.vmem [resolvable:$true] %s43
      %49 = dma.hbm_to_vmem [thread:$0]  %s42, 8192, %s44, [#allocation3], 512, 512, 32
    $region33: #{ms_embedding_norm_forward.1} parent=1 // pred_fallthru
      _
    // Predicated region
    $region34: #{ms_embedding_norm_forward.1} parent=1 // pred_check
      _
    $region35: #{ms_embedding_norm_forward.1} parent=1 // pred_check_branch
      %51 = sbr.rel (0) target = $region37
    $region36: #{ms_embedding_norm_forward.1} parent=1 // pred_region
      _
    $region37: #{ms_embedding_norm_forward.1} parent=1 // pred_fallthru
      _
    // Predicated region
    $region38: #{ms_embedding_norm_forward.1} parent=1 // pred_check
      _
    $region39: #{ms_embedding_norm_forward.1} parent=1 // pred_check_branch
      %53 = sbr.rel (0) target = $region41
    $region40: #{ms_embedding_norm_forward.1} parent=1 // pred_region
      _
    $region41: #{ms_embedding_norm_forward.1} parent=1 // pred_fallthru
      _
    // Predicated region
    $region42: #{ms_embedding_norm_forward.1} parent=1 // pred_check
      _
    $region43: #{ms_embedding_norm_forward.1} parent=1 // pred_check_branch
      %55 = sbr.rel (0) target = $region45
    $region44: #{ms_embedding_norm_forward.1} parent=1 // pred_region
      _
    $region45: #{ms_embedding_norm_forward.1} parent=1 // pred_fallthru
      _
    // Predicated region
    $region46: #{ms_embedding_norm_forward.1} parent=1 // pred_check
      _
    $region47: #{ms_embedding_norm_forward.1} parent=1 // pred_check_branch
      %57 = sbr.rel (0) target = $region49
    $region48: #{ms_embedding_norm_forward.1} parent=1 // pred_region
      _
    $region49: #{ms_embedding_norm_forward.1} parent=1 // pred_fallthru
      _
    // Predicated region
    $region50: #{ms_embedding_norm_forward.1} parent=1 // pred_check
      _
    $region51: #{ms_embedding_norm_forward.1} parent=1 // pred_check_branch
      %59 = sbr.rel (0) target = $region53
    $region52: #{ms_embedding_norm_forward.1} parent=1 // pred_region
      _
    $region53: #{ms_embedding_norm_forward.1} parent=1 // pred_fallthru
      _
    // Predicated region
    $region54: #{ms_embedding_norm_forward.1} parent=1 // pred_check
      _
    $region55: #{ms_embedding_norm_forward.1} parent=1 // pred_check_branch
      %61 = sbr.rel (0) target = $region57
    $region56: #{ms_embedding_norm_forward.1} parent=1 // pred_region
      _
    $region57: #{ms_embedding_norm_forward.1} parent=1 // pred_fallthru
      _
    // Predicated region
    $region58: #{ms_embedding_norm_forward.1} parent=1 // pred_check
      _
    $region59: #{ms_embedding_norm_forward.1} parent=1 // pred_check_branch
      %63 = sbr.rel (0) target = $region61
    $region60: #{ms_embedding_norm_forward.1} parent=1 // pred_region
      _
    $region61: #{ms_embedding_norm_forward.1} parent=1 // pred_fallthru
      _
    // Predicated region
    $region62: #{ms_embedding_norm_forward.1} parent=1 // pred_check
      _
    $region63: #{ms_embedding_norm_forward.1} parent=1 // pred_check_branch
      %65 = sbr.rel (0) target = $region65
    $region64: #{ms_embedding_norm_forward.1} parent=1 // pred_region
      _
    $region65: #{ms_embedding_norm_forward.1} parent=1 // pred_fallthru
      _
    // Predicated region
    $region66: #{ms_embedding_norm_forward.1} parent=1 // pred_check
      _
    $region67: #{ms_embedding_norm_forward.1} parent=1 // pred_check_branch
      %67 = sbr.rel (0) target = $region69
    $region68: #{ms_embedding_norm_forward.1} parent=1 // pred_region
      %69 = dma.done [#allocation3], 8192
    $region69: #{ms_embedding_norm_forward.1} parent=1 // pred_fallthru
      _
    %v70 = vld [vmem:[%s0] sm:$0xff]
    %v71 = vld [vmem:[%s0 + $0x8] sm:$0xff]
    %v72 = vld [vmem:[%s1] sm:$0x1]
    %74 = vset.pattern.permute.xlu0 0
    %75 = vperm.xlu0 %74, %v70
    %v76 = vpop.permute.xlu0 %75
    %79 = vset.pattern.permute.xlu0 0
    %80 = vperm.xlu0 %79, %v71
    %v81 = vpop.permute.xlu0 %80
    %v84 = vperm.slane %v72, 0
    %v86 = vmul.f32 %v76, %v84
    %v87 = vmul.f32 %v81, %v84
    %v88 = vld [vmem:[%s2] sm:$0x1]
    %v90 = vperm.slane %v88, 0
    %v92 = vadd.f32 %v86, %v90
    %v93 = vadd.f32 %v87, %v90
    %v94 = vmax.f32 %v92, 0.0
    %v95 = vmax.f32 %v93, 0.0
    %v96 = vld [vmem:[%s3] sm:$0x1]
    %97 = vset.pattern.permute.xlu0 1
    %98 = vperm.xlu0 %97, %v70
    %v99 = vpop.permute.xlu0 %98
    %101 = vset.pattern.permute.xlu0 1
    %102 = vperm.xlu0 %101, %v71
    %v103 = vpop.permute.xlu0 %102
    %v106 = vperm.slane %v96, 0
    %v108 = vmul.f32 %v99, %v106
    %v109 = vmul.f32 %v103, %v106
    %v110 = vld [vmem:[%s4] sm:$0x1]
    %v112 = vperm.slane %v110, 0
    %v114 = vadd.f32 %v108, %v112
    %v115 = vadd.f32 %v109, %v112
    %v116 = vmax.f32 %v114, 0.0
    %v117 = vmax.f32 %v115, 0.0
    %120 = vrot.lane.b32.xlu0 %v116, 32
    %v121 = vpop.permute.xlu0 %120
    %122 = vrot.lane.b32.xlu0 %v117, 32
    %v123 = vpop.permute.xlu0 %122
    %vm126 = vcmask 261120
    %v127 = vsel %vm126, %v94, %v121
    %v128 = vsel %vm126, %v95, %v123
    %v129 = vld [vmem:[%s5] sm:$0xff]
    %v130 = vld [vmem:[%s5 + $0x8] sm:$0xff]
    %v131 = vld [vmem:[%s5 + $0x10] sm:$0xff]
    %v132 = vld [vmem:[%s5 + $0x18] sm:$0xff]
    %v133 = vld [vmem:[%s5 + $0x20] sm:$0xff]
    %v134 = vld [vmem:[%s5 + $0x28] sm:$0xff]
    %v135 = vld [vmem:[%s5 + $0x30] sm:$0xff]
    %v136 = vld [vmem:[%s5 + $0x38] sm:$0xff]
    %v137 = vld [vmem:[%s6] sm:$0x1]
    %v139 = vperm.slane %v137, 0
    %vm141 = vcmask 523264
    %v143 = vsel %vm141, %v127, 0
    %v146 = vsel %vm141, %v128, 0
    %148 = vmatpush.msra.mxu0 0.0
    %149 = vmatpush.msra.mxu0 0.0
    %150 = vmatpush.msra.mxu0 0.0
    %151 = vmatpush.msra.mxu0 0.0
    %152 = vmatpush.msra.mxu0 0.0
    %153 = vmatpush.msra.mxu0 0.0
    %154 = vmatpush.msra.mxu0 0.0
    %155 = vmatpush.msra.mxu0 0.0
    %156 = vmatpush.msra.mxu0 %v136
    %157 = vmatpush.msra.mxu0 %v135
    %158 = vmatpush.msra.mxu0 %v134
    %159 = vmatpush.msra.mxu0 %v133
    %160 = vmatpush.msra.mxu0 %v132
    %161 = vmatpush.msra.mxu0 %v131
    %162 = vmatpush.msra.mxu0 %v130
    %163 = vmatpush.msra.mxu0 %v129
    %164 = vmatmul.f32.gmra.mxu0 %v143
    %v165 = vpop.f32.mrf.mxu0
    %v166 = vadd.f32 %v139, %v165
    %167 = vmatmul.f32.gmra.mxu0 %v146
    %v168 = vpop.f32.mrf.mxu0
    %v169 = vadd.f32 %v139, %v168
    %170 = vdwg.mxu0
    %v171 = vmax.f32 %v166, 0.0
    %v172 = vmax.f32 %v169, 0.0
    %v173 = vld [vmem:[%s8] sm:$0xf]
    %v174 = vld [vmem:[%s9] sm:$0xf]
    %v175 = vld [vmem:[%s10] sm:$0x3]
    %v176 = vld [vmem:[%s11] sm:$0x3]
    %v177 = vld [vmem:[#allocation2] sm:$0xff]
    %v178 = vld [vmem:[#allocation2 + $0x8] sm:$0xff]
    %v179 = vld [vmem:[#allocation2 + $0x10] sm:$0xff]
    %v180 = vld [vmem:[#allocation2 + $0x18] sm:$0xff]
    %v181 = vld [vmem:[#allocation2 + $0x20] sm:$0xff]
    %v182 = vld [vmem:[#allocation2 + $0x28] sm:$0xff]
    %v183 = vld [vmem:[#allocation2 + $0x30] sm:$0xff]
    %v184 = vld [vmem:[#allocation2 + $0x38] sm:$0xff]
    %v185 = vld [vmem:[#allocation2 + $0x40] sm:$0xff]
    %v186 = vld [vmem:[#allocation2 + $0x48] sm:$0xff]
    %v187 = vld [vmem:[#allocation2 + $0x50] sm:$0xff]
    %v188 = vld [vmem:[#allocation2 + $0x58] sm:$0xff]
    %v189 = vld [vmem:[#allocation2 + $0x60] sm:$0xff]
    %v190 = vld [vmem:[#allocation2 + $0x68] sm:$0xff]
    %v191 = vld [vmem:[#allocation2 + $0x70] sm:$0xff]
    %v192 = vld [vmem:[#allocation2 + $0x78] sm:$0xff]
    %v193 = vld [vmem:[#allocation2 + $0x80] sm:$0xff]
    %v194 = vld [vmem:[#allocation2 + $0x88] sm:$0xff]
    %v195 = vld [vmem:[#allocation2 + $0x90] sm:$0xff]
    %v196 = vld [vmem:[#allocation2 + $0x98] sm:$0xff]
    %v197 = vld [vmem:[#allocation2 + $0xa0] sm:$0xff]
    %v198 = vld [vmem:[#allocation2 + $0xa8] sm:$0xff]
    %v199 = vld [vmem:[#allocation2 + $0xb0] sm:$0xff]
    %v200 = vld [vmem:[#allocation2 + $0xb8] sm:$0xff]
    %v201 = vld [vmem:[#allocation2 + $0xc0] sm:$0xff]
    %v202 = vld [vmem:[#allocation2 + $0xc8] sm:$0xff]
    %v203 = vld [vmem:[#allocation2 + $0xd0] sm:$0xff]
    %v204 = vld [vmem:[#allocation2 + $0xd8] sm:$0xff]
    %v205 = vld [vmem:[#allocation2 + $0xe0] sm:$0xff]
    %v206 = vld [vmem:[#allocation2 + $0xe8] sm:$0xff]
    %v207 = vld [vmem:[#allocation2 + $0xf0] sm:$0xff]
    %v208 = vld [vmem:[#allocation2 + $0xf8] sm:$0xff]
    %v209 = vld [vmem:[#allocation2 + $0x100] sm:$0xff]
    %v210 = vld [vmem:[#allocation2 + $0x108] sm:$0xff]
    %v211 = vld [vmem:[#allocation2 + $0x110] sm:$0xff]
    %v212 = vld [vmem:[#allocation2 + $0x118] sm:$0xff]
    %v213 = vld [vmem:[#allocation2 + $0x120] sm:$0xff]
    %v214 = vld [vmem:[#allocation2 + $0x128] sm:$0xff]
    %v215 = vld [vmem:[#allocation2 + $0x130] sm:$0xff]
    %v216 = vld [vmem:[#allocation2 + $0x138] sm:$0xff]
    %v217 = vld [vmem:[#allocation2 + $0x140] sm:$0xff]
    %v218 = vld [vmem:[#allocation2 + $0x148] sm:$0xff]
    %v219 = vld [vmem:[#allocation2 + $0x150] sm:$0xff]
    %v220 = vld [vmem:[#allocation2 + $0x158] sm:$0xff]
    %v221 = vld [vmem:[#allocation2 + $0x160] sm:$0xff]
    %v222 = vld [vmem:[#allocation2 + $0x168] sm:$0xff]
    %v223 = vld [vmem:[#allocation2 + $0x170] sm:$0xff]
    %v224 = vld [vmem:[#allocation2 + $0x178] sm:$0xff]
    %v225 = vld [vmem:[#allocation2 + $0x180] sm:$0xff]
    %v226 = vld [vmem:[#allocation2 + $0x188] sm:$0xff]
    %v227 = vld [vmem:[#allocation2 + $0x190] sm:$0xff]
    %v228 = vld [vmem:[#allocation2 + $0x198] sm:$0xff]
    %v229 = vld [vmem:[#allocation2 + $0x1a0] sm:$0xff]
    %v230 = vld [vmem:[#allocation2 + $0x1a8] sm:$0xff]
    %v231 = vld [vmem:[#allocation2 + $0x1b0] sm:$0xff]
    %v232 = vld [vmem:[#allocation2 + $0x1b8] sm:$0xff]
    %v233 = vld [vmem:[#allocation2 + $0x1c0] sm:$0xff]
    %v234 = vld [vmem:[#allocation2 + $0x1c8] sm:$0xff]
    %v235 = vld [vmem:[#allocation2 + $0x1d0] sm:$0xff]
    %v236 = vld [vmem:[#allocation2 + $0x1d8] sm:$0xff]
    %v237 = vld [vmem:[#allocation2 + $0x1e0] sm:$0xff]
    %v238 = vld [vmem:[#allocation2 + $0x1e8] sm:$0xff]
    %v239 = vld [vmem:[#allocation2 + $0x1f0] sm:$0xff]
    %v240 = vld [vmem:[#allocation2 + $0x1f8] sm:$0xff]
    %v241 = vld [vmem:[%s12] sm:$0x3]
    %v242 = vld [vmem:[%s12 + $0x2] sm:$0x3]
    %v243 = vld [vmem:[%s13] sm:$0x3]
    %v244 = vld [vmem:[%s13 + $0x2] sm:$0x3]
    %246 = vrot.lane.b32.xlu0 %v241, 32
    %v247 = vpop.permute.xlu0 %246
    %v250 = vrot.slane %v172, 6
    %251 = vrot.lane.b32.xlu0 %v250, 64
    %v252 = vpop.permute.xlu0 %251
    %255 = vrot.lane.b32.xlu0 %v242, 96
    %v256 = vpop.permute.xlu0 %255
    %v258 = vsel %vm126, %v171, %v247
    %v259 = vsel %vm141, %v258, %v252
    %vm260 = vcmask 785408
    %v261 = vsel %vm260, %v259, %v256
    %262 = vmatpush.msra.mxu0 %v237
    %263 = vmatpush.msra.mxu0 %v233
    %264 = vmatpush.msra.mxu0 %v229
    %265 = vmatpush.msra.mxu0 %v225
    %266 = vmatpush.msra.mxu0 %v221
    %267 = vmatpush.msra.mxu0 %v217
    %268 = vmatpush.msra.mxu0 %v213
    %269 = vmatpush.msra.mxu0 %v209
    %270 = vmatpush.msra.mxu0 %v205
    %271 = vmatpush.msra.mxu0 %v201
    %272 = vmatpush.msra.mxu0 %v197
    %273 = vmatpush.msra.mxu0 %v193
    %274 = vmatpush.msra.mxu0 %v189
    %275 = vmatpush.msra.mxu0 %v185
    %276 = vmatpush.msra.mxu0 %v181
    %277 = vmatpush.msra.mxu0 %v177
    %278 = vmatmul.f32.gmra.mxu0 %v261
    %v279 = vpop.f32.mrf.mxu0
    %v280 = vadd.f32 0.0, %v279
    %281 = vdwg.mxu0
    %282 = vmatpush.msra.mxu0 %v238
    %283 = vmatpush.msra.mxu0 %v234
    %284 = vmatpush.msra.mxu0 %v230
    %285 = vmatpush.msra.mxu0 %v226
    %286 = vmatpush.msra.mxu0 %v222
    %287 = vmatpush.msra.mxu0 %v218
    %288 = vmatpush.msra.mxu0 %v214
    %289 = vmatpush.msra.mxu0 %v210
    %290 = vmatpush.msra.mxu0 %v206
    %291 = vmatpush.msra.mxu0 %v202
    %292 = vmatpush.msra.mxu0 %v198
    %293 = vmatpush.msra.mxu0 %v194
    %294 = vmatpush.msra.mxu0 %v190
    %295 = vmatpush.msra.mxu0 %v186
    %296 = vmatpush.msra.mxu0 %v182
    %297 = vmatpush.msra.mxu0 %v178
    %298 = vmatmul.f32.gmra.mxu0 %v261
    %v299 = vpop.f32.mrf.mxu0
    %v300 = vadd.f32 0.0, %v299
    %301 = vdwg.mxu0
    %302 = vmatpush.msra.mxu0 %v239
    %303 = vmatpush.msra.mxu0 %v235
    %304 = vmatpush.msra.mxu0 %v231
    %305 = vmatpush.msra.mxu0 %v227
    %306 = vmatpush.msra.mxu0 %v223
    %307 = vmatpush.msra.mxu0 %v219
    %308 = vmatpush.msra.mxu0 %v215
    %309 = vmatpush.msra.mxu0 %v211
    %310 = vmatpush.msra.mxu0 %v207
    %311 = vmatpush.msra.mxu0 %v203
    %312 = vmatpush.msra.mxu0 %v199
    %313 = vmatpush.msra.mxu0 %v195
    %314 = vmatpush.msra.mxu0 %v191
    %315 = vmatpush.msra.mxu0 %v187
    %316 = vmatpush.msra.mxu0 %v183
    %317 = vmatpush.msra.mxu0 %v179
    %318 = vmatmul.f32.gmra.mxu0 %v261
    %v319 = vpop.f32.mrf.mxu0
    %v320 = vadd.f32 0.0, %v319
    %321 = vdwg.mxu0
    %322 = vmatpush.msra.mxu0 %v240
    %323 = vmatpush.msra.mxu0 %v236
    %324 = vmatpush.msra.mxu0 %v232
    %325 = vmatpush.msra.mxu0 %v228
    %326 = vmatpush.msra.mxu0 %v224
    %327 = vmatpush.msra.mxu0 %v220
    %328 = vmatpush.msra.mxu0 %v216
    %329 = vmatpush.msra.mxu0 %v212
    %330 = vmatpush.msra.mxu0 %v208
    %331 = vmatpush.msra.mxu0 %v204
    %332 = vmatpush.msra.mxu0 %v200
    %333 = vmatpush.msra.mxu0 %v196
    %334 = vmatpush.msra.mxu0 %v192
    %335 = vmatpush.msra.mxu0 %v188
    %336 = vmatpush.msra.mxu0 %v184
    %337 = vmatpush.msra.mxu0 %v180
    %338 = vmatmul.f32.gmra.mxu0 %v261
    %v339 = vpop.f32.mrf.mxu0
    %v340 = vadd.f32 0.0, %v339
    %341 = vdwg.mxu0
    %vm342 = vcmask 1041408
    %v343 = vsel %vm342, %v280, 0.0
    %344 = vadd.xlane.f32.xlu0 %v343
    %v345 = vpop.xlane.xlu0 %344
    %v346 = vrcp.pop 128.0
    %v347 = vmul.f32 128.0, %v346
    %v348 = vsub.f32 1.0, %v347
    %v349 = vmul.f32 %v346, %v348
    %v350 = vadd.f32 %v346, %v349
    %vm351 = vweird.f32 %v346
    %v352 = vsel %vm351, %v346, %v350
    %v353 = vmul.f32 %v345, %v352
    %v354 = vsub.f32 %v280, %v353
    %v355 = vmul.f32 %v354, %v354
    %v356 = vsel %vm342, %v355, 0.0
    %357 = vadd.xlane.f32.xlu0 %v356
    %v358 = vpop.xlane.xlu0 %357
    %v359 = vmul.f32 %v358, %v352
    %v360 = vadd.f32 %v359, 1e-05
    %v361 = vrsqrt.pop %v360
    %v362 = vmul.f32 %v361, %v360
    %v363 = vmul.f32 %v362, %v361
    %v364 = vmul.f32 0.5, %v363
    %v365 = vsub.f32 1.5, %v364
    %v366 = vmul.f32 %v361, %v365
    %vm367 = vweird.f32 %v360
    %vm368 = vweird.f32 %v361
    %vm369 = vmor %vm367, %vm368
    %v370 = vsel %vm369, %v361, %v366
    %v371 = vmul.f32 %v354, %v370
    %v372 = vperm.slane %v173, 0
    %v373 = vmul.f32 %v371, %v372
    %v374 = vperm.slane %v174, 0
    %v375 = vadd.f32 %v373, %v374
    %v376 = vsel %vm342, %v300, 0.0
    %377 = vadd.xlane.f32.xlu0 %v376
    %v378 = vpop.xlane.xlu0 %377
    %v379 = vmul.f32 %v378, %v352
    %v380 = vsub.f32 %v300, %v379
    %v381 = vmul.f32 %v380, %v380
    %v382 = vsel %vm342, %v381, 0.0
    %383 = vadd.xlane.f32.xlu0 %v382
    %v384 = vpop.xlane.xlu0 %383
    %v385 = vmul.f32 %v384, %v352
    %v386 = vadd.f32 %v385, 1e-05
    %v387 = vrsqrt.pop %v386
    %v388 = vmul.f32 %v387, %v386
    %v389 = vmul.f32 %v388, %v387
    %v390 = vmul.f32 0.5, %v389
    %v391 = vsub.f32 1.5, %v390
    %v392 = vmul.f32 %v387, %v391
    %vm393 = vweird.f32 %v386
    %vm394 = vweird.f32 %v387
    %vm395 = vmor %vm393, %vm394
    %v396 = vsel %vm395, %v387, %v392
    %v397 = vmul.f32 %v380, %v396
    %v398 = vperm.slane %v173, 1
    %v399 = vmul.f32 %v397, %v398
    %v400 = vperm.slane %v174, 1
    %v401 = vadd.f32 %v399, %v400
    %v402 = vsel %vm342, %v320, 0.0
    %403 = vadd.xlane.f32.xlu0 %v402
    %v404 = vpop.xlane.xlu0 %403
    %v405 = vmul.f32 %v404, %v352
    %v406 = vsub.f32 %v320, %v405
    %v407 = vmul.f32 %v406, %v406
    %v408 = vsel %vm342, %v407, 0.0
    %409 = vadd.xlane.f32.xlu0 %v408
    %v410 = vpop.xlane.xlu0 %409
    %v411 = vmul.f32 %v410, %v352
    %v412 = vadd.f32 %v411, 1e-05
    %v413 = vrsqrt.pop %v412
    %v414 = vmul.f32 %v413, %v412
    %v415 = vmul.f32 %v414, %v413
    %v416 = vmul.f32 0.5, %v415
    %v417 = vsub.f32 1.5, %v416
    %v418 = vmul.f32 %v413, %v417
    %vm419 = vweird.f32 %v412
    %vm420 = vweird.f32 %v413
    %vm421 = vmor %vm419, %vm420
    %v422 = vsel %vm421, %v413, %v418
    %v423 = vmul.f32 %v406, %v422
    %v424 = vperm.slane %v173, 2
    %v425 = vmul.f32 %v423, %v424
    %v426 = vperm.slane %v174, 2
    %v427 = vadd.f32 %v425, %v426
    %v428 = vsel %vm342, %v340, 0.0
    %429 = vadd.xlane.f32.xlu0 %v428
    %v430 = vpop.xlane.xlu0 %429
    %v431 = vmul.f32 %v430, %v352
    %v432 = vsub.f32 %v340, %v431
    %v433 = vmul.f32 %v432, %v432
    %v434 = vsel %vm342, %v433, 0.0
    %435 = vadd.xlane.f32.xlu0 %v434
    %v436 = vpop.xlane.xlu0 %435
    %v437 = vmul.f32 %v436, %v352
    %v438 = vadd.f32 %v437, 1e-05
    %v439 = vrsqrt.pop %v438
    %v440 = vmul.f32 %v439, %v438
    %v441 = vmul.f32 %v440, %v439
    %v442 = vmul.f32 0.5, %v441
    %v443 = vsub.f32 1.5, %v442
    %v444 = vmul.f32 %v439, %v443
    %vm445 = vweird.f32 %v438
    %vm446 = vweird.f32 %v439
    %vm447 = vmor %vm445, %vm446
    %v448 = vsel %vm447, %v439, %v444
    %v449 = vmul.f32 %v432, %v448
    %v450 = vperm.slane %v173, 3
    %v451 = vmul.f32 %v449, %v450
    %v452 = vperm.slane %v174, 3
    %v453 = vadd.f32 %v451, %v452
    %v454 = vadd.f32 %v375, %v401
    %v455 = vxor.u32 %v454, 2147483648
    %v456 = vmul.f32 %v455, 1.442695
    %v457 = vpow.pop %v456
    %v458 = vadd.f32 %v457, 1.0
    %v459 = vrcp.pop %v458
    %v460 = vmul.f32 %v458, %v459
    %v461 = vsub.f32 1.0, %v460
    %v462 = vmul.f32 %v459, %v461
    %v463 = vadd.f32 %v459, %v462
    %vm464 = vweird.f32 %v458
    %vm465 = vweird.f32 %v459
    %vm466 = vmor %vm464, %vm465
    %v467 = vsel %vm466, %v459, %v463
    %v468 = vand.u32 2147483647, %v458
    %vm469 = vcmp.eq.f32.partialorder %v468, 8.507059e+37
    %v470 = vand.u32 %v458, 2147483648
    %v471 = vor.u32 1.1754944e-38, %v470
    %v472 = vsel %vm469, %v471, %v467
    %v473 = vmul.f32 1.0, %v472
    %v474 = vtanh.pop %v454
    %476 = vrot.lane.b32.xlu0 %v243, 32
    %v477 = vpop.permute.xlu0 %476
    %v479 = vmul.f32 %v473, %v477
    %481 = vrot.lane.b32.xlu0 %v474, 64
    %v482 = vpop.permute.xlu0 %481
    %v484 = vmul.f32 %v473, %v482
    %486 = vrot.lane.b32.xlu0 %v484, 32
    %v487 = vpop.permute.xlu0 %486
    %v489 = vadd.f32 %v479, %v487
    %491 = vrot.lane.b32.xlu0 %v489, 96
    %v492 = vpop.permute.xlu0 %491
    %vm494 = vcmask 254976
    %v495 = vsel %vm494, %v492, 0.0
    %496 = vadd.xlane.f32.xlu0 %v495
    %v497 = vpop.xlane.xlu0 %496
    %v498 = vrcp.pop 32.0
    %v499 = vmul.f32 32.0, %v498
    %v500 = vsub.f32 1.0, %v499
    %v501 = vmul.f32 %v498, %v500
    %v502 = vadd.f32 %v498, %v501
    %vm503 = vweird.f32 %v498
    %v504 = vsel %vm503, %v498, %v502
    %v505 = vmul.f32 %v497, %v504
    %v506 = vsub.f32 %v489, %v505
    %v507 = vmul.f32 %v506, %v506
    %509 = vrot.lane.b32.xlu0 %v507, 96
    %v510 = vpop.permute.xlu0 %509
    %v512 = vsel %vm494, %v510, 0.0
    %513 = vadd.xlane.f32.xlu0 %v512
    %v514 = vpop.xlane.xlu0 %513
    %v515 = vmul.f32 %v514, %v504
    %v516 = vadd.f32 %v515, 1e-05
    %v517 = vrsqrt.pop %v516
    %v518 = vmul.f32 %v517, %v516
    %v519 = vmul.f32 %v518, %v517
    %v520 = vmul.f32 0.5, %v519
    %v521 = vsub.f32 1.5, %v520
    %v522 = vmul.f32 %v517, %v521
    %vm523 = vweird.f32 %v516
    %vm524 = vweird.f32 %v517
    %vm525 = vmor %vm523, %vm524
    %v526 = vsel %vm525, %v517, %v522
    %v527 = vmul.f32 %v506, %v526
    %v528 = vperm.slane %v175, 0
    %530 = vrot.lane.b32.xlu0 %v528, 32
    %v531 = vpop.permute.xlu0 %530
    %v533 = vmul.f32 %v527, %v531
    %v534 = vperm.slane %v176, 0
    %536 = vrot.lane.b32.xlu0 %v534, 32
    %v537 = vpop.permute.xlu0 %536
    %v539 = vadd.f32 %v533, %v537
    %v540 = vtanh.pop %v539
    %542 = vrot.lane.b32.xlu0 %v540, 64
    %v543 = vpop.permute.xlu0 %542
    %v545 = vmul.f32 %v473, %v543
    %v546 = vadd.f32 %v427, %v453
    %v547 = vxor.u32 %v546, 2147483648
    %v548 = vmul.f32 %v547, 1.442695
    %v549 = vpow.pop %v548
    %v550 = vadd.f32 %v549, 1.0
    %v551 = vrcp.pop %v550
    %v552 = vmul.f32 %v550, %v551
    %v553 = vsub.f32 1.0, %v552
    %v554 = vmul.f32 %v551, %v553
    %v555 = vadd.f32 %v551, %v554
    %vm556 = vweird.f32 %v550
    %vm557 = vweird.f32 %v551
    %vm558 = vmor %vm556, %vm557
    %v559 = vsel %vm558, %v551, %v555
    %v560 = vand.u32 2147483647, %v550
    %vm561 = vcmp.eq.f32.partialorder %v560, 8.507059e+37
    %v562 = vand.u32 %v550, 2147483648
    %v563 = vor.u32 1.1754944e-38, %v562
    %v564 = vsel %vm561, %v563, %v559
    %v565 = vmul.f32 1.0, %v564
    %v566 = vtanh.pop %v546
    %568 = vrot.lane.b32.xlu0 %v244, 32
    %v569 = vpop.permute.xlu0 %568
    %v571 = vmul.f32 %v565, %v569
    %573 = vrot.lane.b32.xlu0 %v566, 64
    %v574 = vpop.permute.xlu0 %573
    %v576 = vmul.f32 %v565, %v574
    %578 = vrot.lane.b32.xlu0 %v576, 32
    %v579 = vpop.permute.xlu0 %578
    %v581 = vadd.f32 %v571, %v579
    %583 = vrot.lane.b32.xlu0 %v581, 96
    %v584 = vpop.permute.xlu0 %583
    %v586 = vsel %vm494, %v584, 0.0
    %587 = vadd.xlane.f32.xlu0 %v586
    %v588 = vpop.xlane.xlu0 %587
    %v589 = vmul.f32 %v588, %v504
    %v590 = vsub.f32 %v581, %v589
    %v591 = vmul.f32 %v590, %v590
    %593 = vrot.lane.b32.xlu0 %v591, 96
    %v594 = vpop.permute.xlu0 %593
    %v596 = vsel %vm494, %v594, 0.0
    %597 = vadd.xlane.f32.xlu0 %v596
    %v598 = vpop.xlane.xlu0 %597
    %v599 = vmul.f32 %v598, %v504
    %v600 = vadd.f32 %v599, 1e-05
    %v601 = vrsqrt.pop %v600
    %v602 = vmul.f32 %v601, %v600
    %v603 = vmul.f32 %v602, %v601
    %v604 = vmul.f32 0.5, %v603
    %v605 = vsub.f32 1.5, %v604
    %v606 = vmul.f32 %v601, %v605
    %vm607 = vweird.f32 %v600
    %vm608 = vweird.f32 %v601
    %vm609 = vmor %vm607, %vm608
    %v610 = vsel %vm609, %v601, %v606
    %v611 = vmul.f32 %v590, %v610
    %v612 = vperm.slane %v175, 1
    %614 = vrot.lane.b32.xlu0 %v612, 32
    %v615 = vpop.permute.xlu0 %614
    %v617 = vmul.f32 %v611, %v615
    %v618 = vperm.slane %v176, 1
    %620 = vrot.lane.b32.xlu0 %v618, 32
    %v621 = vpop.permute.xlu0 %620
    %v623 = vadd.f32 %v617, %v621
    %v624 = vtanh.pop %v623
    %626 = vrot.lane.b32.xlu0 %v624, 64
    %v627 = vpop.permute.xlu0 %626
    %v629 = vmul.f32 %v565, %v627
    %v631 = vrot.slane %v545, 6
    %632 = vrot.lane.b32.xlu0 %v631, 64
    %v633 = vpop.permute.xlu0 %632
    %v635 = vrot.slane %v172, 2
    %636 = vrot.lane.b32.xlu0 %v635, 64
    %v637 = vpop.permute.xlu0 %636
    %v640 = vrot.slane %v629, 6
    %v642 = vsel %vm126, %v171, %v633
    %v643 = vsel %vm141, %v642, %v637
    %v644 = vsel %vm260, %v643, %v640
    %v646 = vrot.slane %v644, 2
    %648 = vmatpush.msra.mxu0 %v237
    %649 = vmatpush.msra.mxu0 %v233
    %650 = vmatpush.msra.mxu0 %v229
    %651 = vmatpush.msra.mxu0 %v225
    %652 = vmatpush.msra.mxu0 %v221
    %653 = vmatpush.msra.mxu0 %v217
    %654 = vmatpush.msra.mxu0 %v213
    %655 = vmatpush.msra.mxu0 %v209
    %656 = vmatpush.msra.mxu0 %v205
    %657 = vmatpush.msra.mxu0 %v201
    %658 = vmatpush.msra.mxu0 %v197
    %659 = vmatpush.msra.mxu0 %v193
    %660 = vmatpush.msra.mxu0 %v189
    %661 = vmatpush.msra.mxu0 %v185
    %662 = vmatpush.msra.mxu0 %v181
    %663 = vmatpush.msra.mxu0 %v177
    %664 = vmatmul.f32.gmra.mxu0 %v646
    %v665 = vpop.f32.mrf.mxu0
    %v666 = vadd.f32 0.0, %v665
    %667 = vdwg.mxu0
    %668 = vmatpush.msra.mxu0 %v238
    %669 = vmatpush.msra.mxu0 %v234
    %670 = vmatpush.msra.mxu0 %v230
    %671 = vmatpush.msra.mxu0 %v226
    %672 = vmatpush.msra.mxu0 %v222
    %673 = vmatpush.msra.mxu0 %v218
    %674 = vmatpush.msra.mxu0 %v214
    %675 = vmatpush.msra.mxu0 %v210
    %676 = vmatpush.msra.mxu0 %v206
    %677 = vmatpush.msra.mxu0 %v202
    %678 = vmatpush.msra.mxu0 %v198
    %679 = vmatpush.msra.mxu0 %v194
    %680 = vmatpush.msra.mxu0 %v190
    %681 = vmatpush.msra.mxu0 %v186
    %682 = vmatpush.msra.mxu0 %v182
    %683 = vmatpush.msra.mxu0 %v178
    %684 = vmatmul.f32.gmra.mxu0 %v646
    %v685 = vpop.f32.mrf.mxu0
    %v686 = vadd.f32 0.0, %v685
    %687 = vdwg.mxu0
    %688 = vmatpush.msra.mxu0 %v239
    %689 = vmatpush.msra.mxu0 %v235
    %690 = vmatpush.msra.mxu0 %v231
    %691 = vmatpush.msra.mxu0 %v227
    %692 = vmatpush.msra.mxu0 %v223
    %693 = vmatpush.msra.mxu0 %v219
    %694 = vmatpush.msra.mxu0 %v215
    %695 = vmatpush.msra.mxu0 %v211
    %696 = vmatpush.msra.mxu0 %v207
    %697 = vmatpush.msra.mxu0 %v203
    %698 = vmatpush.msra.mxu0 %v199
    %699 = vmatpush.msra.mxu0 %v195
    %700 = vmatpush.msra.mxu0 %v191
    %701 = vmatpush.msra.mxu0 %v187
    %702 = vmatpush.msra.mxu0 %v183
    %703 = vmatpush.msra.mxu0 %v179
    %704 = vmatmul.f32.gmra.mxu0 %v646
    %v705 = vpop.f32.mrf.mxu0
    %v706 = vadd.f32 0.0, %v705
    %707 = vdwg.mxu0
    %708 = vmatpush.msra.mxu0 %v240
    %709 = vmatpush.msra.mxu0 %v236
    %710 = vmatpush.msra.mxu0 %v232
    %711 = vmatpush.msra.mxu0 %v228
    %712 = vmatpush.msra.mxu0 %v224
    %713 = vmatpush.msra.mxu0 %v220
    %714 = vmatpush.msra.mxu0 %v216
    %715 = vmatpush.msra.mxu0 %v212
    %716 = vmatpush.msra.mxu0 %v208
    %717 = vmatpush.msra.mxu0 %v204
    %718 = vmatpush.msra.mxu0 %v200
    %719 = vmatpush.msra.mxu0 %v196
    %720 = vmatpush.msra.mxu0 %v192
    %721 = vmatpush.msra.mxu0 %v188
    %722 = vmatpush.msra.mxu0 %v184
    %723 = vmatpush.msra.mxu0 %v180
    %724 = vmatmul.f32.gmra.mxu0 %v646
    %v725 = vpop.f32.mrf.mxu0
    %v726 = vadd.f32 0.0, %v725
    %727 = vdwg.mxu0
    %v728 = vsel %vm342, %v666, 0.0
    %729 = vadd.xlane.f32.xlu0 %v728
    %v730 = vpop.xlane.xlu0 %729
    %v731 = vmul.f32 %v730, %v352
    %v732 = vsub.f32 %v666, %v731
    %v733 = vmul.f32 %v732, %v732
    %v734 = vsel %vm342, %v733, 0.0
    %735 = vadd.xlane.f32.xlu0 %v734
    %v736 = vpop.xlane.xlu0 %735
    %v737 = vmul.f32 %v736, %v352
    %v738 = vadd.f32 %v737, 1e-05
    %v739 = vrsqrt.pop %v738
    %v740 = vmul.f32 %v739, %v738
    %v741 = vmul.f32 %v740, %v739
    %v742 = vmul.f32 0.5, %v741
    %v743 = vsub.f32 1.5, %v742
    %v744 = vmul.f32 %v739, %v743
    %vm745 = vweird.f32 %v738
    %vm746 = vweird.f32 %v739
    %vm747 = vmor %vm745, %vm746
    %v748 = vsel %vm747, %v739, %v744
    %v749 = vmul.f32 %v732, %v748
    %v750 = vmul.f32 %v749, %v372
    %v751 = vadd.f32 %v750, %v374
    %v752 = vsel %vm342, %v686, 0.0
    %753 = vadd.xlane.f32.xlu0 %v752
    %v754 = vpop.xlane.xlu0 %753
    %v755 = vmul.f32 %v754, %v352
    %v756 = vsub.f32 %v686, %v755
    %v757 = vmul.f32 %v756, %v756
    %v758 = vsel %vm342, %v757, 0.0
    %759 = vadd.xlane.f32.xlu0 %v758
    %v760 = vpop.xlane.xlu0 %759
    %v761 = vmul.f32 %v760, %v352
    %v762 = vadd.f32 %v761, 1e-05
    %v763 = vrsqrt.pop %v762
    %v764 = vmul.f32 %v763, %v762
    %v765 = vmul.f32 %v764, %v763
    %v766 = vmul.f32 0.5, %v765
    %v767 = vsub.f32 1.5, %v766
    %v768 = vmul.f32 %v763, %v767
    %vm769 = vweird.f32 %v762
    %vm770 = vweird.f32 %v763
    %vm771 = vmor %vm769, %vm770
    %v772 = vsel %vm771, %v763, %v768
    %v773 = vmul.f32 %v756, %v772
    %v774 = vmul.f32 %v773, %v398
    %v775 = vadd.f32 %v774, %v400
    %v776 = vsel %vm342, %v706, 0.0
    %777 = vadd.xlane.f32.xlu0 %v776
    %v778 = vpop.xlane.xlu0 %777
    %v779 = vmul.f32 %v778, %v352
    %v780 = vsub.f32 %v706, %v779
    %v781 = vmul.f32 %v780, %v780
    %v782 = vsel %vm342, %v781, 0.0
    %783 = vadd.xlane.f32.xlu0 %v782
    %v784 = vpop.xlane.xlu0 %783
    %v785 = vmul.f32 %v784, %v352
    %v786 = vadd.f32 %v785, 1e-05
    %v787 = vrsqrt.pop %v786
    %v788 = vmul.f32 %v787, %v786
    %v789 = vmul.f32 %v788, %v787
    %v790 = vmul.f32 0.5, %v789
    %v791 = vsub.f32 1.5, %v790
    %v792 = vmul.f32 %v787, %v791
    %vm793 = vweird.f32 %v786
    %vm794 = vweird.f32 %v787
    %vm795 = vmor %vm793, %vm794
    %v796 = vsel %vm795, %v787, %v792
    %v797 = vmul.f32 %v780, %v796
    %v798 = vmul.f32 %v797, %v424
    %v799 = vadd.f32 %v798, %v426
    %v800 = vsel %vm342, %v726, 0.0
    %801 = vadd.xlane.f32.xlu0 %v800
    %v802 = vpop.xlane.xlu0 %801
    %v803 = vmul.f32 %v802, %v352
    %v804 = vsub.f32 %v726, %v803
    %v805 = vmul.f32 %v804, %v804
    %v806 = vsel %vm342, %v805, 0.0
    %807 = vadd.xlane.f32.xlu0 %v806
    %v808 = vpop.xlane.xlu0 %807
    %v809 = vmul.f32 %v808, %v352
    %v810 = vadd.f32 %v809, 1e-05
    %v811 = vrsqrt.pop %v810
    %v812 = vmul.f32 %v811, %v810
    %v813 = vmul.f32 %v812, %v811
    %v814 = vmul.f32 0.5, %v813
    %v815 = vsub.f32 1.5, %v814
    %v816 = vmul.f32 %v811, %v815
    %vm817 = vweird.f32 %v810
    %vm818 = vweird.f32 %v811
    %vm819 = vmor %vm817, %vm818
    %v820 = vsel %vm819, %v811, %v816
    %v821 = vmul.f32 %v804, %v820
    %v822 = vmul.f32 %v821, %v450
    %v823 = vadd.f32 %v822, %v452
    %v824 = vadd.f32 %v751, %v775
    %v825 = vxor.u32 %v824, 2147483648
    %v826 = vmul.f32 %v825, 1.442695
    %v827 = vpow.pop %v826
    %v828 = vadd.f32 %v827, 1.0
    %v829 = vrcp.pop %v828
    %v830 = vmul.f32 %v828, %v829
    %v831 = vsub.f32 1.0, %v830
    %v832 = vmul.f32 %v829, %v831
    %v833 = vadd.f32 %v829, %v832
    %vm834 = vweird.f32 %v828
    %vm835 = vweird.f32 %v829
    %vm836 = vmor %vm834, %vm835
    %v837 = vsel %vm836, %v829, %v833
    %v838 = vand.u32 2147483647, %v828
    %vm839 = vcmp.eq.f32.partialorder %v838, 8.507059e+37
    %v840 = vand.u32 %v828, 2147483648
    %v841 = vor.u32 1.1754944e-38, %v840
    %v842 = vsel %vm839, %v841, %v837
    %v843 = vmul.f32 1.0, %v842
    %v844 = vtanh.pop %v824
    %v845 = vmul.f32 %v843, %v539
    %847 = vrot.lane.b32.xlu0 %v844, 64
    %v848 = vpop.permute.xlu0 %847
    %v850 = vmul.f32 %v843, %v848
    %852 = vrot.lane.b32.xlu0 %v850, 32
    %v853 = vpop.permute.xlu0 %852
    %v855 = vadd.f32 %v845, %v853
    %857 = vrot.lane.b32.xlu0 %v855, 96
    %v858 = vpop.permute.xlu0 %857
    %v860 = vsel %vm494, %v858, 0.0
    %861 = vadd.xlane.f32.xlu0 %v860
    %v862 = vpop.xlane.xlu0 %861
    %v863 = vmul.f32 %v862, %v504
    %v864 = vsub.f32 %v855, %v863
    %v865 = vmul.f32 %v864, %v864
    %867 = vrot.lane.b32.xlu0 %v865, 96
    %v868 = vpop.permute.xlu0 %867
    %v870 = vsel %vm494, %v868, 0.0
    %871 = vadd.xlane.f32.xlu0 %v870
    %v872 = vpop.xlane.xlu0 %871
    %v873 = vmul.f32 %v872, %v504
    %v874 = vadd.f32 %v873, 1e-05
    %v875 = vrsqrt.pop %v874
    %v876 = vmul.f32 %v875, %v874
    %v877 = vmul.f32 %v876, %v875
    %v878 = vmul.f32 0.5, %v877
    %v879 = vsub.f32 1.5, %v878
    %v880 = vmul.f32 %v875, %v879
    %vm881 = vweird.f32 %v874
    %vm882 = vweird.f32 %v875
    %vm883 = vmor %vm881, %vm882
    %v884 = vsel %vm883, %v875, %v880
    %v885 = vmul.f32 %v864, %v884
    %v886 = vmul.f32 %v885, %v531
    %v887 = vadd.f32 %v886, %v537
    %v888 = vtanh.pop %v887
    %890 = vrot.lane.b32.xlu0 %v888, 64
    %v891 = vpop.permute.xlu0 %890
    %v893 = vmul.f32 %v843, %v891
    %v894 = vadd.f32 %v799, %v823
    %v895 = vxor.u32 %v894, 2147483648
    %v896 = vmul.f32 %v895, 1.442695
    %v897 = vpow.pop %v896
    %v898 = vadd.f32 %v897, 1.0
    %v899 = vrcp.pop %v898
    %v900 = vmul.f32 %v898, %v899
    %v901 = vsub.f32 1.0, %v900
    %v902 = vmul.f32 %v899, %v901
    %v903 = vadd.f32 %v899, %v902
    %vm904 = vweird.f32 %v898
    %vm905 = vweird.f32 %v899
    %vm906 = vmor %vm904, %vm905
    %v907 = vsel %vm906, %v899, %v903
    %v908 = vand.u32 2147483647, %v898
    %vm909 = vcmp.eq.f32.partialorder %v908, 8.507059e+37
    %v910 = vand.u32 %v898, 2147483648
    %v911 = vor.u32 1.1754944e-38, %v910
    %v912 = vsel %vm909, %v911, %v907
    %v913 = vmul.f32 1.0, %v912
    %v914 = vtanh.pop %v894
    %v915 = vmul.f32 %v913, %v623
    %917 = vrot.lane.b32.xlu0 %v914, 64
    %v918 = vpop.permute.xlu0 %917
    %v920 = vmul.f32 %v913, %v918
    %922 = vrot.lane.b32.xlu0 %v920, 32
    %v923 = vpop.permute.xlu0 %922
    %v925 = vadd.f32 %v915, %v923
    %927 = vrot.lane.b32.xlu0 %v925, 96
    %v928 = vpop.permute.xlu0 %927
    %v930 = vsel %vm494, %v928, 0.0
    %931 = vadd.xlane.f32.xlu0 %v930
    %v932 = vpop.xlane.xlu0 %931
    %v933 = vmul.f32 %v932, %v504
    %v934 = vsub.f32 %v925, %v933
    %v935 = vmul.f32 %v934, %v934
    %937 = vrot.lane.b32.xlu0 %v935, 96
    %v938 = vpop.permute.xlu0 %937
    %v940 = vsel %vm494, %v938, 0.0
    %941 = vadd.xlane.f32.xlu0 %v940
    %v942 = vpop.xlane.xlu0 %941
    %v943 = vmul.f32 %v942, %v504
    %v944 = vadd.f32 %v943, 1e-05
    %v945 = vrsqrt.pop %v944
    %v946 = vmul.f32 %v945, %v944
    %v947 = vmul.f32 %v946, %v945
    %v948 = vmul.f32 0.5, %v947
    %v949 = vsub.f32 1.5, %v948
    %v950 = vmul.f32 %v945, %v949
    %vm951 = vweird.f32 %v944
    %vm952 = vweird.f32 %v945
    %vm953 = vmor %vm951, %vm952
    %v954 = vsel %vm953, %v945, %v950
    %v955 = vmul.f32 %v934, %v954
    %v956 = vmul.f32 %v955, %v615
    %v957 = vadd.f32 %v956, %v621
    %v958 = vtanh.pop %v957
    %960 = vrot.lane.b32.xlu0 %v958, 64
    %v961 = vpop.permute.xlu0 %960
    %v963 = vmul.f32 %v913, %v961
    %v965 = vrot.slane %v893, 4
    %966 = vrot.lane.b32.xlu0 %v965, 64
    %v967 = vpop.permute.xlu0 %966
    %v970 = vrot.slane %v963, 4
    %v972 = vsel %vm126, %v171, %v967
    %v973 = vsel %vm141, %v972, %v252
    %v974 = vsel %vm260, %v973, %v970
    %v976 = vrot.slane %v974, 4
    %978 = vmatpush.msra.mxu0 %v237
    %979 = vmatpush.msra.mxu0 %v233
    %980 = vmatpush.msra.mxu0 %v229
    %981 = vmatpush.msra.mxu0 %v225
    %982 = vmatpush.msra.mxu0 %v221
    %983 = vmatpush.msra.mxu0 %v217
    %984 = vmatpush.msra.mxu0 %v213
    %985 = vmatpush.msra.mxu0 %v209
    %986 = vmatpush.msra.mxu0 %v205
    %987 = vmatpush.msra.mxu0 %v201
    %988 = vmatpush.msra.mxu0 %v197
    %989 = vmatpush.msra.mxu0 %v193
    %990 = vmatpush.msra.mxu0 %v189
    %991 = vmatpush.msra.mxu0 %v185
    %992 = vmatpush.msra.mxu0 %v181
    %993 = vmatpush.msra.mxu0 %v177
    %994 = vmatmul.f32.gmra.mxu0 %v976
    %v995 = vpop.f32.mrf.mxu0
    %v996 = vadd.f32 0.0, %v995
    %997 = vdwg.mxu0
    %998 = vmatpush.msra.mxu0 %v238
    %999 = vmatpush.msra.mxu0 %v234
    %1000 = vmatpush.msra.mxu0 %v230
    %1001 = vmatpush.msra.mxu0 %v226
    %1002 = vmatpush.msra.mxu0 %v222
    %1003 = vmatpush.msra.mxu0 %v218
    %1004 = vmatpush.msra.mxu0 %v214
    %1005 = vmatpush.msra.mxu0 %v210
    %1006 = vmatpush.msra.mxu0 %v206
    %1007 = vmatpush.msra.mxu0 %v202
    %1008 = vmatpush.msra.mxu0 %v198
    %1009 = vmatpush.msra.mxu0 %v194
    %1010 = vmatpush.msra.mxu0 %v190
    %1011 = vmatpush.msra.mxu0 %v186
    %1012 = vmatpush.msra.mxu0 %v182
    %1013 = vmatpush.msra.mxu0 %v178
    %1014 = vmatmul.f32.gmra.mxu0 %v976
    %v1015 = vpop.f32.mrf.mxu0
    %v1016 = vadd.f32 0.0, %v1015
    %1017 = vdwg.mxu0
    %1018 = vmatpush.msra.mxu0 %v239
    %1019 = vmatpush.msra.mxu0 %v235
    %1020 = vmatpush.msra.mxu0 %v231
    %1021 = vmatpush.msra.mxu0 %v227
    %1022 = vmatpush.msra.mxu0 %v223
    %1023 = vmatpush.msra.mxu0 %v219
    %1024 = vmatpush.msra.mxu0 %v215
    %1025 = vmatpush.msra.mxu0 %v211
    %1026 = vmatpush.msra.mxu0 %v207
    %1027 = vmatpush.msra.mxu0 %v203
    %1028 = vmatpush.msra.mxu0 %v199
    %1029 = vmatpush.msra.mxu0 %v195
    %1030 = vmatpush.msra.mxu0 %v191
    %1031 = vmatpush.msra.mxu0 %v187
    %1032 = vmatpush.msra.mxu0 %v183
    %1033 = vmatpush.msra.mxu0 %v179
    %1034 = vmatmul.f32.gmra.mxu0 %v976
    %v1035 = vpop.f32.mrf.mxu0
    %v1036 = vadd.f32 0.0, %v1035
    %1037 = vdwg.mxu0
    %1038 = vmatpush.msra.mxu0 %v240
    %1039 = vmatpush.msra.mxu0 %v236
    %1040 = vmatpush.msra.mxu0 %v232
    %1041 = vmatpush.msra.mxu0 %v228
    %1042 = vmatpush.msra.mxu0 %v224
    %1043 = vmatpush.msra.mxu0 %v220
    %1044 = vmatpush.msra.mxu0 %v216
    %1045 = vmatpush.msra.mxu0 %v212
    %1046 = vmatpush.msra.mxu0 %v208
    %1047 = vmatpush.msra.mxu0 %v204
    %1048 = vmatpush.msra.mxu0 %v200
    %1049 = vmatpush.msra.mxu0 %v196
    %1050 = vmatpush.msra.mxu0 %v192
    %1051 = vmatpush.msra.mxu0 %v188
    %1052 = vmatpush.msra.mxu0 %v184
    %1053 = vmatpush.msra.mxu0 %v180
    %1054 = vmatmul.f32.gmra.mxu0 %v976
    %v1055 = vpop.f32.mrf.mxu0
    %v1056 = vadd.f32 0.0, %v1055
    %1057 = vdwg.mxu0
    %v1058 = vsel %vm342, %v996, 0.0
    %1059 = vadd.xlane.f32.xlu0 %v1058
    %v1060 = vpop.xlane.xlu0 %1059
    %v1061 = vmul.f32 %v1060, %v352
    %v1062 = vsub.f32 %v996, %v1061
    %v1063 = vmul.f32 %v1062, %v1062
    %v1064 = vsel %vm342, %v1063, 0.0
    %1065 = vadd.xlane.f32.xlu0 %v1064
    %v1066 = vpop.xlane.xlu0 %1065
    %v1067 = vmul.f32 %v1066, %v352
    %v1068 = vadd.f32 %v1067, 1e-05
    %v1069 = vrsqrt.pop %v1068
    %v1070 = vmul.f32 %v1069, %v1068
    %v1071 = vmul.f32 %v1070, %v1069
    %v1072 = vmul.f32 0.5, %v1071
    %v1073 = vsub.f32 1.5, %v1072
    %v1074 = vmul.f32 %v1069, %v1073
    %vm1075 = vweird.f32 %v1068
    %vm1076 = vweird.f32 %v1069
    %vm1077 = vmor %vm1075, %vm1076
    %v1078 = vsel %vm1077, %v1069, %v1074
    %v1079 = vmul.f32 %v1062, %v1078
    %v1080 = vmul.f32 %v1079, %v372
    %v1081 = vadd.f32 %v1080, %v374
    %v1082 = vsel %vm342, %v1016, 0.0
    %1083 = vadd.xlane.f32.xlu0 %v1082
    %v1084 = vpop.xlane.xlu0 %1083
    %v1085 = vmul.f32 %v1084, %v352
    %v1086 = vsub.f32 %v1016, %v1085
    %v1087 = vmul.f32 %v1086, %v1086
    %v1088 = vsel %vm342, %v1087, 0.0
    %1089 = vadd.xlane.f32.xlu0 %v1088
    %v1090 = vpop.xlane.xlu0 %1089
    %v1091 = vmul.f32 %v1090, %v352
    %v1092 = vadd.f32 %v1091, 1e-05
    %v1093 = vrsqrt.pop %v1092
    %v1094 = vmul.f32 %v1093, %v1092
    %v1095 = vmul.f32 %v1094, %v1093
    %v1096 = vmul.f32 0.5, %v1095
    %v1097 = vsub.f32 1.5, %v1096
    %v1098 = vmul.f32 %v1093, %v1097
    %vm1099 = vweird.f32 %v1092
    %vm1100 = vweird.f32 %v1093
    %vm1101 = vmor %vm1099, %vm1100
    %v1102 = vsel %vm1101, %v1093, %v1098
    %v1103 = vmul.f32 %v1086, %v1102
    %v1104 = vmul.f32 %v1103, %v398
    %v1105 = vadd.f32 %v1104, %v400
    %v1106 = vsel %vm342, %v1036, 0.0
    %1107 = vadd.xlane.f32.xlu0 %v1106
    %v1108 = vpop.xlane.xlu0 %1107
    %v1109 = vmul.f32 %v1108, %v352
    %v1110 = vsub.f32 %v1036, %v1109
    %v1111 = vmul.f32 %v1110, %v1110
    %v1112 = vsel %vm342, %v1111, 0.0
    %1113 = vadd.xlane.f32.xlu0 %v1112
    %v1114 = vpop.xlane.xlu0 %1113
    %v1115 = vmul.f32 %v1114, %v352
    %v1116 = vadd.f32 %v1115, 1e-05
    %v1117 = vrsqrt.pop %v1116
    %v1118 = vmul.f32 %v1117, %v1116
    %v1119 = vmul.f32 %v1118, %v1117
    %v1120 = vmul.f32 0.5, %v1119
    %v1121 = vsub.f32 1.5, %v1120
    %v1122 = vmul.f32 %v1117, %v1121
    %vm1123 = vweird.f32 %v1116
    %vm1124 = vweird.f32 %v1117
    %vm1125 = vmor %vm1123, %vm1124
    %v1126 = vsel %vm1125, %v1117, %v1122
    %v1127 = vmul.f32 %v1110, %v1126
    %v1128 = vmul.f32 %v1127, %v424
    %v1129 = vadd.f32 %v1128, %v426
    %v1130 = vsel %vm342, %v1056, 0.0
    %1131 = vadd.xlane.f32.xlu0 %v1130
    %v1132 = vpop.xlane.xlu0 %1131
    %v1133 = vmul.f32 %v1132, %v352
    %v1134 = vsub.f32 %v1056, %v1133
    %v1135 = vmul.f32 %v1134, %v1134
    %v1136 = vsel %vm342, %v1135, 0.0
    %1137 = vadd.xlane.f32.xlu0 %v1136
    %v1138 = vpop.xlane.xlu0 %1137
    %v1139 = vmul.f32 %v1138, %v352
    %v1140 = vadd.f32 %v1139, 1e-05
    %v1141 = vrsqrt.pop %v1140
    %v1142 = vmul.f32 %v1141, %v1140
    %v1143 = vmul.f32 %v1142, %v1141
    %v1144 = vmul.f32 0.5, %v1143
    %v1145 = vsub.f32 1.5, %v1144
    %v1146 = vmul.f32 %v1141, %v1145
    %vm1147 = vweird.f32 %v1140
    %vm1148 = vweird.f32 %v1141
    %vm1149 = vmor %vm1147, %vm1148
    %v1150 = vsel %vm1149, %v1141, %v1146
    %v1151 = vmul.f32 %v1134, %v1150
    %v1152 = vmul.f32 %v1151, %v450
    %v1153 = vadd.f32 %v1152, %v452
    %v1154 = vadd.f32 %v1081, %v1105
    %v1155 = vxor.u32 %v1154, 2147483648
    %v1156 = vmul.f32 %v1155, 1.442695
    %v1157 = vpow.pop %v1156
    %v1158 = vadd.f32 %v1157, 1.0
    %v1159 = vrcp.pop %v1158
    %v1160 = vmul.f32 %v1158, %v1159
    %v1161 = vsub.f32 1.0, %v1160
    %v1162 = vmul.f32 %v1159, %v1161
    %v1163 = vadd.f32 %v1159, %v1162
    %vm1164 = vweird.f32 %v1158
    %vm1165 = vweird.f32 %v1159
    %vm1166 = vmor %vm1164, %vm1165
    %v1167 = vsel %vm1166, %v1159, %v1163
    %v1168 = vand.u32 2147483647, %v1158
    %vm1169 = vcmp.eq.f32.partialorder %v1168, 8.507059e+37
    %v1170 = vand.u32 %v1158, 2147483648
    %v1171 = vor.u32 1.1754944e-38, %v1170
    %v1172 = vsel %vm1169, %v1171, %v1167
    %v1173 = vmul.f32 1.0, %v1172
    %v1174 = vtanh.pop %v1154
    %v1175 = vmul.f32 %v1173, %v887
    %1177 = vrot.lane.b32.xlu0 %v1174, 64
    %v1178 = vpop.permute.xlu0 %1177
    %v1180 = vmul.f32 %v1173, %v1178
    %1182 = vrot.lane.b32.xlu0 %v1180, 32
    %v1183 = vpop.permute.xlu0 %1182
    %v1185 = vadd.f32 %v1175, %v1183
    %1187 = vrot.lane.b32.xlu0 %v1185, 96
    %v1188 = vpop.permute.xlu0 %1187
    %v1190 = vsel %vm494, %v1188, 0.0
    %1191 = vadd.xlane.f32.xlu0 %v1190
    %v1192 = vpop.xlane.xlu0 %1191
    %v1193 = vmul.f32 %v1192, %v504
    %v1194 = vsub.f32 %v1185, %v1193
    %v1195 = vmul.f32 %v1194, %v1194
    %1197 = vrot.lane.b32.xlu0 %v1195, 96
    %v1198 = vpop.permute.xlu0 %1197
    %v1200 = vsel %vm494, %v1198, 0.0
    %1201 = vadd.xlane.f32.xlu0 %v1200
    %v1202 = vpop.xlane.xlu0 %1201
    %v1203 = vmul.f32 %v1202, %v504
    %v1204 = vadd.f32 %v1203, 1e-05
    %v1205 = vrsqrt.pop %v1204
    %v1206 = vmul.f32 %v1205, %v1204
    %v1207 = vmul.f32 %v1206, %v1205
    %v1208 = vmul.f32 0.5, %v1207
    %v1209 = vsub.f32 1.5, %v1208
    %v1210 = vmul.f32 %v1205, %v1209
    %vm1211 = vweird.f32 %v1204
    %vm1212 = vweird.f32 %v1205
    %vm1213 = vmor %vm1211, %vm1212
    %v1214 = vsel %vm1213, %v1205, %v1210
    %v1215 = vmul.f32 %v1194, %v1214
    %v1216 = vmul.f32 %v1215, %v531
    %v1217 = vadd.f32 %v1216, %v537
    %v1218 = vtanh.pop %v1217
    %1220 = vrot.lane.b32.xlu0 %v1218, 64
    %v1221 = vpop.permute.xlu0 %1220
    %v1223 = vmul.f32 %v1173, %v1221
    %v1224 = vadd.f32 %v1129, %v1153
    %v1225 = vxor.u32 %v1224, 2147483648
    %v1226 = vmul.f32 %v1225, 1.442695
    %v1227 = vpow.pop %v1226
    %v1228 = vadd.f32 %v1227, 1.0
    %v1229 = vrcp.pop %v1228
    %v1230 = vmul.f32 %v1228, %v1229
    %v1231 = vsub.f32 1.0, %v1230
    %v1232 = vmul.f32 %v1229, %v1231
    %v1233 = vadd.f32 %v1229, %v1232
    %vm1234 = vweird.f32 %v1228
    %vm1235 = vweird.f32 %v1229
    %vm1236 = vmor %vm1234, %vm1235
    %v1237 = vsel %vm1236, %v1229, %v1233
    %v1238 = vand.u32 2147483647, %v1228
    %vm1239 = vcmp.eq.f32.partialorder %v1238, 8.507059e+37
    %v1240 = vand.u32 %v1228, 2147483648
    %v1241 = vor.u32 1.1754944e-38, %v1240
    %v1242 = vsel %vm1239, %v1241, %v1237
    %v1243 = vmul.f32 1.0, %v1242
    %v1244 = vtanh.pop %v1224
    %v1245 = vmul.f32 %v1243, %v957
    %1247 = vrot.lane.b32.xlu0 %v1244, 64
    %v1248 = vpop.permute.xlu0 %1247
    %v1250 = vmul.f32 %v1243, %v1248
    %1252 = vrot.lane.b32.xlu0 %v1250, 32
    %v1253 = vpop.permute.xlu0 %1252
    %v1255 = vadd.f32 %v1245, %v1253
    %1257 = vrot.lane.b32.xlu0 %v1255, 96
    %v1258 = vpop.permute.xlu0 %1257
    %v1260 = vsel %vm494, %v1258, 0.0
    %1261 = vadd.xlane.f32.xlu0 %v1260
    %v1262 = vpop.xlane.xlu0 %1261
    %v1263 = vmul.f32 %v1262, %v504
    %v1264 = vsub.f32 %v1255, %v1263
    %v1265 = vmul.f32 %v1264, %v1264
    %1267 = vrot.lane.b32.xlu0 %v1265, 96
    %v1268 = vpop.permute.xlu0 %1267
    %v1270 = vsel %vm494, %v1268, 0.0
    %1271 = vadd.xlane.f32.xlu0 %v1270
    %v1272 = vpop.xlane.xlu0 %1271
    %v1273 = vmul.f32 %v1272, %v504
    %v1274 = vadd.f32 %v1273, 1e-05
    %v1275 = vrsqrt.pop %v1274
    %v1276 = vmul.f32 %v1275, %v1274
    %v1277 = vmul.f32 %v1276, %v1275
    %v1278 = vmul.f32 0.5, %v1277
    %v1279 = vsub.f32 1.5, %v1278
    %v1280 = vmul.f32 %v1275, %v1279
    %vm1281 = vweird.f32 %v1274
    %vm1282 = vweird.f32 %v1275
    %vm1283 = vmor %vm1281, %vm1282
    %v1284 = vsel %vm1283, %v1275, %v1280
    %v1285 = vmul.f32 %v1264, %v1284
    %v1286 = vmul.f32 %v1285, %v615
    %v1287 = vadd.f32 %v1286, %v621
    %v1288 = vtanh.pop %v1287
    %1290 = vrot.lane.b32.xlu0 %v1288, 64
    %v1291 = vpop.permute.xlu0 %1290
    %v1293 = vmul.f32 %v1243, %v1291
    %v1295 = vrot.slane %v1223, 2
    %1296 = vrot.lane.b32.xlu0 %v1295, 64
    %v1297 = vpop.permute.xlu0 %1296
    %v1300 = vrot.slane %v1293, 2
    %v1302 = vsel %vm126, %v171, %v1297
    %v1303 = vsel %vm141, %v1302, %v637
    %v1304 = vsel %vm260, %v1303, %v1300
    %v1306 = vrot.slane %v1304, 6
    %1308 = vmatpush.msra.mxu0 %v237
    %1309 = vmatpush.msra.mxu0 %v233
    %1310 = vmatpush.msra.mxu0 %v229
    %1311 = vmatpush.msra.mxu0 %v225
    %1312 = vmatpush.msra.mxu0 %v221
    %1313 = vmatpush.msra.mxu0 %v217
    %1314 = vmatpush.msra.mxu0 %v213
    %1315 = vmatpush.msra.mxu0 %v209
    %1316 = vmatpush.msra.mxu0 %v205
    %1317 = vmatpush.msra.mxu0 %v201
    %1318 = vmatpush.msra.mxu0 %v197
    %1319 = vmatpush.msra.mxu0 %v193
    %1320 = vmatpush.msra.mxu0 %v189
    %1321 = vmatpush.msra.mxu0 %v185
    %1322 = vmatpush.msra.mxu0 %v181
    %1323 = vmatpush.msra.mxu0 %v177
    %1324 = vmatmul.f32.gmra.mxu0 %v1306
    %v1325 = vpop.f32.mrf.mxu0
    %v1326 = vadd.f32 0.0, %v1325
    %1327 = vdwg.mxu0
    %1328 = vmatpush.msra.mxu0 %v238
    %1329 = vmatpush.msra.mxu0 %v234
    %1330 = vmatpush.msra.mxu0 %v230
    %1331 = vmatpush.msra.mxu0 %v226
    %1332 = vmatpush.msra.mxu0 %v222
    %1333 = vmatpush.msra.mxu0 %v218
    %1334 = vmatpush.msra.mxu0 %v214
    %1335 = vmatpush.msra.mxu0 %v210
    %1336 = vmatpush.msra.mxu0 %v206
    %1337 = vmatpush.msra.mxu0 %v202
    %1338 = vmatpush.msra.mxu0 %v198
    %1339 = vmatpush.msra.mxu0 %v194
    %1340 = vmatpush.msra.mxu0 %v190
    %1341 = vmatpush.msra.mxu0 %v186
    %1342 = vmatpush.msra.mxu0 %v182
    %1343 = vmatpush.msra.mxu0 %v178
    %1344 = vmatmul.f32.gmra.mxu0 %v1306
    %v1345 = vpop.f32.mrf.mxu0
    %v1346 = vadd.f32 0.0, %v1345
    %1347 = vdwg.mxu0
    %1348 = vmatpush.msra.mxu0 %v239
    %1349 = vmatpush.msra.mxu0 %v235
    %1350 = vmatpush.msra.mxu0 %v231
    %1351 = vmatpush.msra.mxu0 %v227
    %1352 = vmatpush.msra.mxu0 %v223
    %1353 = vmatpush.msra.mxu0 %v219
    %1354 = vmatpush.msra.mxu0 %v215
    %1355 = vmatpush.msra.mxu0 %v211
    %1356 = vmatpush.msra.mxu0 %v207
    %1357 = vmatpush.msra.mxu0 %v203
    %1358 = vmatpush.msra.mxu0 %v199
    %1359 = vmatpush.msra.mxu0 %v195
    %1360 = vmatpush.msra.mxu0 %v191
    %1361 = vmatpush.msra.mxu0 %v187
    %1362 = vmatpush.msra.mxu0 %v183
    %1363 = vmatpush.msra.mxu0 %v179
    %1364 = vmatmul.f32.gmra.mxu0 %v1306
    %v1365 = vpop.f32.mrf.mxu0
    %v1366 = vadd.f32 0.0, %v1365
    %1367 = vdwg.mxu0
    %1368 = vmatpush.msra.mxu0 %v240
    %1369 = vmatpush.msra.mxu0 %v236
    %1370 = vmatpush.msra.mxu0 %v232
    %1371 = vmatpush.msra.mxu0 %v228
    %1372 = vmatpush.msra.mxu0 %v224
    %1373 = vmatpush.msra.mxu0 %v220
    %1374 = vmatpush.msra.mxu0 %v216
    %1375 = vmatpush.msra.mxu0 %v212
    %1376 = vmatpush.msra.mxu0 %v208
    %1377 = vmatpush.msra.mxu0 %v204
    %1378 = vmatpush.msra.mxu0 %v200
    %1379 = vmatpush.msra.mxu0 %v196
    %1380 = vmatpush.msra.mxu0 %v192
    %1381 = vmatpush.msra.mxu0 %v188
    %1382 = vmatpush.msra.mxu0 %v184
    %1383 = vmatpush.msra.mxu0 %v180
    %1384 = vmatmul.f32.gmra.mxu0 %v1306
    %v1385 = vpop.f32.mrf.mxu0
    %v1386 = vadd.f32 0.0, %v1385
    %1387 = vdwg.mxu0
    %v1388 = vsel %vm342, %v1326, 0.0
    %1389 = vadd.xlane.f32.xlu0 %v1388
    %v1390 = vpop.xlane.xlu0 %1389
    %v1391 = vmul.f32 %v1390, %v352
    %v1392 = vsub.f32 %v1326, %v1391
    %v1393 = vmul.f32 %v1392, %v1392
    %v1394 = vsel %vm342, %v1393, 0.0
    %1395 = vadd.xlane.f32.xlu0 %v1394
    %v1396 = vpop.xlane.xlu0 %1395
    %v1397 = vmul.f32 %v1396, %v352
    %v1398 = vadd.f32 %v1397, 1e-05
    %v1399 = vrsqrt.pop %v1398
    %v1400 = vmul.f32 %v1399, %v1398
    %v1401 = vmul.f32 %v1400, %v1399
    %v1402 = vmul.f32 0.5, %v1401
    %v1403 = vsub.f32 1.5, %v1402
    %v1404 = vmul.f32 %v1399, %v1403
    %vm1405 = vweird.f32 %v1398
    %vm1406 = vweird.f32 %v1399
    %vm1407 = vmor %vm1405, %vm1406
    %v1408 = vsel %vm1407, %v1399, %v1404
    %v1409 = vmul.f32 %v1392, %v1408
    %v1410 = vmul.f32 %v1409, %v372
    %v1411 = vadd.f32 %v1410, %v374
    %v1412 = vsel %vm342, %v1346, 0.0
    %1413 = vadd.xlane.f32.xlu0 %v1412
    %v1414 = vpop.xlane.xlu0 %1413
    %v1415 = vmul.f32 %v1414, %v352
    %v1416 = vsub.f32 %v1346, %v1415
    %v1417 = vmul.f32 %v1416, %v1416
    %v1418 = vsel %vm342, %v1417, 0.0
    %1419 = vadd.xlane.f32.xlu0 %v1418
    %v1420 = vpop.xlane.xlu0 %1419
    %v1421 = vmul.f32 %v1420, %v352
    %v1422 = vadd.f32 %v1421, 1e-05
    %v1423 = vrsqrt.pop %v1422
    %v1424 = vmul.f32 %v1423, %v1422
    %v1425 = vmul.f32 %v1424, %v1423
    %v1426 = vmul.f32 0.5, %v1425
    %v1427 = vsub.f32 1.5, %v1426
    %v1428 = vmul.f32 %v1423, %v1427
    %vm1429 = vweird.f32 %v1422
    %vm1430 = vweird.f32 %v1423
    %vm1431 = vmor %vm1429, %vm1430
    %v1432 = vsel %vm1431, %v1423, %v1428
    %v1433 = vmul.f32 %v1416, %v1432
    %v1434 = vmul.f32 %v1433, %v398
    %v1435 = vadd.f32 %v1434, %v400
    %v1436 = vsel %vm342, %v1366, 0.0
    %1437 = vadd.xlane.f32.xlu0 %v1436
    %v1438 = vpop.xlane.xlu0 %1437
    %v1439 = vmul.f32 %v1438, %v352
    %v1440 = vsub.f32 %v1366, %v1439
    %v1441 = vmul.f32 %v1440, %v1440
    %v1442 = vsel %vm342, %v1441, 0.0
    %1443 = vadd.xlane.f32.xlu0 %v1442
    %v1444 = vpop.xlane.xlu0 %1443
    %v1445 = vmul.f32 %v1444, %v352
    %v1446 = vadd.f32 %v1445, 1e-05
    %v1447 = vrsqrt.pop %v1446
    %v1448 = vmul.f32 %v1447, %v1446
    %v1449 = vmul.f32 %v1448, %v1447
    %v1450 = vmul.f32 0.5, %v1449
    %v1451 = vsub.f32 1.5, %v1450
    %v1452 = vmul.f32 %v1447, %v1451
    %vm1453 = vweird.f32 %v1446
    %vm1454 = vweird.f32 %v1447
    %vm1455 = vmor %vm1453, %vm1454
    %v1456 = vsel %vm1455, %v1447, %v1452
    %v1457 = vmul.f32 %v1440, %v1456
    %v1458 = vmul.f32 %v1457, %v424
    %v1459 = vadd.f32 %v1458, %v426
    %v1460 = vsel %vm342, %v1386, 0.0
    %1461 = vadd.xlane.f32.xlu0 %v1460
    %v1462 = vpop.xlane.xlu0 %1461
    %v1463 = vmul.f32 %v1462, %v352
    %v1464 = vsub.f32 %v1386, %v1463
    %v1465 = vmul.f32 %v1464, %v1464
    %v1466 = vsel %vm342, %v1465, 0.0
    %1467 = vadd.xlane.f32.xlu0 %v1466
    %v1468 = vpop.xlane.xlu0 %1467
    %v1469 = vmul.f32 %v1468, %v352
    %v1470 = vadd.f32 %v1469, 1e-05
    %v1471 = vrsqrt.pop %v1470
    %v1472 = vmul.f32 %v1471, %v1470
    %v1473 = vmul.f32 %v1472, %v1471
    %v1474 = vmul.f32 0.5, %v1473
    %v1475 = vsub.f32 1.5, %v1474
    %v1476 = vmul.f32 %v1471, %v1475
    %vm1477 = vweird.f32 %v1470
    %vm1478 = vweird.f32 %v1471
    %vm1479 = vmor %vm1477, %vm1478
    %v1480 = vsel %vm1479, %v1471, %v1476
    %v1481 = vmul.f32 %v1464, %v1480
    %v1482 = vmul.f32 %v1481, %v450
    %v1483 = vadd.f32 %v1482, %v452
    %v1484 = vadd.f32 %v1411, %v1435
    %v1485 = vxor.u32 %v1484, 2147483648
    %v1486 = vmul.f32 %v1485, 1.442695
    %v1487 = vpow.pop %v1486
    %v1488 = vadd.f32 %v1487, 1.0
    %v1489 = vrcp.pop %v1488
    %v1490 = vmul.f32 %v1488, %v1489
    %v1491 = vsub.f32 1.0, %v1490
    %v1492 = vmul.f32 %v1489, %v1491
    %v1493 = vadd.f32 %v1489, %v1492
    %vm1494 = vweird.f32 %v1488
    %vm1495 = vweird.f32 %v1489
    %vm1496 = vmor %vm1494, %vm1495
    %v1497 = vsel %vm1496, %v1489, %v1493
    %v1498 = vand.u32 2147483647, %v1488
    %vm1499 = vcmp.eq.f32.partialorder %v1498, 8.507059e+37
    %v1500 = vand.u32 %v1488, 2147483648
    %v1501 = vor.u32 1.1754944e-38, %v1500
    %v1502 = vsel %vm1499, %v1501, %v1497
    %v1503 = vmul.f32 1.0, %v1502
    %v1504 = vtanh.pop %v1484
    %v1505 = vmul.f32 %v1503, %v1217
    %1507 = vrot.lane.b32.xlu0 %v1504, 64
    %v1508 = vpop.permute.xlu0 %1507
    %v1510 = vmul.f32 %v1503, %v1508
    %1512 = vrot.lane.b32.xlu0 %v1510, 32
    %v1513 = vpop.permute.xlu0 %1512
    %v1515 = vadd.f32 %v1505, %v1513
    %1517 = vrot.lane.b32.xlu0 %v1515, 96
    %v1518 = vpop.permute.xlu0 %1517
    %v1520 = vsel %vm494, %v1518, 0.0
    %1521 = vadd.xlane.f32.xlu0 %v1520
    %v1522 = vpop.xlane.xlu0 %1521
    %v1523 = vmul.f32 %v1522, %v504
    %v1524 = vsub.f32 %v1515, %v1523
    %v1525 = vmul.f32 %v1524, %v1524
    %1527 = vrot.lane.b32.xlu0 %v1525, 96
    %v1528 = vpop.permute.xlu0 %1527
    %v1530 = vsel %vm494, %v1528, 0.0
    %1531 = vadd.xlane.f32.xlu0 %v1530
    %v1532 = vpop.xlane.xlu0 %1531
    %v1533 = vmul.f32 %v1532, %v504
    %v1534 = vadd.f32 %v1533, 1e-05
    %v1535 = vrsqrt.pop %v1534
    %v1536 = vmul.f32 %v1535, %v1534
    %v1537 = vmul.f32 %v1536, %v1535
    %v1538 = vmul.f32 0.5, %v1537
    %v1539 = vsub.f32 1.5, %v1538
    %v1540 = vmul.f32 %v1535, %v1539
    %vm1541 = vweird.f32 %v1534
    %vm1542 = vweird.f32 %v1535
    %vm1543 = vmor %vm1541, %vm1542
    %v1544 = vsel %vm1543, %v1535, %v1540
    %v1545 = vmul.f32 %v1524, %v1544
    %v1546 = vmul.f32 %v1545, %v531
    %v1547 = vadd.f32 %v1546, %v537
    %v1548 = vtanh.pop %v1547
    %1550 = vrot.lane.b32.xlu0 %v1548, 64
    %v1551 = vpop.permute.xlu0 %1550
    %v1553 = vmul.f32 %v1503, %v1551
    %v1554 = vadd.f32 %v1459, %v1483
    %v1555 = vxor.u32 %v1554, 2147483648
    %v1556 = vmul.f32 %v1555, 1.442695
    %v1557 = vpow.pop %v1556
    %v1558 = vadd.f32 %v1557, 1.0
    %v1559 = vrcp.pop %v1558
    %v1560 = vmul.f32 %v1558, %v1559
    %v1561 = vsub.f32 1.0, %v1560
    %v1562 = vmul.f32 %v1559, %v1561
    %v1563 = vadd.f32 %v1559, %v1562
    %vm1564 = vweird.f32 %v1558
    %vm1565 = vweird.f32 %v1559
    %vm1566 = vmor %vm1564, %vm1565
    %v1567 = vsel %vm1566, %v1559, %v1563
    %v1568 = vand.u32 2147483647, %v1558
    %vm1569 = vcmp.eq.f32.partialorder %v1568, 8.507059e+37
    %v1570 = vand.u32 %v1558, 2147483648
    %v1571 = vor.u32 1.1754944e-38, %v1570
    %v1572 = vsel %vm1569, %v1571, %v1567
    %v1573 = vmul.f32 1.0, %v1572
    %v1574 = vtanh.pop %v1554
    %v1575 = vmul.f32 %v1573, %v1287
    %1577 = vrot.lane.b32.xlu0 %v1574, 64
    %v1578 = vpop.permute.xlu0 %1577
    %v1580 = vmul.f32 %v1573, %v1578
    %1582 = vrot.lane.b32.xlu0 %v1580, 32
    %v1583 = vpop.permute.xlu0 %1582
    %v1585 = vadd.f32 %v1575, %v1583
    %1587 = vrot.lane.b32.xlu0 %v1585, 96
    %v1588 = vpop.permute.xlu0 %1587
    %v1590 = vsel %vm494, %v1588, 0.0
    %1591 = vadd.xlane.f32.xlu0 %v1590
    %v1592 = vpop.xlane.xlu0 %1591
    %v1593 = vmul.f32 %v1592, %v504
    %v1594 = vsub.f32 %v1585, %v1593
    %v1595 = vmul.f32 %v1594, %v1594
    %1597 = vrot.lane.b32.xlu0 %v1595, 96
    %v1598 = vpop.permute.xlu0 %1597
    %v1600 = vsel %vm494, %v1598, 0.0
    %1601 = vadd.xlane.f32.xlu0 %v1600
    %v1602 = vpop.xlane.xlu0 %1601
    %v1603 = vmul.f32 %v1602, %v504
    %v1604 = vadd.f32 %v1603, 1e-05
    %v1605 = vrsqrt.pop %v1604
    %v1606 = vmul.f32 %v1605, %v1604
    %v1607 = vmul.f32 %v1606, %v1605
    %v1608 = vmul.f32 0.5, %v1607
    %v1609 = vsub.f32 1.5, %v1608
    %v1610 = vmul.f32 %v1605, %v1609
    %vm1611 = vweird.f32 %v1604
    %vm1612 = vweird.f32 %v1605
    %vm1613 = vmor %vm1611, %vm1612
    %v1614 = vsel %vm1613, %v1605, %v1610
    %v1615 = vmul.f32 %v1594, %v1614
    %v1616 = vmul.f32 %v1615, %v615
    %v1617 = vadd.f32 %v1616, %v621
    %v1618 = vtanh.pop %v1617
    %1620 = vrot.lane.b32.xlu0 %v1618, 64
    %v1621 = vpop.permute.xlu0 %1620
    %v1623 = vmul.f32 %v1573, %v1621
    %1625 = vrot.lane.b32.xlu0 %v1553, 64
    %v1626 = vpop.permute.xlu0 %1625
    %v1629 = vrot.slane %v171, 6
    %1630 = vrot.lane.b32.xlu0 %v1629, 64
    %v1631 = vpop.permute.xlu0 %1630
    %v1633 = vsel %vm126, %v172, %v1626
    %v1634 = vsel %vm141, %v1633, %v1631
    %v1635 = vsel %vm260, %v1634, %v1623
    %1636 = vmatpush.msra.mxu0 %v237
    %1637 = vmatpush.msra.mxu0 %v233
    %1638 = vmatpush.msra.mxu0 %v229
    %1639 = vmatpush.msra.mxu0 %v225
    %1640 = vmatpush.msra.mxu0 %v221
    %1641 = vmatpush.msra.mxu0 %v217
    %1642 = vmatpush.msra.mxu0 %v213
    %1643 = vmatpush.msra.mxu0 %v209
    %1644 = vmatpush.msra.mxu0 %v205
    %1645 = vmatpush.msra.mxu0 %v201
    %1646 = vmatpush.msra.mxu0 %v197
    %1647 = vmatpush.msra.mxu0 %v193
    %1648 = vmatpush.msra.mxu0 %v189
    %1649 = vmatpush.msra.mxu0 %v185
    %1650 = vmatpush.msra.mxu0 %v181
    %1651 = vmatpush.msra.mxu0 %v177
    %1652 = vmatmul.f32.gmra.mxu0 %v1635
    %v1653 = vpop.f32.mrf.mxu0
    %v1654 = vadd.f32 0.0, %v1653
    %1655 = vdwg.mxu0
    %1656 = vmatpush.msra.mxu0 %v238
    %1657 = vmatpush.msra.mxu0 %v234
    %1658 = vmatpush.msra.mxu0 %v230
    %1659 = vmatpush.msra.mxu0 %v226
    %1660 = vmatpush.msra.mxu0 %v222
    %1661 = vmatpush.msra.mxu0 %v218
    %1662 = vmatpush.msra.mxu0 %v214
    %1663 = vmatpush.msra.mxu0 %v210
    %1664 = vmatpush.msra.mxu0 %v206
    %1665 = vmatpush.msra.mxu0 %v202
    %1666 = vmatpush.msra.mxu0 %v198
    %1667 = vmatpush.msra.mxu0 %v194
    %1668 = vmatpush.msra.mxu0 %v190
    %1669 = vmatpush.msra.mxu0 %v186
    %1670 = vmatpush.msra.mxu0 %v182
    %1671 = vmatpush.msra.mxu0 %v178
    %1672 = vmatmul.f32.gmra.mxu0 %v1635
    %v1673 = vpop.f32.mrf.mxu0
    %v1674 = vadd.f32 0.0, %v1673
    %1675 = vdwg.mxu0
    %1676 = vmatpush.msra.mxu0 %v239
    %1677 = vmatpush.msra.mxu0 %v235
    %1678 = vmatpush.msra.mxu0 %v231
    %1679 = vmatpush.msra.mxu0 %v227
    %1680 = vmatpush.msra.mxu0 %v223
    %1681 = vmatpush.msra.mxu0 %v219
    %1682 = vmatpush.msra.mxu0 %v215
    %1683 = vmatpush.msra.mxu0 %v211
    %1684 = vmatpush.msra.mxu0 %v207
    %1685 = vmatpush.msra.mxu0 %v203
    %1686 = vmatpush.msra.mxu0 %v199
    %1687 = vmatpush.msra.mxu0 %v195
    %1688 = vmatpush.msra.mxu0 %v191
    %1689 = vmatpush.msra.mxu0 %v187
    %1690 = vmatpush.msra.mxu0 %v183
    %1691 = vmatpush.msra.mxu0 %v179
    %1692 = vmatmul.f32.gmra.mxu0 %v1635
    %v1693 = vpop.f32.mrf.mxu0
    %v1694 = vadd.f32 0.0, %v1693
    %1695 = vdwg.mxu0
    %1696 = vmatpush.msra.mxu0 %v240
    %1697 = vmatpush.msra.mxu0 %v236
    %1698 = vmatpush.msra.mxu0 %v232
    %1699 = vmatpush.msra.mxu0 %v228
    %1700 = vmatpush.msra.mxu0 %v224
    %1701 = vmatpush.msra.mxu0 %v220
    %1702 = vmatpush.msra.mxu0 %v216
    %1703 = vmatpush.msra.mxu0 %v212
    %1704 = vmatpush.msra.mxu0 %v208
    %1705 = vmatpush.msra.mxu0 %v204
    %1706 = vmatpush.msra.mxu0 %v200
    %1707 = vmatpush.msra.mxu0 %v196
    %1708 = vmatpush.msra.mxu0 %v192
    %1709 = vmatpush.msra.mxu0 %v188
    %1710 = vmatpush.msra.mxu0 %v184
    %1711 = vmatpush.msra.mxu0 %v180
    %1712 = vmatmul.f32.gmra.mxu0 %v1635
    %v1713 = vpop.f32.mrf.mxu0
    %v1714 = vadd.f32 0.0, %v1713
    %1715 = vdwg.mxu0
    %v1716 = vsel %vm342, %v1654, 0.0
    %1717 = vadd.xlane.f32.xlu0 %v1716
    %v1718 = vpop.xlane.xlu0 %1717
    %v1719 = vmul.f32 %v1718, %v352
    %v1720 = vsub.f32 %v1654, %v1719
    %v1721 = vmul.f32 %v1720, %v1720
    %v1722 = vsel %vm342, %v1721, 0.0
    %1723 = vadd.xlane.f32.xlu0 %v1722
    %v1724 = vpop.xlane.xlu0 %1723
    %v1725 = vmul.f32 %v1724, %v352
    %v1726 = vadd.f32 %v1725, 1e-05
    %v1727 = vrsqrt.pop %v1726
    %v1728 = vmul.f32 %v1727, %v1726
    %v1729 = vmul.f32 %v1728, %v1727
    %v1730 = vmul.f32 0.5, %v1729
    %v1731 = vsub.f32 1.5, %v1730
    %v1732 = vmul.f32 %v1727, %v1731
    %vm1733 = vweird.f32 %v1726
    %vm1734 = vweird.f32 %v1727
    %vm1735 = vmor %vm1733, %vm1734
    %v1736 = vsel %vm1735, %v1727, %v1732
    %v1737 = vmul.f32 %v1720, %v1736
    %v1738 = vmul.f32 %v1737, %v372
    %v1739 = vadd.f32 %v1738, %v374
    %v1740 = vsel %vm342, %v1674, 0.0
    %1741 = vadd.xlane.f32.xlu0 %v1740
    %v1742 = vpop.xlane.xlu0 %1741
    %v1743 = vmul.f32 %v1742, %v352
    %v1744 = vsub.f32 %v1674, %v1743
    %v1745 = vmul.f32 %v1744, %v1744
    %v1746 = vsel %vm342, %v1745, 0.0
    %1747 = vadd.xlane.f32.xlu0 %v1746
    %v1748 = vpop.xlane.xlu0 %1747
    %v1749 = vmul.f32 %v1748, %v352
    %v1750 = vadd.f32 %v1749, 1e-05
    %v1751 = vrsqrt.pop %v1750
    %v1752 = vmul.f32 %v1751, %v1750
    %v1753 = vmul.f32 %v1752, %v1751
    %v1754 = vmul.f32 0.5, %v1753
    %v1755 = vsub.f32 1.5, %v1754
    %v1756 = vmul.f32 %v1751, %v1755
    %vm1757 = vweird.f32 %v1750
    %vm1758 = vweird.f32 %v1751
    %vm1759 = vmor %vm1757, %vm1758
    %v1760 = vsel %vm1759, %v1751, %v1756
    %v1761 = vmul.f32 %v1744, %v1760
    %v1762 = vmul.f32 %v1761, %v398
    %v1763 = vadd.f32 %v1762, %v400
    %v1764 = vsel %vm342, %v1694, 0.0
    %1765 = vadd.xlane.f32.xlu0 %v1764
    %v1766 = vpop.xlane.xlu0 %1765
    %v1767 = vmul.f32 %v1766, %v352
    %v1768 = vsub.f32 %v1694, %v1767
    %v1769 = vmul.f32 %v1768, %v1768
    %v1770 = vsel %vm342, %v1769, 0.0
    %1771 = vadd.xlane.f32.xlu0 %v1770
    %v1772 = vpop.xlane.xlu0 %1771
    %v1773 = vmul.f32 %v1772, %v352
    %v1774 = vadd.f32 %v1773, 1e-05
    %v1775 = vrsqrt.pop %v1774
    %v1776 = vmul.f32 %v1775, %v1774
    %v1777 = vmul.f32 %v1776, %v1775
    %v1778 = vmul.f32 0.5, %v1777
    %v1779 = vsub.f32 1.5, %v1778
    %v1780 = vmul.f32 %v1775, %v1779
    %vm1781 = vweird.f32 %v1774
    %vm1782 = vweird.f32 %v1775
    %vm1783 = vmor %vm1781, %vm1782
    %v1784 = vsel %vm1783, %v1775, %v1780
    %v1785 = vmul.f32 %v1768, %v1784
    %v1786 = vmul.f32 %v1785, %v424
    %v1787 = vadd.f32 %v1786, %v426
    %v1788 = vsel %vm342, %v1714, 0.0
    %1789 = vadd.xlane.f32.xlu0 %v1788
    %v1790 = vpop.xlane.xlu0 %1789
    %v1791 = vmul.f32 %v1790, %v352
    %v1792 = vsub.f32 %v1714, %v1791
    %v1793 = vmul.f32 %v1792, %v1792
    %v1794 = vsel %vm342, %v1793, 0.0
    %1795 = vadd.xlane.f32.xlu0 %v1794
    %v1796 = vpop.xlane.xlu0 %1795
    %v1797 = vmul.f32 %v1796, %v352
    %v1798 = vadd.f32 %v1797, 1e-05
    %v1799 = vrsqrt.pop %v1798
    %v1800 = vmul.f32 %v1799, %v1798
    %v1801 = vmul.f32 %v1800, %v1799
    %v1802 = vmul.f32 0.5, %v1801
    %v1803 = vsub.f32 1.5, %v1802
    %v1804 = vmul.f32 %v1799, %v1803
    %vm1805 = vweird.f32 %v1798
    %vm1806 = vweird.f32 %v1799
    %vm1807 = vmor %vm1805, %vm1806
    %v1808 = vsel %vm1807, %v1799, %v1804
    %v1809 = vmul.f32 %v1792, %v1808
    %v1810 = vmul.f32 %v1809, %v450
    %v1811 = vadd.f32 %v1810, %v452
    %v1812 = vadd.f32 %v1739, %v1763
    %v1813 = vxor.u32 %v1812, 2147483648
    %v1814 = vmul.f32 %v1813, 1.442695
    %v1815 = vpow.pop %v1814
    %v1816 = vadd.f32 %v1815, 1.0
    %v1817 = vrcp.pop %v1816
    %v1818 = vmul.f32 %v1816, %v1817
    %v1819 = vsub.f32 1.0, %v1818
    %v1820 = vmul.f32 %v1817, %v1819
    %v1821 = vadd.f32 %v1817, %v1820
    %vm1822 = vweird.f32 %v1816
    %vm1823 = vweird.f32 %v1817
    %vm1824 = vmor %vm1822, %vm1823
    %v1825 = vsel %vm1824, %v1817, %v1821
    %v1826 = vand.u32 2147483647, %v1816
    %vm1827 = vcmp.eq.f32.partialorder %v1826, 8.507059e+37
    %v1828 = vand.u32 %v1816, 2147483648
    %v1829 = vor.u32 1.1754944e-38, %v1828
    %v1830 = vsel %vm1827, %v1829, %v1825
    %v1831 = vmul.f32 1.0, %v1830
    %v1832 = vtanh.pop %v1812
    %v1833 = vmul.f32 %v1831, %v1547
    %1835 = vrot.lane.b32.xlu0 %v1832, 64
    %v1836 = vpop.permute.xlu0 %1835
    %v1838 = vmul.f32 %v1831, %v1836
    %1840 = vrot.lane.b32.xlu0 %v1838, 32
    %v1841 = vpop.permute.xlu0 %1840
    %v1843 = vadd.f32 %v1833, %v1841
    %1845 = vrot.lane.b32.xlu0 %v1843, 96
    %v1846 = vpop.permute.xlu0 %1845
    %v1848 = vsel %vm494, %v1846, 0.0
    %1849 = vadd.xlane.f32.xlu0 %v1848
    %v1850 = vpop.xlane.xlu0 %1849
    %v1851 = vmul.f32 %v1850, %v504
    %v1852 = vsub.f32 %v1843, %v1851
    %v1853 = vmul.f32 %v1852, %v1852
    %1855 = vrot.lane.b32.xlu0 %v1853, 96
    %v1856 = vpop.permute.xlu0 %1855
    %v1858 = vsel %vm494, %v1856, 0.0
    %1859 = vadd.xlane.f32.xlu0 %v1858
    %v1860 = vpop.xlane.xlu0 %1859
    %v1861 = vmul.f32 %v1860, %v504
    %v1862 = vadd.f32 %v1861, 1e-05
    %v1863 = vrsqrt.pop %v1862
    %v1864 = vmul.f32 %v1863, %v1862
    %v1865 = vmul.f32 %v1864, %v1863
    %v1866 = vmul.f32 0.5, %v1865
    %v1867 = vsub.f32 1.5, %v1866
    %v1868 = vmul.f32 %v1863, %v1867
    %vm1869 = vweird.f32 %v1862
    %vm1870 = vweird.f32 %v1863
    %vm1871 = vmor %vm1869, %vm1870
    %v1872 = vsel %vm1871, %v1863, %v1868
    %v1873 = vmul.f32 %v1852, %v1872
    %v1874 = vmul.f32 %v1873, %v531
    %v1875 = vadd.f32 %v1874, %v537
    %v1876 = vtanh.pop %v1875
    %1878 = vrot.lane.b32.xlu0 %v1876, 64
    %v1879 = vpop.permute.xlu0 %1878
    %v1881 = vmul.f32 %v1831, %v1879
    %v1882 = vadd.f32 %v1787, %v1811
    %v1883 = vxor.u32 %v1882, 2147483648
    %v1884 = vmul.f32 %v1883, 1.442695
    %v1885 = vpow.pop %v1884
    %v1886 = vadd.f32 %v1885, 1.0
    %v1887 = vrcp.pop %v1886
    %v1888 = vmul.f32 %v1886, %v1887
    %v1889 = vsub.f32 1.0, %v1888
    %v1890 = vmul.f32 %v1887, %v1889
    %v1891 = vadd.f32 %v1887, %v1890
    %vm1892 = vweird.f32 %v1886
    %vm1893 = vweird.f32 %v1887
    %vm1894 = vmor %vm1892, %vm1893
    %v1895 = vsel %vm1894, %v1887, %v1891
    %v1896 = vand.u32 2147483647, %v1886
    %vm1897 = vcmp.eq.f32.partialorder %v1896, 8.507059e+37
    %v1898 = vand.u32 %v1886, 2147483648
    %v1899 = vor.u32 1.1754944e-38, %v1898
    %v1900 = vsel %vm1897, %v1899, %v1895
    %v1901 = vmul.f32 1.0, %v1900
    %v1902 = vtanh.pop %v1882
    %v1903 = vmul.f32 %v1901, %v1617
    %1905 = vrot.lane.b32.xlu0 %v1902, 64
    %v1906 = vpop.permute.xlu0 %1905
    %v1908 = vmul.f32 %v1901, %v1906
    %1910 = vrot.lane.b32.xlu0 %v1908, 32
    %v1911 = vpop.permute.xlu0 %1910
    %v1913 = vadd.f32 %v1903, %v1911
    %1915 = vrot.lane.b32.xlu0 %v1913, 96
    %v1916 = vpop.permute.xlu0 %1915
    %v1918 = vsel %vm494, %v1916, 0.0
    %1919 = vadd.xlane.f32.xlu0 %v1918
    %v1920 = vpop.xlane.xlu0 %1919
    %v1921 = vmul.f32 %v1920, %v504
    %v1922 = vsub.f32 %v1913, %v1921
    %v1923 = vmul.f32 %v1922, %v1922
    %1925 = vrot.lane.b32.xlu0 %v1923, 96
    %v1926 = vpop.permute.xlu0 %1925
    %v1928 = vsel %vm494, %v1926, 0.0
    %1929 = vadd.xlane.f32.xlu0 %v1928
    %v1930 = vpop.xlane.xlu0 %1929
    %v1931 = vmul.f32 %v1930, %v504
    %v1932 = vadd.f32 %v1931, 1e-05
    %v1933 = vrsqrt.pop %v1932
    %v1934 = vmul.f32 %v1933, %v1932
    %v1935 = vmul.f32 %v1934, %v1933
    %v1936 = vmul.f32 0.5, %v1935
    %v1937 = vsub.f32 1.5, %v1936
    %v1938 = vmul.f32 %v1933, %v1937
    %vm1939 = vweird.f32 %v1932
    %vm1940 = vweird.f32 %v1933
    %vm1941 = vmor %vm1939, %vm1940
    %v1942 = vsel %vm1941, %v1933, %v1938
    %v1943 = vmul.f32 %v1922, %v1942
    %v1944 = vmul.f32 %v1943, %v615
    %v1945 = vadd.f32 %v1944, %v621
    %v1946 = vtanh.pop %v1945
    %1948 = vrot.lane.b32.xlu0 %v1946, 64
    %v1949 = vpop.permute.xlu0 %1948
    %v1951 = vmul.f32 %v1901, %v1949
    %v1953 = vrot.slane %v1881, 6
    %1954 = vrot.lane.b32.xlu0 %v1953, 64
    %v1955 = vpop.permute.xlu0 %1954
    %v1957 = vrot.slane %v171, 2
    %1958 = vrot.lane.b32.xlu0 %v1957, 64
    %v1959 = vpop.permute.xlu0 %1958
    %v1962 = vrot.slane %v1951, 6
    %v1964 = vsel %vm126, %v172, %v1955
    %v1965 = vsel %vm141, %v1964, %v1959
    %v1966 = vsel %vm260, %v1965, %v1962
    %v1968 = vrot.slane %v1966, 2
    %1970 = vmatpush.msra.mxu0 %v237
    %1971 = vmatpush.msra.mxu0 %v233
    %1972 = vmatpush.msra.mxu0 %v229
    %1973 = vmatpush.msra.mxu0 %v225
    %1974 = vmatpush.msra.mxu0 %v221
    %1975 = vmatpush.msra.mxu0 %v217
    %1976 = vmatpush.msra.mxu0 %v213
    %1977 = vmatpush.msra.mxu0 %v209
    %1978 = vmatpush.msra.mxu0 %v205
    %1979 = vmatpush.msra.mxu0 %v201
    %1980 = vmatpush.msra.mxu0 %v197
    %1981 = vmatpush.msra.mxu0 %v193
    %1982 = vmatpush.msra.mxu0 %v189
    %1983 = vmatpush.msra.mxu0 %v185
    %1984 = vmatpush.msra.mxu0 %v181
    %1985 = vmatpush.msra.mxu0 %v177
    %1986 = vmatmul.f32.gmra.mxu0 %v1968
    %v1987 = vpop.f32.mrf.mxu0
    %v1988 = vadd.f32 0.0, %v1987
    %1989 = vdwg.mxu0
    %1990 = vmatpush.msra.mxu0 %v238
    %1991 = vmatpush.msra.mxu0 %v234
    %1992 = vmatpush.msra.mxu0 %v230
    %1993 = vmatpush.msra.mxu0 %v226
    %1994 = vmatpush.msra.mxu0 %v222
    %1995 = vmatpush.msra.mxu0 %v218
    %1996 = vmatpush.msra.mxu0 %v214
    %1997 = vmatpush.msra.mxu0 %v210
    %1998 = vmatpush.msra.mxu0 %v206
    %1999 = vmatpush.msra.mxu0 %v202
    %2000 = vmatpush.msra.mxu0 %v198
    %2001 = vmatpush.msra.mxu0 %v194
    %2002 = vmatpush.msra.mxu0 %v190
    %2003 = vmatpush.msra.mxu0 %v186
    %2004 = vmatpush.msra.mxu0 %v182
    %2005 = vmatpush.msra.mxu0 %v178
    %2006 = vmatmul.f32.gmra.mxu0 %v1968
    %v2007 = vpop.f32.mrf.mxu0
    %v2008 = vadd.f32 0.0, %v2007
    %2009 = vdwg.mxu0
    %2010 = vmatpush.msra.mxu0 %v239
    %2011 = vmatpush.msra.mxu0 %v235
    %2012 = vmatpush.msra.mxu0 %v231
    %2013 = vmatpush.msra.mxu0 %v227
    %2014 = vmatpush.msra.mxu0 %v223
    %2015 = vmatpush.msra.mxu0 %v219
    %2016 = vmatpush.msra.mxu0 %v215
    %2017 = vmatpush.msra.mxu0 %v211
    %2018 = vmatpush.msra.mxu0 %v207
    %2019 = vmatpush.msra.mxu0 %v203
    %2020 = vmatpush.msra.mxu0 %v199
    %2021 = vmatpush.msra.mxu0 %v195
    %2022 = vmatpush.msra.mxu0 %v191
    %2023 = vmatpush.msra.mxu0 %v187
    %2024 = vmatpush.msra.mxu0 %v183
    %2025 = vmatpush.msra.mxu0 %v179
    %2026 = vmatmul.f32.gmra.mxu0 %v1968
    %v2027 = vpop.f32.mrf.mxu0
    %v2028 = vadd.f32 0.0, %v2027
    %2029 = vdwg.mxu0
    %2030 = vmatpush.msra.mxu0 %v240
    %2031 = vmatpush.msra.mxu0 %v236
    %2032 = vmatpush.msra.mxu0 %v232
    %2033 = vmatpush.msra.mxu0 %v228
    %2034 = vmatpush.msra.mxu0 %v224
    %2035 = vmatpush.msra.mxu0 %v220
    %2036 = vmatpush.msra.mxu0 %v216
    %2037 = vmatpush.msra.mxu0 %v212
    %2038 = vmatpush.msra.mxu0 %v208
    %2039 = vmatpush.msra.mxu0 %v204
    %2040 = vmatpush.msra.mxu0 %v200
    %2041 = vmatpush.msra.mxu0 %v196
    %2042 = vmatpush.msra.mxu0 %v192
    %2043 = vmatpush.msra.mxu0 %v188
    %2044 = vmatpush.msra.mxu0 %v184
    %2045 = vmatpush.msra.mxu0 %v180
    %2046 = vmatmul.f32.gmra.mxu0 %v1968
    %v2047 = vpop.f32.mrf.mxu0
    %v2048 = vadd.f32 0.0, %v2047
    %2049 = vdwg.mxu0
    %v2050 = vsel %vm342, %v1988, 0.0
    %2051 = vadd.xlane.f32.xlu0 %v2050
    %v2052 = vpop.xlane.xlu0 %2051
    %v2053 = vmul.f32 %v2052, %v352
    %v2054 = vsub.f32 %v1988, %v2053
    %v2055 = vmul.f32 %v2054, %v2054
    %v2056 = vsel %vm342, %v2055, 0.0
    %2057 = vadd.xlane.f32.xlu0 %v2056
    %v2058 = vpop.xlane.xlu0 %2057
    %v2059 = vmul.f32 %v2058, %v352
    %v2060 = vadd.f32 %v2059, 1e-05
    %v2061 = vrsqrt.pop %v2060
    %v2062 = vmul.f32 %v2061, %v2060
    %v2063 = vmul.f32 %v2062, %v2061
    %v2064 = vmul.f32 0.5, %v2063
    %v2065 = vsub.f32 1.5, %v2064
    %v2066 = vmul.f32 %v2061, %v2065
    %vm2067 = vweird.f32 %v2060
    %vm2068 = vweird.f32 %v2061
    %vm2069 = vmor %vm2067, %vm2068
    %v2070 = vsel %vm2069, %v2061, %v2066
    %v2071 = vmul.f32 %v2054, %v2070
    %v2072 = vmul.f32 %v2071, %v372
    %v2073 = vadd.f32 %v2072, %v374
    %v2074 = vsel %vm342, %v2008, 0.0
    %2075 = vadd.xlane.f32.xlu0 %v2074
    %v2076 = vpop.xlane.xlu0 %2075
    %v2077 = vmul.f32 %v2076, %v352
    %v2078 = vsub.f32 %v2008, %v2077
    %v2079 = vmul.f32 %v2078, %v2078
    %v2080 = vsel %vm342, %v2079, 0.0
    %2081 = vadd.xlane.f32.xlu0 %v2080
    %v2082 = vpop.xlane.xlu0 %2081
    %v2083 = vmul.f32 %v2082, %v352
    %v2084 = vadd.f32 %v2083, 1e-05
    %v2085 = vrsqrt.pop %v2084
    %v2086 = vmul.f32 %v2085, %v2084
    %v2087 = vmul.f32 %v2086, %v2085
    %v2088 = vmul.f32 0.5, %v2087
    %v2089 = vsub.f32 1.5, %v2088
    %v2090 = vmul.f32 %v2085, %v2089
    %vm2091 = vweird.f32 %v2084
    %vm2092 = vweird.f32 %v2085
    %vm2093 = vmor %vm2091, %vm2092
    %v2094 = vsel %vm2093, %v2085, %v2090
    %v2095 = vmul.f32 %v2078, %v2094
    %v2096 = vmul.f32 %v2095, %v398
    %v2097 = vadd.f32 %v2096, %v400
    %v2098 = vsel %vm342, %v2028, 0.0
    %2099 = vadd.xlane.f32.xlu0 %v2098
    %v2100 = vpop.xlane.xlu0 %2099
    %v2101 = vmul.f32 %v2100, %v352
    %v2102 = vsub.f32 %v2028, %v2101
    %v2103 = vmul.f32 %v2102, %v2102
    %v2104 = vsel %vm342, %v2103, 0.0
    %2105 = vadd.xlane.f32.xlu0 %v2104
    %v2106 = vpop.xlane.xlu0 %2105
    %v2107 = vmul.f32 %v2106, %v352
    %v2108 = vadd.f32 %v2107, 1e-05
    %v2109 = vrsqrt.pop %v2108
    %v2110 = vmul.f32 %v2109, %v2108
    %v2111 = vmul.f32 %v2110, %v2109
    %v2112 = vmul.f32 0.5, %v2111
    %v2113 = vsub.f32 1.5, %v2112
    %v2114 = vmul.f32 %v2109, %v2113
    %vm2115 = vweird.f32 %v2108
    %vm2116 = vweird.f32 %v2109
    %vm2117 = vmor %vm2115, %vm2116
    %v2118 = vsel %vm2117, %v2109, %v2114
    %v2119 = vmul.f32 %v2102, %v2118
    %v2120 = vmul.f32 %v2119, %v424
    %v2121 = vadd.f32 %v2120, %v426
    %v2122 = vsel %vm342, %v2048, 0.0
    %2123 = vadd.xlane.f32.xlu0 %v2122
    %v2124 = vpop.xlane.xlu0 %2123
    %v2125 = vmul.f32 %v2124, %v352
    %v2126 = vsub.f32 %v2048, %v2125
    %v2127 = vmul.f32 %v2126, %v2126
    %v2128 = vsel %vm342, %v2127, 0.0
    %2129 = vadd.xlane.f32.xlu0 %v2128
    %v2130 = vpop.xlane.xlu0 %2129
    %v2131 = vmul.f32 %v2130, %v352
    %v2132 = vadd.f32 %v2131, 1e-05
    %v2133 = vrsqrt.pop %v2132
    %v2134 = vmul.f32 %v2133, %v2132
    %v2135 = vmul.f32 %v2134, %v2133
    %v2136 = vmul.f32 0.5, %v2135
    %v2137 = vsub.f32 1.5, %v2136
    %v2138 = vmul.f32 %v2133, %v2137
    %vm2139 = vweird.f32 %v2132
    %vm2140 = vweird.f32 %v2133
    %vm2141 = vmor %vm2139, %vm2140
    %v2142 = vsel %vm2141, %v2133, %v2138
    %v2143 = vmul.f32 %v2126, %v2142
    %v2144 = vmul.f32 %v2143, %v450
    %v2145 = vadd.f32 %v2144, %v452
    %v2146 = vadd.f32 %v2073, %v2097
    %v2147 = vxor.u32 %v2146, 2147483648
    %v2148 = vmul.f32 %v2147, 1.442695
    %v2149 = vpow.pop %v2148
    %v2150 = vadd.f32 %v2149, 1.0
    %v2151 = vrcp.pop %v2150
    %v2152 = vmul.f32 %v2150, %v2151
    %v2153 = vsub.f32 1.0, %v2152
    %v2154 = vmul.f32 %v2151, %v2153
    %v2155 = vadd.f32 %v2151, %v2154
    %vm2156 = vweird.f32 %v2150
    %vm2157 = vweird.f32 %v2151
    %vm2158 = vmor %vm2156, %vm2157
    %v2159 = vsel %vm2158, %v2151, %v2155
    %v2160 = vand.u32 2147483647, %v2150
    %vm2161 = vcmp.eq.f32.partialorder %v2160, 8.507059e+37
    %v2162 = vand.u32 %v2150, 2147483648
    %v2163 = vor.u32 1.1754944e-38, %v2162
    %v2164 = vsel %vm2161, %v2163, %v2159
    %v2165 = vmul.f32 1.0, %v2164
    %v2166 = vtanh.pop %v2146
    %v2167 = vmul.f32 %v2165, %v1875
    %2169 = vrot.lane.b32.xlu0 %v2166, 64
    %v2170 = vpop.permute.xlu0 %2169
    %v2172 = vmul.f32 %v2165, %v2170
    %2174 = vrot.lane.b32.xlu0 %v2172, 32
    %v2175 = vpop.permute.xlu0 %2174
    %v2177 = vadd.f32 %v2167, %v2175
    %2179 = vrot.lane.b32.xlu0 %v2177, 96
    %v2180 = vpop.permute.xlu0 %2179
    %v2182 = vsel %vm494, %v2180, 0.0
    %2183 = vadd.xlane.f32.xlu0 %v2182
    %v2184 = vpop.xlane.xlu0 %2183
    %v2185 = vmul.f32 %v2184, %v504
    %v2186 = vsub.f32 %v2177, %v2185
    %v2187 = vmul.f32 %v2186, %v2186
    %2189 = vrot.lane.b32.xlu0 %v2187, 96
    %v2190 = vpop.permute.xlu0 %2189
    %v2192 = vsel %vm494, %v2190, 0.0
    %2193 = vadd.xlane.f32.xlu0 %v2192
    %v2194 = vpop.xlane.xlu0 %2193
    %v2195 = vmul.f32 %v2194, %v504
    %v2196 = vadd.f32 %v2195, 1e-05
    %v2197 = vrsqrt.pop %v2196
    %v2198 = vmul.f32 %v2197, %v2196
    %v2199 = vmul.f32 %v2198, %v2197
    %v2200 = vmul.f32 0.5, %v2199
    %v2201 = vsub.f32 1.5, %v2200
    %v2202 = vmul.f32 %v2197, %v2201
    %vm2203 = vweird.f32 %v2196
    %vm2204 = vweird.f32 %v2197
    %vm2205 = vmor %vm2203, %vm2204
    %v2206 = vsel %vm2205, %v2197, %v2202
    %v2207 = vmul.f32 %v2186, %v2206
    %v2208 = vmul.f32 %v2207, %v531
    %v2209 = vadd.f32 %v2208, %v537
    %v2210 = vtanh.pop %v2209
    %2212 = vrot.lane.b32.xlu0 %v2210, 64
    %v2213 = vpop.permute.xlu0 %2212
    %v2215 = vmul.f32 %v2165, %v2213
    %v2216 = vadd.f32 %v2121, %v2145
    %v2217 = vxor.u32 %v2216, 2147483648
    %v2218 = vmul.f32 %v2217, 1.442695
    %v2219 = vpow.pop %v2218
    %v2220 = vadd.f32 %v2219, 1.0
    %v2221 = vrcp.pop %v2220
    %v2222 = vmul.f32 %v2220, %v2221
    %v2223 = vsub.f32 1.0, %v2222
    %v2224 = vmul.f32 %v2221, %v2223
    %v2225 = vadd.f32 %v2221, %v2224
    %vm2226 = vweird.f32 %v2220
    %vm2227 = vweird.f32 %v2221
    %vm2228 = vmor %vm2226, %vm2227
    %v2229 = vsel %vm2228, %v2221, %v2225
    %v2230 = vand.u32 2147483647, %v2220
    %vm2231 = vcmp.eq.f32.partialorder %v2230, 8.507059e+37
    %v2232 = vand.u32 %v2220, 2147483648
    %v2233 = vor.u32 1.1754944e-38, %v2232
    %v2234 = vsel %vm2231, %v2233, %v2229
    %v2235 = vmul.f32 1.0, %v2234
    %v2236 = vtanh.pop %v2216
    %v2237 = vmul.f32 %v2235, %v1945
    %2239 = vrot.lane.b32.xlu0 %v2236, 64
    %v2240 = vpop.permute.xlu0 %2239
    %v2242 = vmul.f32 %v2235, %v2240
    %2244 = vrot.lane.b32.xlu0 %v2242, 32
    %v2245 = vpop.permute.xlu0 %2244
    %v2247 = vadd.f32 %v2237, %v2245
    %2249 = vrot.lane.b32.xlu0 %v2247, 96
    %v2250 = vpop.permute.xlu0 %2249
    %v2252 = vsel %vm494, %v2250, 0.0
    %2253 = vadd.xlane.f32.xlu0 %v2252
    %v2254 = vpop.xlane.xlu0 %2253
    %v2255 = vmul.f32 %v2254, %v504
    %v2256 = vsub.f32 %v2247, %v2255
    %v2257 = vmul.f32 %v2256, %v2256
    %2259 = vrot.lane.b32.xlu0 %v2257, 96
    %v2260 = vpop.permute.xlu0 %2259
    %v2262 = vsel %vm494, %v2260, 0.0
    %2263 = vadd.xlane.f32.xlu0 %v2262
    %v2264 = vpop.xlane.xlu0 %2263
    %v2265 = vmul.f32 %v2264, %v504
    %v2266 = vadd.f32 %v2265, 1e-05
    %v2267 = vrsqrt.pop %v2266
    %v2268 = vmul.f32 %v2267, %v2266
    %v2269 = vmul.f32 %v2268, %v2267
    %v2270 = vmul.f32 0.5, %v2269
    %v2271 = vsub.f32 1.5, %v2270
    %v2272 = vmul.f32 %v2267, %v2271
    %vm2273 = vweird.f32 %v2266
    %vm2274 = vweird.f32 %v2267
    %vm2275 = vmor %vm2273, %vm2274
    %v2276 = vsel %vm2275, %v2267, %v2272
    %v2277 = vmul.f32 %v2256, %v2276
    %v2278 = vmul.f32 %v2277, %v615
    %v2279 = vadd.f32 %v2278, %v621
    %v2280 = vtanh.pop %v2279
    %2282 = vrot.lane.b32.xlu0 %v2280, 64
    %v2283 = vpop.permute.xlu0 %2282
    %v2285 = vmul.f32 %v2235, %v2283
    %v2287 = vrot.slane %v2215, 4
    %2288 = vrot.lane.b32.xlu0 %v2287, 64
    %v2289 = vpop.permute.xlu0 %2288
    %v2292 = vrot.slane %v2285, 4
    %v2294 = vsel %vm126, %v172, %v2289
    %v2295 = vsel %vm141, %v2294, %v1631
    %v2296 = vsel %vm260, %v2295, %v2292
    %v2298 = vrot.slane %v2296, 4
    %2300 = vmatpush.msra.mxu0 %v237
    %2301 = vmatpush.msra.mxu0 %v233
    %2302 = vmatpush.msra.mxu0 %v229
    %2303 = vmatpush.msra.mxu0 %v225
    %2304 = vmatpush.msra.mxu0 %v221
    %2305 = vmatpush.msra.mxu0 %v217
    %2306 = vmatpush.msra.mxu0 %v213
    %2307 = vmatpush.msra.mxu0 %v209
    %2308 = vmatpush.msra.mxu0 %v205
    %2309 = vmatpush.msra.mxu0 %v201
    %2310 = vmatpush.msra.mxu0 %v197
    %2311 = vmatpush.msra.mxu0 %v193
    %2312 = vmatpush.msra.mxu0 %v189
    %2313 = vmatpush.msra.mxu0 %v185
    %2314 = vmatpush.msra.mxu0 %v181
    %2315 = vmatpush.msra.mxu0 %v177
    %2316 = vmatmul.f32.gmra.mxu0 %v2298
    %v2317 = vpop.f32.mrf.mxu0
    %v2318 = vadd.f32 0.0, %v2317
    %2319 = vdwg.mxu0
    %2320 = vmatpush.msra.mxu0 %v238
    %2321 = vmatpush.msra.mxu0 %v234
    %2322 = vmatpush.msra.mxu0 %v230
    %2323 = vmatpush.msra.mxu0 %v226
    %2324 = vmatpush.msra.mxu0 %v222
    %2325 = vmatpush.msra.mxu0 %v218
    %2326 = vmatpush.msra.mxu0 %v214
    %2327 = vmatpush.msra.mxu0 %v210
    %2328 = vmatpush.msra.mxu0 %v206
    %2329 = vmatpush.msra.mxu0 %v202
    %2330 = vmatpush.msra.mxu0 %v198
    %2331 = vmatpush.msra.mxu0 %v194
    %2332 = vmatpush.msra.mxu0 %v190
    %2333 = vmatpush.msra.mxu0 %v186
    %2334 = vmatpush.msra.mxu0 %v182
    %2335 = vmatpush.msra.mxu0 %v178
    %2336 = vmatmul.f32.gmra.mxu0 %v2298
    %v2337 = vpop.f32.mrf.mxu0
    %v2338 = vadd.f32 0.0, %v2337
    %2339 = vdwg.mxu0
    %2340 = vmatpush.msra.mxu0 %v239
    %2341 = vmatpush.msra.mxu0 %v235
    %2342 = vmatpush.msra.mxu0 %v231
    %2343 = vmatpush.msra.mxu0 %v227
    %2344 = vmatpush.msra.mxu0 %v223
    %2345 = vmatpush.msra.mxu0 %v219
    %2346 = vmatpush.msra.mxu0 %v215
    %2347 = vmatpush.msra.mxu0 %v211
    %2348 = vmatpush.msra.mxu0 %v207
    %2349 = vmatpush.msra.mxu0 %v203
    %2350 = vmatpush.msra.mxu0 %v199
    %2351 = vmatpush.msra.mxu0 %v195
    %2352 = vmatpush.msra.mxu0 %v191
    %2353 = vmatpush.msra.mxu0 %v187
    %2354 = vmatpush.msra.mxu0 %v183
    %2355 = vmatpush.msra.mxu0 %v179
    %2356 = vmatmul.f32.gmra.mxu0 %v2298
    %v2357 = vpop.f32.mrf.mxu0
    %v2358 = vadd.f32 0.0, %v2357
    %2359 = vdwg.mxu0
    %2360 = vmatpush.msra.mxu0 %v240
    %2361 = vmatpush.msra.mxu0 %v236
    %2362 = vmatpush.msra.mxu0 %v232
    %2363 = vmatpush.msra.mxu0 %v228
    %2364 = vmatpush.msra.mxu0 %v224
    %2365 = vmatpush.msra.mxu0 %v220
    %2366 = vmatpush.msra.mxu0 %v216
    %2367 = vmatpush.msra.mxu0 %v212
    %2368 = vmatpush.msra.mxu0 %v208
    %2369 = vmatpush.msra.mxu0 %v204
    %2370 = vmatpush.msra.mxu0 %v200
    %2371 = vmatpush.msra.mxu0 %v196
    %2372 = vmatpush.msra.mxu0 %v192
    %2373 = vmatpush.msra.mxu0 %v188
    %2374 = vmatpush.msra.mxu0 %v184
    %2375 = vmatpush.msra.mxu0 %v180
    %2376 = vmatmul.f32.gmra.mxu0 %v2298
    %v2377 = vpop.f32.mrf.mxu0
    %v2378 = vadd.f32 0.0, %v2377
    %2379 = vdwg.mxu0
    %v2380 = vsel %vm342, %v2318, 0.0
    %2381 = vadd.xlane.f32.xlu0 %v2380
    %v2382 = vpop.xlane.xlu0 %2381
    %v2383 = vmul.f32 %v2382, %v352
    %v2384 = vsub.f32 %v2318, %v2383
    %v2385 = vmul.f32 %v2384, %v2384
    %v2386 = vsel %vm342, %v2385, 0.0
    %2387 = vadd.xlane.f32.xlu0 %v2386
    %v2388 = vpop.xlane.xlu0 %2387
    %v2389 = vmul.f32 %v2388, %v352
    %v2390 = vadd.f32 %v2389, 1e-05
    %v2391 = vrsqrt.pop %v2390
    %v2392 = vmul.f32 %v2391, %v2390
    %v2393 = vmul.f32 %v2392, %v2391
    %v2394 = vmul.f32 0.5, %v2393
    %v2395 = vsub.f32 1.5, %v2394
    %v2396 = vmul.f32 %v2391, %v2395
    %vm2397 = vweird.f32 %v2390
    %vm2398 = vweird.f32 %v2391
    %vm2399 = vmor %vm2397, %vm2398
    %v2400 = vsel %vm2399, %v2391, %v2396
    %v2401 = vmul.f32 %v2384, %v2400
    %v2402 = vmul.f32 %v2401, %v372
    %v2403 = vadd.f32 %v2402, %v374
    %v2404 = vsel %vm342, %v2338, 0.0
    %2405 = vadd.xlane.f32.xlu0 %v2404
    %v2406 = vpop.xlane.xlu0 %2405
    %v2407 = vmul.f32 %v2406, %v352
    %v2408 = vsub.f32 %v2338, %v2407
    %v2409 = vmul.f32 %v2408, %v2408
    %v2410 = vsel %vm342, %v2409, 0.0
    %2411 = vadd.xlane.f32.xlu0 %v2410
    %v2412 = vpop.xlane.xlu0 %2411
    %v2413 = vmul.f32 %v2412, %v352
    %v2414 = vadd.f32 %v2413, 1e-05
    %v2415 = vrsqrt.pop %v2414
    %v2416 = vmul.f32 %v2415, %v2414
    %v2417 = vmul.f32 %v2416, %v2415
    %v2418 = vmul.f32 0.5, %v2417
    %v2419 = vsub.f32 1.5, %v2418
    %v2420 = vmul.f32 %v2415, %v2419
    %vm2421 = vweird.f32 %v2414
    %vm2422 = vweird.f32 %v2415
    %vm2423 = vmor %vm2421, %vm2422
    %v2424 = vsel %vm2423, %v2415, %v2420
    %v2425 = vmul.f32 %v2408, %v2424
    %v2426 = vmul.f32 %v2425, %v398
    %v2427 = vadd.f32 %v2426, %v400
    %v2428 = vsel %vm342, %v2358, 0.0
    %2429 = vadd.xlane.f32.xlu0 %v2428
    %v2430 = vpop.xlane.xlu0 %2429
    %v2431 = vmul.f32 %v2430, %v352
    %v2432 = vsub.f32 %v2358, %v2431
    %v2433 = vmul.f32 %v2432, %v2432
    %v2434 = vsel %vm342, %v2433, 0.0
    %2435 = vadd.xlane.f32.xlu0 %v2434
    %v2436 = vpop.xlane.xlu0 %2435
    %v2437 = vmul.f32 %v2436, %v352
    %v2438 = vadd.f32 %v2437, 1e-05
    %v2439 = vrsqrt.pop %v2438
    %v2440 = vmul.f32 %v2439, %v2438
    %v2441 = vmul.f32 %v2440, %v2439
    %v2442 = vmul.f32 0.5, %v2441
    %v2443 = vsub.f32 1.5, %v2442
    %v2444 = vmul.f32 %v2439, %v2443
    %vm2445 = vweird.f32 %v2438
    %vm2446 = vweird.f32 %v2439
    %vm2447 = vmor %vm2445, %vm2446
    %v2448 = vsel %vm2447, %v2439, %v2444
    %v2449 = vmul.f32 %v2432, %v2448
    %v2450 = vmul.f32 %v2449, %v424
    %v2451 = vadd.f32 %v2450, %v426
    %v2452 = vsel %vm342, %v2378, 0.0
    %2453 = vadd.xlane.f32.xlu0 %v2452
    %v2454 = vpop.xlane.xlu0 %2453
    %v2455 = vmul.f32 %v2454, %v352
    %v2456 = vsub.f32 %v2378, %v2455
    %v2457 = vmul.f32 %v2456, %v2456
    %v2458 = vsel %vm342, %v2457, 0.0
    %2459 = vadd.xlane.f32.xlu0 %v2458
    %v2460 = vpop.xlane.xlu0 %2459
    %v2461 = vmul.f32 %v2460, %v352
    %v2462 = vadd.f32 %v2461, 1e-05
    %v2463 = vrsqrt.pop %v2462
    %v2464 = vmul.f32 %v2463, %v2462
    %v2465 = vmul.f32 %v2464, %v2463
    %v2466 = vmul.f32 0.5, %v2465
    %v2467 = vsub.f32 1.5, %v2466
    %v2468 = vmul.f32 %v2463, %v2467
    %vm2469 = vweird.f32 %v2462
    %vm2470 = vweird.f32 %v2463
    %vm2471 = vmor %vm2469, %vm2470
    %v2472 = vsel %vm2471, %v2463, %v2468
    %v2473 = vmul.f32 %v2456, %v2472
    %v2474 = vmul.f32 %v2473, %v450
    %v2475 = vadd.f32 %v2474, %v452
    %v2476 = vadd.f32 %v2403, %v2427
    %v2477 = vxor.u32 %v2476, 2147483648
    %v2478 = vmul.f32 %v2477, 1.442695
    %v2479 = vpow.pop %v2478
    %v2480 = vadd.f32 %v2479, 1.0
    %v2481 = vrcp.pop %v2480
    %v2482 = vmul.f32 %v2480, %v2481
    %v2483 = vsub.f32 1.0, %v2482
    %v2484 = vmul.f32 %v2481, %v2483
    %v2485 = vadd.f32 %v2481, %v2484
    %vm2486 = vweird.f32 %v2480
    %vm2487 = vweird.f32 %v2481
    %vm2488 = vmor %vm2486, %vm2487
    %v2489 = vsel %vm2488, %v2481, %v2485
    %v2490 = vand.u32 2147483647, %v2480
    %vm2491 = vcmp.eq.f32.partialorder %v2490, 8.507059e+37
    %v2492 = vand.u32 %v2480, 2147483648
    %v2493 = vor.u32 1.1754944e-38, %v2492
    %v2494 = vsel %vm2491, %v2493, %v2489
    %v2495 = vmul.f32 1.0, %v2494
    %v2496 = vtanh.pop %v2476
    %v2497 = vmul.f32 %v2495, %v2209
    %2499 = vrot.lane.b32.xlu0 %v2496, 64
    %v2500 = vpop.permute.xlu0 %2499
    %v2502 = vmul.f32 %v2495, %v2500
    %2504 = vrot.lane.b32.xlu0 %v2502, 32
    %v2505 = vpop.permute.xlu0 %2504
    %v2507 = vadd.f32 %v2497, %v2505
    %2509 = vrot.lane.b32.xlu0 %v2507, 96
    %v2510 = vpop.permute.xlu0 %2509
    %v2512 = vsel %vm494, %v2510, 0.0
    %2513 = vadd.xlane.f32.xlu0 %v2512
    %v2514 = vpop.xlane.xlu0 %2513
    %v2515 = vmul.f32 %v2514, %v504
    %v2516 = vsub.f32 %v2507, %v2515
    %v2517 = vmul.f32 %v2516, %v2516
    %2519 = vrot.lane.b32.xlu0 %v2517, 96
    %v2520 = vpop.permute.xlu0 %2519
    %v2522 = vsel %vm494, %v2520, 0.0
    %2523 = vadd.xlane.f32.xlu0 %v2522
    %v2524 = vpop.xlane.xlu0 %2523
    %v2525 = vmul.f32 %v2524, %v504
    %v2526 = vadd.f32 %v2525, 1e-05
    %v2527 = vrsqrt.pop %v2526
    %v2528 = vmul.f32 %v2527, %v2526
    %v2529 = vmul.f32 %v2528, %v2527
    %v2530 = vmul.f32 0.5, %v2529
    %v2531 = vsub.f32 1.5, %v2530
    %v2532 = vmul.f32 %v2527, %v2531
    %vm2533 = vweird.f32 %v2526
    %vm2534 = vweird.f32 %v2527
    %vm2535 = vmor %vm2533, %vm2534
    %v2536 = vsel %vm2535, %v2527, %v2532
    %v2537 = vmul.f32 %v2516, %v2536
    %v2538 = vmul.f32 %v2537, %v531
    %v2539 = vadd.f32 %v2538, %v537
    %v2540 = vtanh.pop %v2539
    %2542 = vrot.lane.b32.xlu0 %v2540, 64
    %v2543 = vpop.permute.xlu0 %2542
    %v2545 = vmul.f32 %v2495, %v2543
    %v2546 = vadd.f32 %v2451, %v2475
    %v2547 = vxor.u32 %v2546, 2147483648
    %v2548 = vmul.f32 %v2547, 1.442695
    %v2549 = vpow.pop %v2548
    %v2550 = vadd.f32 %v2549, 1.0
    %v2551 = vrcp.pop %v2550
    %v2552 = vmul.f32 %v2550, %v2551
    %v2553 = vsub.f32 1.0, %v2552
    %v2554 = vmul.f32 %v2551, %v2553
    %v2555 = vadd.f32 %v2551, %v2554
    %vm2556 = vweird.f32 %v2550
    %vm2557 = vweird.f32 %v2551
    %vm2558 = vmor %vm2556, %vm2557
    %v2559 = vsel %vm2558, %v2551, %v2555
    %v2560 = vand.u32 2147483647, %v2550
    %vm2561 = vcmp.eq.f32.partialorder %v2560, 8.507059e+37
    %v2562 = vand.u32 %v2550, 2147483648
    %v2563 = vor.u32 1.1754944e-38, %v2562
    %v2564 = vsel %vm2561, %v2563, %v2559
    %v2565 = vmul.f32 1.0, %v2564
    %v2566 = vtanh.pop %v2546
    %v2567 = vmul.f32 %v2565, %v2279
    %2569 = vrot.lane.b32.xlu0 %v2566, 64
    %v2570 = vpop.permute.xlu0 %2569
    %v2572 = vmul.f32 %v2565, %v2570
    %2574 = vrot.lane.b32.xlu0 %v2572, 32
    %v2575 = vpop.permute.xlu0 %2574
    %v2577 = vadd.f32 %v2567, %v2575
    %2579 = vrot.lane.b32.xlu0 %v2577, 96
    %v2580 = vpop.permute.xlu0 %2579
    %v2582 = vsel %vm494, %v2580, 0.0
    %2583 = vadd.xlane.f32.xlu0 %v2582
    %v2584 = vpop.xlane.xlu0 %2583
    %v2585 = vmul.f32 %v2584, %v504
    %v2586 = vsub.f32 %v2577, %v2585
    %v2587 = vmul.f32 %v2586, %v2586
    %2589 = vrot.lane.b32.xlu0 %v2587, 96
    %v2590 = vpop.permute.xlu0 %2589
    %v2592 = vsel %vm494, %v2590, 0.0
    %2593 = vadd.xlane.f32.xlu0 %v2592
    %v2594 = vpop.xlane.xlu0 %2593
    %v2595 = vmul.f32 %v2594, %v504
    %v2596 = vadd.f32 %v2595, 1e-05
    %v2597 = vrsqrt.pop %v2596
    %v2598 = vmul.f32 %v2597, %v2596
    %v2599 = vmul.f32 %v2598, %v2597
    %v2600 = vmul.f32 0.5, %v2599
    %v2601 = vsub.f32 1.5, %v2600
    %v2602 = vmul.f32 %v2597, %v2601
    %vm2603 = vweird.f32 %v2596
    %vm2604 = vweird.f32 %v2597
    %vm2605 = vmor %vm2603, %vm2604
    %v2606 = vsel %vm2605, %v2597, %v2602
    %v2607 = vmul.f32 %v2586, %v2606
    %v2608 = vmul.f32 %v2607, %v615
    %v2609 = vadd.f32 %v2608, %v621
    %v2610 = vtanh.pop %v2609
    %2612 = vrot.lane.b32.xlu0 %v2610, 64
    %v2613 = vpop.permute.xlu0 %2612
    %v2615 = vmul.f32 %v2565, %v2613
    %v2617 = vrot.slane %v2545, 2
    %2618 = vrot.lane.b32.xlu0 %v2617, 64
    %v2619 = vpop.permute.xlu0 %2618
    %v2622 = vrot.slane %v2615, 2
    %v2624 = vsel %vm126, %v172, %v2619
    %v2625 = vsel %vm141, %v2624, %v1959
    %v2626 = vsel %vm260, %v2625, %v2622
    %v2628 = vrot.slane %v2626, 6
    %2630 = vmatpush.msra.mxu0 %v237
    %2631 = vmatpush.msra.mxu0 %v233
    %2632 = vmatpush.msra.mxu0 %v229
    %2633 = vmatpush.msra.mxu0 %v225
    %2634 = vmatpush.msra.mxu0 %v221
    %2635 = vmatpush.msra.mxu0 %v217
    %2636 = vmatpush.msra.mxu0 %v213
    %2637 = vmatpush.msra.mxu0 %v209
    %2638 = vmatpush.msra.mxu0 %v205
    %2639 = vmatpush.msra.mxu0 %v201
    %2640 = vmatpush.msra.mxu0 %v197
    %2641 = vmatpush.msra.mxu0 %v193
    %2642 = vmatpush.msra.mxu0 %v189
    %2643 = vmatpush.msra.mxu0 %v185
    %2644 = vmatpush.msra.mxu0 %v181
    %2645 = vmatpush.msra.mxu0 %v177
    %2646 = vmatmul.f32.gmra.mxu0 %v2628
    %v2647 = vpop.f32.mrf.mxu0
    %v2648 = vadd.f32 0.0, %v2647
    %2649 = vdwg.mxu0
    %2650 = vmatpush.msra.mxu0 %v238
    %2651 = vmatpush.msra.mxu0 %v234
    %2652 = vmatpush.msra.mxu0 %v230
    %2653 = vmatpush.msra.mxu0 %v226
    %2654 = vmatpush.msra.mxu0 %v222
    %2655 = vmatpush.msra.mxu0 %v218
    %2656 = vmatpush.msra.mxu0 %v214
    %2657 = vmatpush.msra.mxu0 %v210
    %2658 = vmatpush.msra.mxu0 %v206
    %2659 = vmatpush.msra.mxu0 %v202
    %2660 = vmatpush.msra.mxu0 %v198
    %2661 = vmatpush.msra.mxu0 %v194
    %2662 = vmatpush.msra.mxu0 %v190
    %2663 = vmatpush.msra.mxu0 %v186
    %2664 = vmatpush.msra.mxu0 %v182
    %2665 = vmatpush.msra.mxu0 %v178
    %2666 = vmatmul.f32.gmra.mxu0 %v2628
    %v2667 = vpop.f32.mrf.mxu0
    %v2668 = vadd.f32 0.0, %v2667
    %2669 = vdwg.mxu0
    %2670 = vmatpush.msra.mxu0 %v239
    %2671 = vmatpush.msra.mxu0 %v235
    %2672 = vmatpush.msra.mxu0 %v231
    %2673 = vmatpush.msra.mxu0 %v227
    %2674 = vmatpush.msra.mxu0 %v223
    %2675 = vmatpush.msra.mxu0 %v219
    %2676 = vmatpush.msra.mxu0 %v215
    %2677 = vmatpush.msra.mxu0 %v211
    %2678 = vmatpush.msra.mxu0 %v207
    %2679 = vmatpush.msra.mxu0 %v203
    %2680 = vmatpush.msra.mxu0 %v199
    %2681 = vmatpush.msra.mxu0 %v195
    %2682 = vmatpush.msra.mxu0 %v191
    %2683 = vmatpush.msra.mxu0 %v187
    %2684 = vmatpush.msra.mxu0 %v183
    %2685 = vmatpush.msra.mxu0 %v179
    %2686 = vmatmul.f32.gmra.mxu0 %v2628
    %v2687 = vpop.f32.mrf.mxu0
    %v2688 = vadd.f32 0.0, %v2687
    %2689 = vdwg.mxu0
    %2690 = vmatpush.msra.mxu0 %v240
    %2691 = vmatpush.msra.mxu0 %v236
    %2692 = vmatpush.msra.mxu0 %v232
    %2693 = vmatpush.msra.mxu0 %v228
    %2694 = vmatpush.msra.mxu0 %v224
    %2695 = vmatpush.msra.mxu0 %v220
    %2696 = vmatpush.msra.mxu0 %v216
    %2697 = vmatpush.msra.mxu0 %v212
    %2698 = vmatpush.msra.mxu0 %v208
    %2699 = vmatpush.msra.mxu0 %v204
    %2700 = vmatpush.msra.mxu0 %v200
    %2701 = vmatpush.msra.mxu0 %v196
    %2702 = vmatpush.msra.mxu0 %v192
    %2703 = vmatpush.msra.mxu0 %v188
    %2704 = vmatpush.msra.mxu0 %v184
    %2705 = vmatpush.msra.mxu0 %v180
    %2706 = vmatmul.f32.gmra.mxu0 %v2628
    %v2707 = vpop.f32.mrf.mxu0
    %v2708 = vadd.f32 0.0, %v2707
    %2709 = vdwg.mxu0
    %v2710 = vsel %vm342, %v2648, 0.0
    %2711 = vadd.xlane.f32.xlu0 %v2710
    %v2712 = vpop.xlane.xlu0 %2711
    %v2713 = vmul.f32 %v2712, %v352
    %v2714 = vsub.f32 %v2648, %v2713
    %v2715 = vmul.f32 %v2714, %v2714
    %v2716 = vsel %vm342, %v2715, 0.0
    %2717 = vadd.xlane.f32.xlu0 %v2716
    %v2718 = vpop.xlane.xlu0 %2717
    %v2719 = vmul.f32 %v2718, %v352
    %v2720 = vadd.f32 %v2719, 1e-05
    %v2721 = vrsqrt.pop %v2720
    %v2722 = vmul.f32 %v2721, %v2720
    %v2723 = vmul.f32 %v2722, %v2721
    %v2724 = vmul.f32 0.5, %v2723
    %v2725 = vsub.f32 1.5, %v2724
    %v2726 = vmul.f32 %v2721, %v2725
    %vm2727 = vweird.f32 %v2720
    %vm2728 = vweird.f32 %v2721
    %vm2729 = vmor %vm2727, %vm2728
    %v2730 = vsel %vm2729, %v2721, %v2726
    %v2731 = vmul.f32 %v2714, %v2730
    %v2732 = vmul.f32 %v2731, %v372
    %v2733 = vadd.f32 %v2732, %v374
    %v2734 = vsel %vm342, %v2668, 0.0
    %2735 = vadd.xlane.f32.xlu0 %v2734
    %v2736 = vpop.xlane.xlu0 %2735
    %v2737 = vmul.f32 %v2736, %v352
    %v2738 = vsub.f32 %v2668, %v2737
    %v2739 = vmul.f32 %v2738, %v2738
    %v2740 = vsel %vm342, %v2739, 0.0
    %2741 = vadd.xlane.f32.xlu0 %v2740
    %v2742 = vpop.xlane.xlu0 %2741
    %v2743 = vmul.f32 %v2742, %v352
    %v2744 = vadd.f32 %v2743, 1e-05
    %v2745 = vrsqrt.pop %v2744
    %v2746 = vmul.f32 %v2745, %v2744
    %v2747 = vmul.f32 %v2746, %v2745
    %v2748 = vmul.f32 0.5, %v2747
    %v2749 = vsub.f32 1.5, %v2748
    %v2750 = vmul.f32 %v2745, %v2749
    %vm2751 = vweird.f32 %v2744
    %vm2752 = vweird.f32 %v2745
    %vm2753 = vmor %vm2751, %vm2752
    %v2754 = vsel %vm2753, %v2745, %v2750
    %v2755 = vmul.f32 %v2738, %v2754
    %v2756 = vmul.f32 %v2755, %v398
    %v2757 = vadd.f32 %v2756, %v400
    %v2758 = vsel %vm342, %v2688, 0.0
    %2759 = vadd.xlane.f32.xlu0 %v2758
    %v2760 = vpop.xlane.xlu0 %2759
    %v2761 = vmul.f32 %v2760, %v352
    %v2762 = vsub.f32 %v2688, %v2761
    %v2763 = vmul.f32 %v2762, %v2762
    %v2764 = vsel %vm342, %v2763, 0.0
    %2765 = vadd.xlane.f32.xlu0 %v2764
    %v2766 = vpop.xlane.xlu0 %2765
    %v2767 = vmul.f32 %v2766, %v352
    %v2768 = vadd.f32 %v2767, 1e-05
    %v2769 = vrsqrt.pop %v2768
    %v2770 = vmul.f32 %v2769, %v2768
    %v2771 = vmul.f32 %v2770, %v2769
    %v2772 = vmul.f32 0.5, %v2771
    %v2773 = vsub.f32 1.5, %v2772
    %v2774 = vmul.f32 %v2769, %v2773
    %vm2775 = vweird.f32 %v2768
    %vm2776 = vweird.f32 %v2769
    %vm2777 = vmor %vm2775, %vm2776
    %v2778 = vsel %vm2777, %v2769, %v2774
    %v2779 = vmul.f32 %v2762, %v2778
    %v2780 = vmul.f32 %v2779, %v424
    %v2781 = vadd.f32 %v2780, %v426
    %v2782 = vsel %vm342, %v2708, 0.0
    %2783 = vadd.xlane.f32.xlu0 %v2782
    %v2784 = vpop.xlane.xlu0 %2783
    %v2785 = vmul.f32 %v2784, %v352
    %v2786 = vsub.f32 %v2708, %v2785
    %v2787 = vmul.f32 %v2786, %v2786
    %v2788 = vsel %vm342, %v2787, 0.0
    %2789 = vadd.xlane.f32.xlu0 %v2788
    %v2790 = vpop.xlane.xlu0 %2789
    %v2791 = vmul.f32 %v2790, %v352
    %v2792 = vadd.f32 %v2791, 1e-05
    %v2793 = vrsqrt.pop %v2792
    %v2794 = vmul.f32 %v2793, %v2792
    %v2795 = vmul.f32 %v2794, %v2793
    %v2796 = vmul.f32 0.5, %v2795
    %v2797 = vsub.f32 1.5, %v2796
    %v2798 = vmul.f32 %v2793, %v2797
    %vm2799 = vweird.f32 %v2792
    %vm2800 = vweird.f32 %v2793
    %vm2801 = vmor %vm2799, %vm2800
    %v2802 = vsel %vm2801, %v2793, %v2798
    %v2803 = vmul.f32 %v2786, %v2802
    %v2804 = vmul.f32 %v2803, %v450
    %v2805 = vadd.f32 %v2804, %v452
    %v2806 = vadd.f32 %v2733, %v2757
    %v2807 = vxor.u32 %v2806, 2147483648
    %v2808 = vmul.f32 %v2807, 1.442695
    %v2809 = vpow.pop %v2808
    %v2810 = vadd.f32 %v2809, 1.0
    %v2811 = vrcp.pop %v2810
    %v2812 = vmul.f32 %v2810, %v2811
    %v2813 = vsub.f32 1.0, %v2812
    %v2814 = vmul.f32 %v2811, %v2813
    %v2815 = vadd.f32 %v2811, %v2814
    %vm2816 = vweird.f32 %v2810
    %vm2817 = vweird.f32 %v2811
    %vm2818 = vmor %vm2816, %vm2817
    %v2819 = vsel %vm2818, %v2811, %v2815
    %v2820 = vand.u32 2147483647, %v2810
    %vm2821 = vcmp.eq.f32.partialorder %v2820, 8.507059e+37
    %v2822 = vand.u32 %v2810, 2147483648
    %v2823 = vor.u32 1.1754944e-38, %v2822
    %v2824 = vsel %vm2821, %v2823, %v2819
    %v2825 = vmul.f32 1.0, %v2824
    %v2826 = vtanh.pop %v2806
    %v2827 = vmul.f32 %v2825, %v2539
    %2829 = vrot.lane.b32.xlu0 %v2826, 64
    %v2830 = vpop.permute.xlu0 %2829
    %v2832 = vmul.f32 %v2825, %v2830
    %2834 = vrot.lane.b32.xlu0 %v2832, 32
    %v2835 = vpop.permute.xlu0 %2834
    %v2837 = vadd.f32 %v2827, %v2835
    %2839 = vrot.lane.b32.xlu0 %v2837, 96
    %v2840 = vpop.permute.xlu0 %2839
    %v2842 = vsel %vm494, %v2840, 0.0
    %2843 = vadd.xlane.f32.xlu0 %v2842
    %v2844 = vpop.xlane.xlu0 %2843
    %v2845 = vmul.f32 %v2844, %v504
    %v2846 = vsub.f32 %v2837, %v2845
    %v2847 = vmul.f32 %v2846, %v2846
    %2849 = vrot.lane.b32.xlu0 %v2847, 96
    %v2850 = vpop.permute.xlu0 %2849
    %v2852 = vsel %vm494, %v2850, 0.0
    %2853 = vadd.xlane.f32.xlu0 %v2852
    %v2854 = vpop.xlane.xlu0 %2853
    %v2855 = vmul.f32 %v2854, %v504
    %v2856 = vadd.f32 %v2855, 1e-05
    %v2857 = vrsqrt.pop %v2856
    %v2858 = vmul.f32 %v2857, %v2856
    %v2859 = vmul.f32 %v2858, %v2857
    %v2860 = vmul.f32 0.5, %v2859
    %v2861 = vsub.f32 1.5, %v2860
    %v2862 = vmul.f32 %v2857, %v2861
    %vm2863 = vweird.f32 %v2856
    %vm2864 = vweird.f32 %v2857
    %vm2865 = vmor %vm2863, %vm2864
    %v2866 = vsel %vm2865, %v2857, %v2862
    %v2867 = vmul.f32 %v2846, %v2866
    %v2868 = vmul.f32 %v2867, %v531
    %v2869 = vadd.f32 %v2868, %v537
    %v2870 = vadd.f32 %v2781, %v2805
    %v2871 = vxor.u32 %v2870, 2147483648
    %v2872 = vmul.f32 %v2871, 1.442695
    %v2873 = vpow.pop %v2872
    %v2874 = vadd.f32 %v2873, 1.0
    %v2875 = vrcp.pop %v2874
    %v2876 = vmul.f32 %v2874, %v2875
    %v2877 = vsub.f32 1.0, %v2876
    %v2878 = vmul.f32 %v2875, %v2877
    %v2879 = vadd.f32 %v2875, %v2878
    %vm2880 = vweird.f32 %v2874
    %vm2881 = vweird.f32 %v2875
    %vm2882 = vmor %vm2880, %vm2881
    %v2883 = vsel %vm2882, %v2875, %v2879
    %v2884 = vand.u32 2147483647, %v2874
    %vm2885 = vcmp.eq.f32.partialorder %v2884, 8.507059e+37
    %v2886 = vand.u32 %v2874, 2147483648
    %v2887 = vor.u32 1.1754944e-38, %v2886
    %v2888 = vsel %vm2885, %v2887, %v2883
    %v2889 = vmul.f32 1.0, %v2888
    %v2890 = vtanh.pop %v2870
    %v2891 = vmul.f32 %v2889, %v2609
    %2893 = vrot.lane.b32.xlu0 %v2890, 64
    %v2894 = vpop.permute.xlu0 %2893
    %v2896 = vmul.f32 %v2889, %v2894
    %2898 = vrot.lane.b32.xlu0 %v2896, 32
    %v2899 = vpop.permute.xlu0 %2898
    %v2901 = vadd.f32 %v2891, %v2899
    %2903 = vrot.lane.b32.xlu0 %v2901, 96
    %v2904 = vpop.permute.xlu0 %2903
    %v2906 = vsel %vm494, %v2904, 0.0
    %2907 = vadd.xlane.f32.xlu0 %v2906
    %v2908 = vpop.xlane.xlu0 %2907
    %v2909 = vmul.f32 %v2908, %v504
    %v2910 = vsub.f32 %v2901, %v2909
    %v2911 = vmul.f32 %v2910, %v2910
    %2913 = vrot.lane.b32.xlu0 %v2911, 96
    %v2914 = vpop.permute.xlu0 %2913
    %v2916 = vsel %vm494, %v2914, 0.0
    %2917 = vadd.xlane.f32.xlu0 %v2916
    %v2918 = vpop.xlane.xlu0 %2917
    %v2919 = vmul.f32 %v2918, %v504
    %v2920 = vadd.f32 %v2919, 1e-05
    %v2921 = vrsqrt.pop %v2920
    %v2922 = vmul.f32 %v2921, %v2920
    %v2923 = vmul.f32 %v2922, %v2921
    %v2924 = vmul.f32 0.5, %v2923
    %v2925 = vsub.f32 1.5, %v2924
    %v2926 = vmul.f32 %v2921, %v2925
    %vm2927 = vweird.f32 %v2920
    %vm2928 = vweird.f32 %v2921
    %vm2929 = vmor %vm2927, %vm2928
    %v2930 = vsel %vm2929, %v2921, %v2926
    %v2931 = vmul.f32 %v2910, %v2930
    %v2932 = vmul.f32 %v2931, %v615
    %v2933 = vadd.f32 %v2932, %v621
    %2935 = vrot.lane.b32.xlu0 %v2869, 96
    %v2936 = vpop.permute.xlu0 %2935
    %v2938 = vsel %vm126, %v2936, %v2933
    %v2939 = vld [vmem:[%s14] sm:$0xff]
    %v2940 = vld [vmem:[%s14 + $0x8] sm:$0xff]
    %v2941 = vld [vmem:[%s14 + $0x10] sm:$0xff]
    %v2942 = vld [vmem:[%s14 + $0x18] sm:$0xff]
    %v2943 = vld [vmem:[%s14 + $0x20] sm:$0xff]
    %v2944 = vld [vmem:[%s14 + $0x28] sm:$0xff]
    %v2945 = vld [vmem:[%s14 + $0x30] sm:$0xff]
    %v2946 = vld [vmem:[%s14 + $0x38] sm:$0xff]
    %v2947 = vld [vmem:[%s15] sm:$0x1]
    %v2949 = vperm.slane %v2947, 0
    %v2952 = vsel %vm141, %v2938, 0
    %2954 = vmatpush.msra.mxu0 0.0
    %2955 = vmatpush.msra.mxu0 0.0
    %2956 = vmatpush.msra.mxu0 0.0
    %2957 = vmatpush.msra.mxu0 0.0
    %2958 = vmatpush.msra.mxu0 0.0
    %2959 = vmatpush.msra.mxu0 0.0
    %2960 = vmatpush.msra.mxu0 0.0
    %2961 = vmatpush.msra.mxu0 0.0
    %2962 = vmatpush.msra.mxu0 %v2946
    %2963 = vmatpush.msra.mxu0 %v2945
    %2964 = vmatpush.msra.mxu0 %v2944
    %2965 = vmatpush.msra.mxu0 %v2943
    %2966 = vmatpush.msra.mxu0 %v2942
    %2967 = vmatpush.msra.mxu0 %v2941
    %2968 = vmatpush.msra.mxu0 %v2940
    %2969 = vmatpush.msra.mxu0 %v2939
    %2970 = vmatmul.f32.gmra.mxu0 %v2952
    %v2971 = vpop.f32.mrf.mxu0
    %v2972 = vadd.f32 %v2949, %v2971
    %2973 = vdwg.mxu0
    %v2974 = vmax.f32 %v2972, 0.0
    %2975 = vst.msk [vmem:[#allocation5] sm:$0x3] %vm494, %v2974
    // Predicated region
    $region70: #{ms_embedding_norm_forward.1} parent=1 // pred_check
      _
    $region71: #{ms_embedding_norm_forward.1} parent=1 // pred_check_branch
      %2977 = sbr.rel (0) target = $region73
    $region72: #{ms_embedding_norm_forward.1} parent=1 // pred_region
      %2979 = vsyncadd [#allocation4], 0
      %s2981 = sshll.u32 [#allocation5], 4
      %s2982 = int_to_ptr.vmem [resolvable:$true] %s2981
      %s2983 = sshll.u32 %s16, 4
      %s2984 = int_to_ptr.hbm [resolvable:$true] %s2983
      %2986 = dma.vmem_to_hbm [thread:$0]  %s2982, 32, %s2984, [#allocation4]
    $region73: #{ms_embedding_norm_forward.1} parent=1 // pred_fallthru
      _
    // Predicated region
    $region74: #{ms_embedding_norm_forward.1} parent=1 // pred_check
      _
    $region75: #{ms_embedding_norm_forward.1} parent=1 // pred_check_branch
      %2988 = sbr.rel (0) target = $region77
    $region76: #{ms_embedding_norm_forward.1} parent=1 // pred_region
      %2990 = dma.done [#allocation4], 32
    $region77: #{ms_embedding_norm_forward.1} parent=1 // pred_fallthru
      _
    %2991 = vsyncpa [#allocation3], 1
    %2992 = vsyncpa [#allocation4], 1

</llo_original>
